<compile_context>
chip_gen: v7x
topology: tpu7x:2x2x1
jax: 0.10.0
libtpu: 0.0.40
codegen_flags: <defaults>
</compile_context>

<pallas_src>
import functools

import jax
import jax.numpy as jnp
import numpy as np
from jax import lax
from jax.experimental import pallas as pl
from jax.experimental.pallas import tpu as pltpu


def _pd_kernel(xw_ref, mask_ref, w1_ref, w2_ref, b1_ref, b2_ref, o_ref, *,
               L, P, TH, leaky_slope, compute_dtype):
    """Fused Conv3x3(Ci->C1) + LeakyReLU + Conv3x3(C1->1) on one row tile.

    xw_ref   : (1, 1, (TH+6)*L, Ci)  row-flattened padded input window
    mask_ref : (1, P*L, 1)           1.0 where the conv1 output is a valid
                                     (non-padding) pixel for conv2, else 0.0
    w1_ref   : (9, Ci, C1)           conv1 taps, k = 3*dh + dw
    w2_ref   : (9, C1, 1)            conv2 taps
    b1_ref   : (1, C1)
    b2_ref   : (1, 1)
    o_ref    : (1, 1, TH*L, 1)       row-flattened output tile (junk cols >= W)
    """
    C1 = w1_ref.shape[2]
    PL = P * L            # rows of the conv1 intermediate (incl. 1-px halo)
    OL = TH * L           # rows of the conv2 output tile

    # ---- conv1: 9 shifted row-slices -> accumulating MXU matmuls -----------
    acc1 = jnp.zeros((PL, C1), jnp.float32)
    for dh in range(3):
        for dw in range(3):
            off = dh * L + dw
            slab = xw_ref[0, 0, pl.ds(off, PL), :].astype(compute_dtype)
            tap = w1_ref[3 * dh + dw].astype(compute_dtype)
            acc1 = acc1 + jnp.dot(slab, tap, preferred_element_type=jnp.float32)

    z = acc1 + b1_ref[...].astype(jnp.float32)
    inter = jnp.where(z > 0, z, leaky_slope * z)        # fused LeakyReLU(0.1)
    inter = inter * mask_ref[0]                         # conv2 zero-padding halo

    # ---- conv2 (C1 -> 1): 9 shifted slices of the VMEM-resident intermediate
    acc2 = jnp.zeros((OL, 1), jnp.float32)
    for dh in range(3):
        for dw in range(3):
            off = dh * L + dw
            slab = inter[off:off + OL, :].astype(compute_dtype)
            tap = w2_ref[3 * dh + dw].astype(compute_dtype)
            acc2 = acc2 + jnp.dot(slab, tap, preferred_element_type=jnp.float32)

    o_ref[0, 0] = (acc2 + b2_ref[0, 0]).astype(o_ref.dtype)


def _pick_tile_h(H):
    for th in (64, 32, 16, 8):
        if H % th == 0:
            return th
    return H


def predict_disparity(x_nchw, w1, b1, w2, b2, *, tile_h=None,
                      compute_dtype=jnp.float32, leaky_slope=0.1):
    """PredictDisparity forward.

    x_nchw: (N, Ci, H, W)   w1: (64, Ci, 3, 3)  b1: (64,)
    w2: (1, 64, 3, 3)       b2: (1,)
    returns (N, 1, H, W)
    """
    N, Ci, H, W = x_nchw.shape
    C1 = w1.shape[0]
    assert w1.shape == (C1, Ci, 3, 3) and w2.shape == (1, C1, 3, 3)

    TH = _pick_tile_h(H) if tile_h is None else tile_h
    assert H % TH == 0, "tile_h must divide H"
    nT = H // TH
    L = W + 4                 # padded row length (left 2, right 2)
    R = TH + 6                # window rows: 2 top halo + TH + 2 bottom halo + 2 slack
    P = TH + 3                # conv1-intermediate rows computed (TH + 2 halo + 1 slack)

    # NHWC, spatially padded so every tap / slack row reads in-bounds zeros.
    x = jnp.transpose(x_nchw, (0, 2, 3, 1))                       # (N, H, W, Ci)
    xp = jnp.pad(x, ((0, 0), (2, 4), (2, 2), (0, 0)))             # (N, H+6, L, Ci)

    # Per-tile row windows, flattened row-major so every 3x3 tap becomes a
    # contiguous row-slice in the kernel (no in-kernel reshape needed).
    xw = jnp.stack([xp[:, t * TH:t * TH + R].reshape(N, R * L, Ci)
                    for t in range(nT)], axis=1)                  # (N, nT, R*L, Ci)

    # Mask re-creating conv2's zero padding on the conv1 output:
    # intermediate local (p, q) maps to global (t*TH - 1 + p, q - 1).
    p_idx = np.arange(P)[:, None]
    q_idx = np.arange(L)[None, :]
    mask_np = np.stack(
        [(((t * TH - 1 + p_idx) >= 0) & ((t * TH - 1 + p_idx) < H)
          & (q_idx >= 1) & (q_idx <= W)).astype(np.float32).reshape(P * L, 1)
         for t in range(nT)], axis=0)                             # (nT, P*L, 1)
    mask = jnp.asarray(mask_np)

    # PyTorch OIHW -> per-tap (Cin, Cout) matrices, tap index k = 3*dh + dw.
    w1k = jnp.transpose(w1, (2, 3, 1, 0)).reshape(9, Ci, C1)      # (9, Ci, 64)
    w2k = jnp.transpose(w2, (2, 3, 1, 0)).reshape(9, C1, 1)       # (9, 64, 1)
    b1r = b1.reshape(1, C1)
    b2r = b2.reshape(1, 1)

    kern = functools.partial(_pd_kernel, L=L, P=P, TH=TH,
                             leaky_slope=leaky_slope, compute_dtype=compute_dtype)

    out = pl.pallas_call(
        kern,
        out_shape=jax.ShapeDtypeStruct((N, nT, TH * L, 1), x_nchw.dtype),
        grid=(N, nT),
        in_specs=[
            pl.BlockSpec((1, 1, R * L, Ci), lambda n, t: (n, t, 0, 0)),
            pl.BlockSpec((1, P * L, 1), lambda n, t: (t, 0, 0)),
            pl.BlockSpec((9, Ci, C1), lambda n, t: (0, 0, 0)),    # resident
            pl.BlockSpec((9, C1, 1), lambda n, t: (0, 0, 0)),     # resident
            pl.BlockSpec((1, C1), lambda n, t: (0, 0)),           # resident
            pl.BlockSpec((1, 1), lambda n, t: (0, 0)),            # resident
        ],
        out_specs=pl.BlockSpec((1, 1, TH * L, 1), lambda n, t: (n, t, 0, 0)),
        compiler_params=pltpu.CompilerParams(
            dimension_semantics=("parallel", "parallel"),
            vmem_limit_bytes=48 * 1024 * 1024),
    )(xw, mask, w1k, w2k, b1r, b2r)

    # Drop the L-W junk columns and un-flatten (cheap: output has 1 channel).
    y = out.reshape(N, nT, TH, L)[:, :, :, :W].reshape(N, H, W)
    return y[:, None, :, :]                                       # (N, 1, H, W) NCHW


def _ref_predict_disparity(x, w1, b1, w2, b2, leaky_slope=0.1):
    def conv3x3(inp, w, b):
        y = lax.conv_general_dilated(
            inp, w, window_strides=(1, 1), padding=[(1, 1), (1, 1)],
            dimension_numbers=("NCHW", "OIHW", "NCHW"))
        return y + b.reshape(1, -1, 1, 1)
    h = conv3x3(x, w1, b1)
    h = jnp.where(h > 0, h, leaky_slope * h)
    return conv3x3(h, w2, b2)


if __name__ == "__main__":
    N, Ci, H, W, C1 = 2, 4, 16, 16, 64

    key = jax.random.PRNGKey(0)
    kx, kw1, kb1, kw2, kb2 = jax.random.split(key, 5)

    x = jax.random.normal(kx, (N, Ci, H, W), dtype=jnp.float32)
    bnd1 = 1.0 / np.sqrt(Ci * 9)
    w1 = jax.random.uniform(kw1, (C1, Ci, 3, 3), jnp.float32, -bnd1, bnd1)
    b1 = jax.random.uniform(kb1, (C1,), jnp.float32, -bnd1, bnd1)
    bnd2 = 1.0 / np.sqrt(C1 * 9)
    w2 = jax.random.uniform(kw2, (1, C1, 3, 3), jnp.float32, -bnd2, bnd2)
    b2 = jax.random.uniform(kb2, (1,), jnp.float32, -bnd2, bnd2)

    # tile_h=8 -> two row tiles per image: exercises the halo/mask path.
    fwd = jax.jit(functools.partial(predict_disparity, tile_h=8))
    y = jax.block_until_ready(fwd(x, w1, b1, w2, b2))

    y_ref = _ref_predict_disparity(x, w1, b1, w2, b2)
    assert y.shape == (N, 1, H, W), y.shape
    np.testing.assert_allclose(np.asarray(y), np.asarray(y_ref),
                               rtol=2e-3, atol=2e-3)

    print("KERNEL_OK")
</pallas_src>

<mosaic_0001>
module attributes {stable_mosaic.version = 11 : i64} {
  func.func @_pd_kernel(%arg0: i32, %arg1: i32, %arg2: memref<1x1x280x4xf32, #tpu.memory_space<vmem>>, %arg3: memref<1x220x1xf32, #tpu.memory_space<vmem>>, %arg4: memref<9x4x64xf32, #tpu.memory_space<vmem>>, %arg5: memref<9x64x1xf32, #tpu.memory_space<vmem>>, %arg6: memref<1x64xf32, #tpu.memory_space<vmem>>, %arg7: memref<1x1xf32, #tpu.memory_space<vmem>>, %arg8: memref<1x1x160x1xf32, #tpu.memory_space<vmem>>) attributes {dimension_semantics = [#tpu.dimension_semantics<parallel>, #tpu.dimension_semantics<parallel>], iteration_bounds = array<i64: 2, 2>, scalar_prefetch = 0 : i64, scratch_operands = 0 : i64, tpu.core_type = #tpu.core_type<tc>, window_params = [{transform_indices = @transform_0, window_bounds = array<i64: 1, 1, 280, 4>}, {transform_indices = @transform_1, window_bounds = array<i64: 1, 220, 1>}, {pipeline_mode = #tpu.pipeline_mode<synchronous>, transform_indices = @transform_2, window_bounds = array<i64: 9, 4, 64>}, {pipeline_mode = #tpu.pipeline_mode<synchronous>, transform_indices = @transform_3, window_bounds = array<i64: 9, 64, 1>}, {pipeline_mode = #tpu.pipeline_mode<synchronous>, transform_indices = @transform_4, window_bounds = array<i64: 1, 64>}, {pipeline_mode = #tpu.pipeline_mode<synchronous>, transform_indices = @transform_5, window_bounds = array<i64: 1, 1>}, {transform_indices = @transform_6, window_bounds = array<i64: 1, 1, 160, 1>}]} {
    %cst = arith.constant 0.000000e+00 : f32
    %0 = vector.broadcast %cst : f32 to vector<220x64xf32>
    %c0 = arith.constant 0 : index
    %c0_0 = arith.constant 0 : index
    %c0_1 = arith.constant 0 : index
    %c0_2 = arith.constant 0 : index
    %1 = vector.load %arg2[%c0, %c0_0, %c0_1, %c0_2] : memref<1x1x280x4xf32, #tpu.memory_space<vmem>>, vector<1x1x220x4xf32>
    %2 = vector.shape_cast %1 : vector<1x1x220x4xf32> to vector<220x4xf32>
    %c0_3 = arith.constant 0 : index
    %c0_4 = arith.constant 0 : index
    %c0_5 = arith.constant 0 : index
    %3 = vector.load %arg4[%c0_3, %c0_4, %c0_5] : memref<9x4x64xf32, #tpu.memory_space<vmem>>, vector<1x4x64xf32>
    %4 = vector.shape_cast %3 : vector<1x4x64xf32> to vector<4x64xf32>
    %cst_6 = arith.constant dense<0.000000e+00> : vector<220x64xf32>
    %5 = tpu.matmul %2, %4, %cst_6 {dimension_numbers = #tpu.dot_dimension_numbers<[1], [0], [0], [1], [0, 0, 1, 1], [], []>} : vector<220x4xf32>, vector<4x64xf32>, vector<220x64xf32> -> vector<220x64xf32>
    %6 = arith.addf %0, %5 : vector<220x64xf32>
    %c0_7 = arith.constant 0 : index
    %c0_8 = arith.constant 0 : index
    %c1 = arith.constant 1 : index
    %c0_9 = arith.constant 0 : index
    %7 = vector.load %arg2[%c0_7, %c0_8, %c1, %c0_9] : memref<1x1x280x4xf32, #tpu.memory_space<vmem>>, vector<1x1x220x4xf32>
    %8 = vector.shape_cast %7 : vector<1x1x220x4xf32> to vector<220x4xf32>
    %c1_10 = arith.constant 1 : index
    %c0_11 = arith.constant 0 : index
    %c0_12 = arith.constant 0 : index
    %9 = vector.load %arg4[%c1_10, %c0_11, %c0_12] : memref<9x4x64xf32, #tpu.memory_space<vmem>>, vector<1x4x64xf32>
    %10 = vector.shape_cast %9 : vector<1x4x64xf32> to vector<4x64xf32>
    %cst_13 = arith.constant dense<0.000000e+00> : vector<220x64xf32>
    %11 = tpu.matmul %8, %10, %cst_13 {dimension_numbers = #tpu.dot_dimension_numbers<[1], [0], [0], [1], [0, 0, 1, 1], [], []>} : vector<220x4xf32>, vector<4x64xf32>, vector<220x64xf32> -> vector<220x64xf32>
    %12 = arith.addf %6, %11 : vector<220x64xf32>
    %c0_14 = arith.constant 0 : index
    %c0_15 = arith.constant 0 : index
    %c2 = arith.constant 2 : index
    %c0_16 = arith.constant 0 : index
    %13 = vector.load %arg2[%c0_14, %c0_15, %c2, %c0_16] : memref<1x1x280x4xf32, #tpu.memory_space<vmem>>, vector<1x1x220x4xf32>
    %14 = vector.shape_cast %13 : vector<1x1x220x4xf32> to vector<220x4xf32>
    %c2_17 = arith.constant 2 : index
    %c0_18 = arith.constant 0 : index
    %c0_19 = arith.constant 0 : index
    %15 = vector.load %arg4[%c2_17, %c0_18, %c0_19] : memref<9x4x64xf32, #tpu.memory_space<vmem>>, vector<1x4x64xf32>
    %16 = vector.shape_cast %15 : vector<1x4x64xf32> to vector<4x64xf32>
    %cst_20 = arith.constant dense<0.000000e+00> : vector<220x64xf32>
    %17 = tpu.matmul %14, %16, %cst_20 {dimension_numbers = #tpu.dot_dimension_numbers<[1], [0], [0], [1], [0, 0, 1, 1], [], []>} : vector<220x4xf32>, vector<4x64xf32>, vector<220x64xf32> -> vector<220x64xf32>
    %18 = arith.addf %12, %17 : vector<220x64xf32>
    %c0_21 = arith.constant 0 : index
    %c0_22 = arith.constant 0 : index
    %c20 = arith.constant 20 : index
    %c0_23 = arith.constant 0 : index
    %19 = vector.load %arg2[%c0_21, %c0_22, %c20, %c0_23] : memref<1x1x280x4xf32, #tpu.memory_space<vmem>>, vector<1x1x220x4xf32>
    %20 = vector.shape_cast %19 : vector<1x1x220x4xf32> to vector<220x4xf32>
    %c3 = arith.constant 3 : index
    %c0_24 = arith.constant 0 : index
    %c0_25 = arith.constant 0 : index
    %21 = vector.load %arg4[%c3, %c0_24, %c0_25] : memref<9x4x64xf32, #tpu.memory_space<vmem>>, vector<1x4x64xf32>
    %22 = vector.shape_cast %21 : vector<1x4x64xf32> to vector<4x64xf32>
    %cst_26 = arith.constant dense<0.000000e+00> : vector<220x64xf32>
    %23 = tpu.matmul %20, %22, %cst_26 {dimension_numbers = #tpu.dot_dimension_numbers<[1], [0], [0], [1], [0, 0, 1, 1], [], []>} : vector<220x4xf32>, vector<4x64xf32>, vector<220x64xf32> -> vector<220x64xf32>
    %24 = arith.addf %18, %23 : vector<220x64xf32>
    %c0_27 = arith.constant 0 : index
    %c0_28 = arith.constant 0 : index
    %c21 = arith.constant 21 : index
    %c0_29 = arith.constant 0 : index
    %25 = vector.load %arg2[%c0_27, %c0_28, %c21, %c0_29] : memref<1x1x280x4xf32, #tpu.memory_space<vmem>>, vector<1x1x220x4xf32>
    %26 = vector.shape_cast %25 : vector<1x1x220x4xf32> to vector<220x4xf32>
    %c4 = arith.constant 4 : index
    %c0_30 = arith.constant 0 : index
    %c0_31 = arith.constant 0 : index
    %27 = vector.load %arg4[%c4, %c0_30, %c0_31] : memref<9x4x64xf32, #tpu.memory_space<vmem>>, vector<1x4x64xf32>
    %28 = vector.shape_cast %27 : vector<1x4x64xf32> to vector<4x64xf32>
    %cst_32 = arith.constant dense<0.000000e+00> : vector<220x64xf32>
    %29 = tpu.matmul %26, %28, %cst_32 {dimension_numbers = #tpu.dot_dimension_numbers<[1], [0], [0], [1], [0, 0, 1, 1], [], []>} : vector<220x4xf32>, vector<4x64xf32>, vector<220x64xf32> -> vector<220x64xf32>
    %30 = arith.addf %24, %29 : vector<220x64xf32>
    %c0_33 = arith.constant 0 : index
    %c0_34 = arith.constant 0 : index
    %c22 = arith.constant 22 : index
    %c0_35 = arith.constant 0 : index
    %31 = vector.load %arg2[%c0_33, %c0_34, %c22, %c0_35] : memref<1x1x280x4xf32, #tpu.memory_space<vmem>>, vector<1x1x220x4xf32>
    %32 = vector.shape_cast %31 : vector<1x1x220x4xf32> to vector<220x4xf32>
    %c5 = arith.constant 5 : index
    %c0_36 = arith.constant 0 : index
    %c0_37 = arith.constant 0 : index
    %33 = vector.load %arg4[%c5, %c0_36, %c0_37] : memref<9x4x64xf32, #tpu.memory_space<vmem>>, vector<1x4x64xf32>
    %34 = vector.shape_cast %33 : vector<1x4x64xf32> to vector<4x64xf32>
    %cst_38 = arith.constant dense<0.000000e+00> : vector<220x64xf32>
    %35 = tpu.matmul %32, %34, %cst_38 {dimension_numbers = #tpu.dot_dimension_numbers<[1], [0], [0], [1], [0, 0, 1, 1], [], []>} : vector<220x4xf32>, vector<4x64xf32>, vector<220x64xf32> -> vector<220x64xf32>
    %36 = arith.addf %30, %35 : vector<220x64xf32>
    %c0_39 = arith.constant 0 : index
    %c0_40 = arith.constant 0 : index
    %c40 = arith.constant 40 : index
    %c0_41 = arith.constant 0 : index
    %37 = vector.load %arg2[%c0_39, %c0_40, %c40, %c0_41] : memref<1x1x280x4xf32, #tpu.memory_space<vmem>>, vector<1x1x220x4xf32>
    %38 = vector.shape_cast %37 : vector<1x1x220x4xf32> to vector<220x4xf32>
    %c6 = arith.constant 6 : index
    %c0_42 = arith.constant 0 : index
    %c0_43 = arith.constant 0 : index
    %39 = vector.load %arg4[%c6, %c0_42, %c0_43] : memref<9x4x64xf32, #tpu.memory_space<vmem>>, vector<1x4x64xf32>
    %40 = vector.shape_cast %39 : vector<1x4x64xf32> to vector<4x64xf32>
    %cst_44 = arith.constant dense<0.000000e+00> : vector<220x64xf32>
    %41 = tpu.matmul %38, %40, %cst_44 {dimension_numbers = #tpu.dot_dimension_numbers<[1], [0], [0], [1], [0, 0, 1, 1], [], []>} : vector<220x4xf32>, vector<4x64xf32>, vector<220x64xf32> -> vector<220x64xf32>
    %42 = arith.addf %36, %41 : vector<220x64xf32>
    %c0_45 = arith.constant 0 : index
    %c0_46 = arith.constant 0 : index
    %c41 = arith.constant 41 : index
    %c0_47 = arith.constant 0 : index
    %43 = vector.load %arg2[%c0_45, %c0_46, %c41, %c0_47] : memref<1x1x280x4xf32, #tpu.memory_space<vmem>>, vector<1x1x220x4xf32>
    %44 = vector.shape_cast %43 : vector<1x1x220x4xf32> to vector<220x4xf32>
    %c7 = arith.constant 7 : index
    %c0_48 = arith.constant 0 : index
    %c0_49 = arith.constant 0 : index
    %45 = vector.load %arg4[%c7, %c0_48, %c0_49] : memref<9x4x64xf32, #tpu.memory_space<vmem>>, vector<1x4x64xf32>
    %46 = vector.shape_cast %45 : vector<1x4x64xf32> to vector<4x64xf32>
    %cst_50 = arith.constant dense<0.000000e+00> : vector<220x64xf32>
    %47 = tpu.matmul %44, %46, %cst_50 {dimension_numbers = #tpu.dot_dimension_numbers<[1], [0], [0], [1], [0, 0, 1, 1], [], []>} : vector<220x4xf32>, vector<4x64xf32>, vector<220x64xf32> -> vector<220x64xf32>
    %48 = arith.addf %42, %47 : vector<220x64xf32>
    %c0_51 = arith.constant 0 : index
    %c0_52 = arith.constant 0 : index
    %c42 = arith.constant 42 : index
    %c0_53 = arith.constant 0 : index
    %49 = vector.load %arg2[%c0_51, %c0_52, %c42, %c0_53] : memref<1x1x280x4xf32, #tpu.memory_space<vmem>>, vector<1x1x220x4xf32>
    %50 = vector.shape_cast %49 : vector<1x1x220x4xf32> to vector<220x4xf32>
    %c8 = arith.constant 8 : index
    %c0_54 = arith.constant 0 : index
    %c0_55 = arith.constant 0 : index
    %51 = vector.load %arg4[%c8, %c0_54, %c0_55] : memref<9x4x64xf32, #tpu.memory_space<vmem>>, vector<1x4x64xf32>
    %52 = vector.shape_cast %51 : vector<1x4x64xf32> to vector<4x64xf32>
    %cst_56 = arith.constant dense<0.000000e+00> : vector<220x64xf32>
    %53 = tpu.matmul %50, %52, %cst_56 {dimension_numbers = #tpu.dot_dimension_numbers<[1], [0], [0], [1], [0, 0, 1, 1], [], []>} : vector<220x4xf32>, vector<4x64xf32>, vector<220x64xf32> -> vector<220x64xf32>
    %54 = arith.addf %48, %53 : vector<220x64xf32>
    %c0_57 = arith.constant 0 : index
    %c0_58 = arith.constant 0 : index
    %55 = vector.load %arg6[%c0_57, %c0_58] : memref<1x64xf32, #tpu.memory_space<vmem>>, vector<1x64xf32>
    %56 = vector.broadcast %55 : vector<1x64xf32> to vector<220x64xf32>
    %57 = arith.addf %54, %56 : vector<220x64xf32>
    %cst_59 = arith.constant 0.000000e+00 : f32
    %58 = vector.broadcast %cst_59 : f32 to vector<220x64xf32>
    %59 = arith.cmpf ogt, %57, %58 : vector<220x64xf32>
    %cst_60 = arith.constant 1.000000e-01 : f32
    %60 = vector.broadcast %cst_60 : f32 to vector<220x64xf32>
    %61 = arith.mulf %60, %57 : vector<220x64xf32>
    %62 = arith.select %59, %57, %61 : vector<220x64xi1>, vector<220x64xf32>
    %c0_61 = arith.constant 0 : index
    %c0_62 = arith.constant 0 : index
    %c0_63 = arith.constant 0 : index
    %63 = vector.load %arg3[%c0_61, %c0_62, %c0_63] : memref<1x220x1xf32, #tpu.memory_space<vmem>>, vector<1x220x1xf32>
    %64 = vector.shape_cast %63 : vector<1x220x1xf32> to vector<220x1xf32>
    %65 = vector.broadcast %64 : vector<220x1xf32> to vector<220x64xf32>
    %66 = arith.mulf %62, %65 : vector<220x64xf32>
    %cst_64 = arith.constant 0.000000e+00 : f32
    %67 = vector.broadcast %cst_64 : f32 to vector<160x1xf32>
    %68 = vector.extract_strided_slice %66 {offsets = [0, 0], sizes = [160, 64], strides = [1, 1]} : vector<220x64xf32> to vector<160x64xf32>
    %c0_65 = arith.constant 0 : index
    %c0_66 = arith.constant 0 : index
    %c0_67 = arith.constant 0 : index
    %69 = vector.load %arg5[%c0_65, %c0_66, %c0_67] : memref<9x64x1xf32, #tpu.memory_space<vmem>>, vector<1x64x1xf32>
    %70 = vector.shape_cast %69 : vector<1x64x1xf32> to vector<64x1xf32>
    %cst_68 = arith.constant dense<0.000000e+00> : vector<160x1xf32>
    %71 = tpu.matmul %68, %70, %cst_68 {dimension_numbers = #tpu.dot_dimension_numbers<[1], [0], [0], [1], [0, 0, 1, 1], [], []>} : vector<160x64xf32>, vector<64x1xf32>, vector<160x1xf32> -> vector<160x1xf32>
    %72 = arith.addf %67, %71 : vector<160x1xf32>
    %73 = vector.extract_strided_slice %66 {offsets = [1, 0], sizes = [160, 64], strides = [1, 1]} : vector<220x64xf32> to vector<160x64xf32>
    %c1_69 = arith.constant 1 : index
    %c0_70 = arith.constant 0 : index
    %c0_71 = arith.constant 0 : index
    %74 = vector.load %arg5[%c1_69, %c0_70, %c0_71] : memref<9x64x1xf32, #tpu.memory_space<vmem>>, vector<1x64x1xf32>
    %75 = vector.shape_cast %74 : vector<1x64x1xf32> to vector<64x1xf32>
    %cst_72 = arith.constant dense<0.000000e+00> : vector<160x1xf32>
    %76 = tpu.matmul %73, %75, %cst_72 {dimension_numbers = #tpu.dot_dimension_numbers<[1], [0], [0], [1], [0, 0, 1, 1], [], []>} : vector<160x64xf32>, vector<64x1xf32>, vector<160x1xf32> -> vector<160x1xf32>
    %77 = arith.addf %72, %76 : vector<160x1xf32>
    %78 = vector.extract_strided_slice %66 {offsets = [2, 0], sizes = [160, 64], strides = [1, 1]} : vector<220x64xf32> to vector<160x64xf32>
    %c2_73 = arith.constant 2 : index
    %c0_74 = arith.constant 0 : index
    %c0_75 = arith.constant 0 : index
    %79 = vector.load %arg5[%c2_73, %c0_74, %c0_75] : memref<9x64x1xf32, #tpu.memory_space<vmem>>, vector<1x64x1xf32>
    %80 = vector.shape_cast %79 : vector<1x64x1xf32> to vector<64x1xf32>
    %cst_76 = arith.constant dense<0.000000e+00> : vector<160x1xf32>
    %81 = tpu.matmul %78, %80, %cst_76 {dimension_numbers = #tpu.dot_dimension_numbers<[1], [0], [0], [1], [0, 0, 1, 1], [], []>} : vector<160x64xf32>, vector<64x1xf32>, vector<160x1xf32> -> vector<160x1xf32>
    %82 = arith.addf %77, %81 : vector<160x1xf32>
    %83 = vector.extract_strided_slice %66 {offsets = [20, 0], sizes = [160, 64], strides = [1, 1]} : vector<220x64xf32> to vector<160x64xf32>
    %c3_77 = arith.constant 3 : index
    %c0_78 = arith.constant 0 : index
    %c0_79 = arith.constant 0 : index
    %84 = vector.load %arg5[%c3_77, %c0_78, %c0_79] : memref<9x64x1xf32, #tpu.memory_space<vmem>>, vector<1x64x1xf32>
    %85 = vector.shape_cast %84 : vector<1x64x1xf32> to vector<64x1xf32>
    %cst_80 = arith.constant dense<0.000000e+00> : vector<160x1xf32>
    %86 = tpu.matmul %83, %85, %cst_80 {dimension_numbers = #tpu.dot_dimension_numbers<[1], [0], [0], [1], [0, 0, 1, 1], [], []>} : vector<160x64xf32>, vector<64x1xf32>, vector<160x1xf32> -> vector<160x1xf32>
    %87 = arith.addf %82, %86 : vector<160x1xf32>
    %88 = vector.extract_strided_slice %66 {offsets = [21, 0], sizes = [160, 64], strides = [1, 1]} : vector<220x64xf32> to vector<160x64xf32>
    %c4_81 = arith.constant 4 : index
    %c0_82 = arith.constant 0 : index
    %c0_83 = arith.constant 0 : index
    %89 = vector.load %arg5[%c4_81, %c0_82, %c0_83] : memref<9x64x1xf32, #tpu.memory_space<vmem>>, vector<1x64x1xf32>
    %90 = vector.shape_cast %89 : vector<1x64x1xf32> to vector<64x1xf32>
    %cst_84 = arith.constant dense<0.000000e+00> : vector<160x1xf32>
    %91 = tpu.matmul %88, %90, %cst_84 {dimension_numbers = #tpu.dot_dimension_numbers<[1], [0], [0], [1], [0, 0, 1, 1], [], []>} : vector<160x64xf32>, vector<64x1xf32>, vector<160x1xf32> -> vector<160x1xf32>
    %92 = arith.addf %87, %91 : vector<160x1xf32>
    %93 = vector.extract_strided_slice %66 {offsets = [22, 0], sizes = [160, 64], strides = [1, 1]} : vector<220x64xf32> to vector<160x64xf32>
    %c5_85 = arith.constant 5 : index
    %c0_86 = arith.constant 0 : index
    %c0_87 = arith.constant 0 : index
    %94 = vector.load %arg5[%c5_85, %c0_86, %c0_87] : memref<9x64x1xf32, #tpu.memory_space<vmem>>, vector<1x64x1xf32>
    %95 = vector.shape_cast %94 : vector<1x64x1xf32> to vector<64x1xf32>
    %cst_88 = arith.constant dense<0.000000e+00> : vector<160x1xf32>
    %96 = tpu.matmul %93, %95, %cst_88 {dimension_numbers = #tpu.dot_dimension_numbers<[1], [0], [0], [1], [0, 0, 1, 1], [], []>} : vector<160x64xf32>, vector<64x1xf32>, vector<160x1xf32> -> vector<160x1xf32>
    %97 = arith.addf %92, %96 : vector<160x1xf32>
    %98 = vector.extract_strided_slice %66 {offsets = [40, 0], sizes = [160, 64], strides = [1, 1]} : vector<220x64xf32> to vector<160x64xf32>
    %c6_89 = arith.constant 6 : index
    %c0_90 = arith.constant 0 : index
    %c0_91 = arith.constant 0 : index
    %99 = vector.load %arg5[%c6_89, %c0_90, %c0_91] : memref<9x64x1xf32, #tpu.memory_space<vmem>>, vector<1x64x1xf32>
    %100 = vector.shape_cast %99 : vector<1x64x1xf32> to vector<64x1xf32>
    %cst_92 = arith.constant dense<0.000000e+00> : vector<160x1xf32>
    %101 = tpu.matmul %98, %100, %cst_92 {dimension_numbers = #tpu.dot_dimension_numbers<[1], [0], [0], [1], [0, 0, 1, 1], [], []>} : vector<160x64xf32>, vector<64x1xf32>, vector<160x1xf32> -> vector<160x1xf32>
    %102 = arith.addf %97, %101 : vector<160x1xf32>
    %103 = vector.extract_strided_slice %66 {offsets = [41, 0], sizes = [160, 64], strides = [1, 1]} : vector<220x64xf32> to vector<160x64xf32>
    %c7_93 = arith.constant 7 : index
    %c0_94 = arith.constant 0 : index
    %c0_95 = arith.constant 0 : index
    %104 = vector.load %arg5[%c7_93, %c0_94, %c0_95] : memref<9x64x1xf32, #tpu.memory_space<vmem>>, vector<1x64x1xf32>
    %105 = vector.shape_cast %104 : vector<1x64x1xf32> to vector<64x1xf32>
    %cst_96 = arith.constant dense<0.000000e+00> : vector<160x1xf32>
    %106 = tpu.matmul %103, %105, %cst_96 {dimension_numbers = #tpu.dot_dimension_numbers<[1], [0], [0], [1], [0, 0, 1, 1], [], []>} : vector<160x64xf32>, vector<64x1xf32>, vector<160x1xf32> -> vector<160x1xf32>
    %107 = arith.addf %102, %106 : vector<160x1xf32>
    %108 = vector.extract_strided_slice %66 {offsets = [42, 0], sizes = [160, 64], strides = [1, 1]} : vector<220x64xf32> to vector<160x64xf32>
    %c8_97 = arith.constant 8 : index
    %c0_98 = arith.constant 0 : index
    %c0_99 = arith.constant 0 : index
    %109 = vector.load %arg5[%c8_97, %c0_98, %c0_99] : memref<9x64x1xf32, #tpu.memory_space<vmem>>, vector<1x64x1xf32>
    %110 = vector.shape_cast %109 : vector<1x64x1xf32> to vector<64x1xf32>
    %cst_100 = arith.constant dense<0.000000e+00> : vector<160x1xf32>
    %111 = tpu.matmul %108, %110, %cst_100 {dimension_numbers = #tpu.dot_dimension_numbers<[1], [0], [0], [1], [0, 0, 1, 1], [], []>} : vector<160x64xf32>, vector<64x1xf32>, vector<160x1xf32> -> vector<160x1xf32>
    %112 = arith.addf %107, %111 : vector<160x1xf32>
    %c0_101 = arith.constant 0 : index
    %c0_102 = arith.constant 0 : index
    %113 = vector.load %arg7[%c0_101, %c0_102] : memref<1x1xf32, #tpu.memory_space<vmem>>, vector<1x1xf32>
    %114 = vector.extract %113[0, 0] : f32 from vector<1x1xf32>
    %115 = vector.broadcast %114 : f32 to vector<160x1xf32>
    %116 = arith.addf %112, %115 : vector<160x1xf32>
    %c0_103 = arith.constant 0 : index
    %c0_104 = arith.constant 0 : index
    %c0_105 = arith.constant 0 : index
    %c0_106 = arith.constant 0 : index
    %117 = vector.load %arg8[%c0_103, %c0_104, %c0_105, %c0_106] : memref<1x1x160x1xf32, #tpu.memory_space<vmem>>, vector<1x1x160x1xf32>
    %118 = vector.shape_cast %117 : vector<1x1x160x1xf32> to vector<160x1xf32>
    %119 = vector.shape_cast %116 : vector<160x1xf32> to vector<1x1x160x1xf32>
    tpu.vector_store %arg8[%c0_103, %c0_104, %c0_105, %c0_106], %119 {strides = array<i32>} : memref<1x1x160x1xf32, #tpu.memory_space<vmem>>, vector<1x1x160x1xf32>,
    return
  }
  func.func @transform_0(%arg0: i32, %arg1: i32) -> (i32, i32, i32, i32) {
    %c0_i32 = arith.constant 0 : i32
    %c0_i32_0 = arith.constant 0 : i32
    %c0_i32_1 = arith.constant 0 : i32
    return %arg0, %arg1, %c0_i32, %c0_i32_0 : i32, i32, i32, i32
  }
  func.func @transform_1(%arg0: i32, %arg1: i32) -> (i32, i32, i32) {
    %c0_i32 = arith.constant 0 : i32
    %c0_i32_0 = arith.constant 0 : i32
    %c0_i32_1 = arith.constant 0 : i32
    return %arg1, %c0_i32, %c0_i32_0 : i32, i32, i32
  }
  func.func @transform_2(%arg0: i32, %arg1: i32) -> (i32, i32, i32) {
    %c0_i32 = arith.constant 0 : i32
    %c0_i32_0 = arith.constant 0 : i32
    %c0_i32_1 = arith.constant 0 : i32
    %c0_i32_2 = arith.constant 0 : i32
    return %c0_i32, %c0_i32_0, %c0_i32_1 : i32, i32, i32
  }
  func.func @transform_3(%arg0: i32, %arg1: i32) -> (i32, i32, i32) {
    %c0_i32 = arith.constant 0 : i32
    %c0_i32_0 = arith.constant 0 : i32
    %c0_i32_1 = arith.constant 0 : i32
    %c0_i32_2 = arith.constant 0 : i32
    return %c0_i32, %c0_i32_0, %c0_i32_1 : i32, i32, i32
  }
  func.func @transform_4(%arg0: i32, %arg1: i32) -> (i32, i32) {
    %c0_i32 = arith.constant 0 : i32
    %c0_i32_0 = arith.constant 0 : i32
    %c0_i32_1 = arith.constant 0 : i32
    return %c0_i32, %c0_i32_0 : i32, i32
  }
  func.func @transform_5(%arg0: i32, %arg1: i32) -> (i32, i32) {
    %c0_i32 = arith.constant 0 : i32
    %c0_i32_0 = arith.constant 0 : i32
    %c0_i32_1 = arith.constant 0 : i32
    return %c0_i32, %c0_i32_0 : i32, i32
  }
  func.func @transform_6(%arg0: i32, %arg1: i32) -> (i32, i32, i32, i32) {
    %c0_i32 = arith.constant 0 : i32
    %c0_i32_0 = arith.constant 0 : i32
    %c0_i32_1 = arith.constant 0 : i32
    return %arg0, %arg1, %c0_i32, %c0_i32_0 : i32, i32, i32, i32
  }
}

</mosaic_0001>

<llo_original>
// kernel: predict_disparity.1
$region0: #{predict_disparity.1}
  #allocation0 [shape = 'u32[]', space=smem, size = 0x4, offset = 0x4, fixed_abs, tag = 'smem constant byte address 0x4 - core index']
  #allocation1 [shape = 'u32[144,128]{1,0:T(1,128)}', space=vmem, size = 0x12000, scoped, tag = 'internal scratch']
  #allocation2 [shape = 'f32[1,1]{1,0:T(1,128)S(1)}', space=vmem, size = 0x200, scoped, tag = 'scoped memory for predict_disparity.1']
  %s0 = inlined_call_operand.vmem [shape: f32[2,2,280,4], index: 0, kind: input, shape index: {}]
  %s1 = inlined_call_operand.vmem [shape: f32[2,220,1], index: 1, kind: input, shape index: {}]
  %s2 = inlined_call_operand.vmem [shape: f32[9,4,64], index: 2, kind: input, shape index: {}]
  %s3 = inlined_call_operand.vmem [shape: f32[9,64,1], index: 3, kind: input, shape index: {}]
  %s4 = inlined_call_operand.vmem [shape: f32[1,64], index: 4, kind: input, shape index: {}]
  %s5 = inlined_call_operand.<no memory space> [shape: f32[1,1], index: 5, kind: input, shape index: {}]
  %s6 = inlined_call_operand.vmem [shape: f32[2,2,160,1], index: 6, kind: output, shape index: {}]
  %s7 = sld [smem:[#allocation0]]
  $region57: #{predict_disparity.1} parent=0
    _
  %s9 = ssub.s32 1, %s7
  %s10 = scalar_select 0, %s9, %s7
  %v11 = vstv %s5
  %12 = vst [vmem:[#allocation2] sm:$0x1] %v11
  loop: start=0, step=1, limit=6
  $region2: #{predict_disparity.1} parent=0 // loop_pre_header
    _
  $region3: #{predict_disparity.1} parent=0 // loop_header
    %s14 = sphi 0, %s18
    %p15 = scmp.ge.s32.totalorder %s14, 6
    %s21 = sphi 0, %s33
    %s22 = sphi 0, %s29
    %s23 = sphi 0, %s21
    %s24 = sphi 0, %s22
    %s25 = sphi 0, %s23
    %s26 = sphi 0, %s24
    %s38 = sphi 0, %s40
    %s41 = sphi 0, %s38
    %s42 = sphi 0, %s41
    %s58 = sphi 0, %s42
    %s64 = sphi 0, %s66
    %s67 = sphi 0, %s64
    %s68 = sphi 0, %s67
    %s84 = sphi 0, %s68
    %s88 = sphi 0, %s88
    %s90 = sphi 0, %s88
    %s91 = sphi 0, %s90
    %s105 = sphi 0, %s91
    %s109 = sphi 0, %s109
    %s111 = sphi 0, %s109
    %s112 = sphi 0, %s111
    %s126 = sphi 0, %s112
    %s130 = sphi 0, %s130
    %s132 = sphi 0, %s130
    %s133 = sphi 0, %s132
    %s147 = sphi 0, %s133
    %s151 = sphi 0, %s151
    %s153 = sphi 0, %s151
    %s154 = sphi 0, %s153
    %s168 = sphi 0, %s154
    %s176 = sphi 0, %s178
    %s179 = sphi 0, %s176
    %s180 = sphi 0, %s179
    %s196 = sphi 0, %s180
  $region4: #{predict_disparity.1} parent=0 // loop_header_branch
    %17 = sbr.rel (%p15) target = $region8
  $region5: #{predict_disparity.1} parent=0 // loop_body
    %s19 = ssub.s32 %s14, 1
    %s20 = ssub.s32 %s14, 2
    %s27 = sadd.s32 1, %s22
    %p28 = scmp.ge.s32.totalorder %s27, 2
    %s29 = scalar_select %p28, 0, %s27
    %s30 = sadd.s32 1, %s21
    %s31 = scalar_select %p28, %s30, %s21
    %p32 = scmp.ge.s32.totalorder %s31, 2
    %s33 = scalar_select %p32, 0, %s31
    %s34 = ssub.s32 %s21, %s33
    %s35 = ssub.s32 %s22, %s29
    %s36 = sor.u32 %s34, %s35
    %p37 = scmp.eq.s32.totalorder %s36, 0
    %s39 = sadd.s32 %s38, 1
    %s40 = scalar_select %p37, %s38, %s39
    %p43 = pneg %p37
    %p44 = scmp.eq.s32.totalorder %s14, 3
    %p45 = por %p43, %p44
    %p46 = scmp.ne.s32.totalorder %s38, %s41
    %p47 = scmp.eq.s32.totalorder %s14, 0
    %p48 = por %p46, %p47
    %p49 = scmp.ne.s32.totalorder %s38, %s41
    %p50 = scmp.eq.s32.totalorder %s19, 3
    %p51 = por %p49, %p50
    %p52 = scmp.ne.s32.totalorder %s41, %s42
    %p53 = scmp.eq.s32.totalorder %s19, 0
    %p54 = por %p52, %p53
    %p55 = scmp.ne.s32.totalorder %s41, %s42
    %p56 = scmp.eq.s32.totalorder %s20, 3
    %p57 = por %p55, %p56
    %p59 = scmp.ne.s32.totalorder %s42, %s58
    %p60 = scmp.eq.s32.totalorder %s20, 0
    %p61 = por %p59, %p60
    %s62 = ssub.s32 %s22, %s29
    %p63 = scmp.eq.s32.totalorder %s62, 0
    %s65 = sadd.s32 %s64, 1
    %s66 = scalar_select %p63, %s64, %s65
    %p69 = pneg %p63
    %p70 = scmp.eq.s32.totalorder %s14, 3
    %p71 = por %p69, %p70
    %p72 = scmp.ne.s32.totalorder %s64, %s67
    %p73 = scmp.eq.s32.totalorder %s14, 0
    %p74 = por %p72, %p73
    %p75 = scmp.ne.s32.totalorder %s64, %s67
    %p76 = scmp.eq.s32.totalorder %s19, 3
    %p77 = por %p75, %p76
    %p78 = scmp.ne.s32.totalorder %s67, %s68
    %p79 = scmp.eq.s32.totalorder %s19, 0
    %p80 = por %p78, %p79
    %p81 = scmp.ne.s32.totalorder %s67, %s68
    %p82 = scmp.eq.s32.totalorder %s20, 3
    %p83 = por %p81, %p82
    %p85 = scmp.ne.s32.totalorder %s68, %s84
    %p86 = scmp.eq.s32.totalorder %s20, 0
    %p87 = por %p85, %p86
    %s89 = sadd.s32 %s88, 1
    %p92 = scmp.eq.s32.totalorder %s14, 3
    %p93 = scmp.ne.s32.totalorder %s88, %s90
    %p94 = scmp.eq.s32.totalorder %s14, 0
    %p95 = por %p93, %p94
    %p96 = scmp.ne.s32.totalorder %s88, %s90
    %p97 = scmp.eq.s32.totalorder %s19, 3
    %p98 = por %p96, %p97
    %p99 = scmp.ne.s32.totalorder %s90, %s91
    %p100 = scmp.eq.s32.totalorder %s19, 0
    %p101 = por %p99, %p100
    %p102 = scmp.ne.s32.totalorder %s90, %s91
    %p103 = scmp.eq.s32.totalorder %s20, 3
    %p104 = por %p102, %p103
    %p106 = scmp.ne.s32.totalorder %s91, %s105
    %p107 = scmp.eq.s32.totalorder %s20, 0
    %p108 = por %p106, %p107
    %s110 = sadd.s32 %s109, 1
    %p113 = scmp.eq.s32.totalorder %s14, 3
    %p114 = scmp.ne.s32.totalorder %s109, %s111
    %p115 = scmp.eq.s32.totalorder %s14, 0
    %p116 = por %p114, %p115
    %p117 = scmp.ne.s32.totalorder %s109, %s111
    %p118 = scmp.eq.s32.totalorder %s19, 3
    %p119 = por %p117, %p118
    %p120 = scmp.ne.s32.totalorder %s111, %s112
    %p121 = scmp.eq.s32.totalorder %s19, 0
    %p122 = por %p120, %p121
    %p123 = scmp.ne.s32.totalorder %s111, %s112
    %p124 = scmp.eq.s32.totalorder %s20, 3
    %p125 = por %p123, %p124
    %p127 = scmp.ne.s32.totalorder %s112, %s126
    %p128 = scmp.eq.s32.totalorder %s20, 0
    %p129 = por %p127, %p128
    %s131 = sadd.s32 %s130, 1
    %p134 = scmp.eq.s32.totalorder %s14, 3
    %p135 = scmp.ne.s32.totalorder %s130, %s132
    %p136 = scmp.eq.s32.totalorder %s14, 0
    %p137 = por %p135, %p136
    %p138 = scmp.ne.s32.totalorder %s130, %s132
    %p139 = scmp.eq.s32.totalorder %s19, 3
    %p140 = por %p138, %p139
    %p141 = scmp.ne.s32.totalorder %s132, %s133
    %p142 = scmp.eq.s32.totalorder %s19, 0
    %p143 = por %p141, %p142
    %p144 = scmp.ne.s32.totalorder %s132, %s133
    %p145 = scmp.eq.s32.totalorder %s20, 3
    %p146 = por %p144, %p145
    %p148 = scmp.ne.s32.totalorder %s133, %s147
    %p149 = scmp.eq.s32.totalorder %s20, 0
    %p150 = por %p148, %p149
    %s152 = sadd.s32 %s151, 1
    %p155 = scmp.eq.s32.totalorder %s14, 3
    %p156 = scmp.ne.s32.totalorder %s151, %s153
    %p157 = scmp.eq.s32.totalorder %s14, 0
    %p158 = por %p156, %p157
    %p159 = scmp.ne.s32.totalorder %s151, %s153
    %p160 = scmp.eq.s32.totalorder %s19, 3
    %p161 = por %p159, %p160
    %p162 = scmp.ne.s32.totalorder %s153, %s154
    %p163 = scmp.eq.s32.totalorder %s19, 0
    %p164 = por %p162, %p163
    %p165 = scmp.ne.s32.totalorder %s153, %s154
    %p166 = scmp.eq.s32.totalorder %s20, 3
    %p167 = por %p165, %p166
    %p169 = scmp.ne.s32.totalorder %s154, %s168
    %p170 = scmp.eq.s32.totalorder %s20, 0
    %p171 = por %p169, %p170
    %s172 = ssub.s32 %s21, %s33
    %s173 = ssub.s32 %s22, %s29
    %s174 = sor.u32 %s172, %s173
    %p175 = scmp.eq.s32.totalorder %s174, 0
    %s177 = sadd.s32 %s176, 1
    %s178 = scalar_select %p175, %s176, %s177
    %p181 = pneg %p175
    %p182 = scmp.eq.s32.totalorder %s14, 3
    %p183 = por %p181, %p182
    %p184 = scmp.ne.s32.totalorder %s176, %s179
    %p185 = scmp.eq.s32.totalorder %s14, 0
    %p186 = por %p184, %p185
    %p187 = scmp.ne.s32.totalorder %s176, %s179
    %p188 = scmp.eq.s32.totalorder %s19, 3
    %p189 = por %p187, %p188
    %p190 = scmp.ne.s32.totalorder %s179, %s180
    %p191 = scmp.eq.s32.totalorder %s19, 0
    %p192 = por %p190, %p191
    %p193 = scmp.ne.s32.totalorder %s179, %s180
    %p194 = scmp.eq.s32.totalorder %s20, 3
    %p195 = por %p193, %p194
    %p197 = scmp.ne.s32.totalorder %s180, %s196
    %p198 = scmp.eq.s32.totalorder %s20, 0
    %p199 = por %p197, %p198
    %p200 = scmp.le.s32.totalorder 1, %s14
    %p201 = scmp.lt.s32.totalorder %s14, 5
    %p202 = pnand %p200, %p201
    %p203 = pneg %p202
    // Predicated region
    $region9: #{predict_disparity.1} parent=5 // pred_check
      _
    $region10: #{predict_disparity.1} parent=5 // pred_check_branch
      %205 = sbr.rel (%p202) target = $region12
    $region11: #{predict_disparity.1} parent=5 // pred_region
      %s206 = ssub.s32 %s14, 1
      // Predicated region
      $region13: #{predict_disparity.1} parent=11 // pred_check
        %p207 = pneg %p101
      $region14: #{predict_disparity.1} parent=11 // pred_check_branch
        %209 = sbr.rel (%p207) target = $region16
      $region15: #{predict_disparity.1} parent=11 // pred_region
        _
      $region16: #{predict_disparity.1} parent=11 // pred_fallthru
        _
      // Predicated region
      $region17: #{predict_disparity.1} parent=11 // pred_check
        %p210 = pneg %p122
      $region18: #{predict_disparity.1} parent=11 // pred_check_branch
        %212 = sbr.rel (%p210) target = $region20
      $region19: #{predict_disparity.1} parent=11 // pred_region
        _
      $region20: #{predict_disparity.1} parent=11 // pred_fallthru
        _
      // Predicated region
      $region21: #{predict_disparity.1} parent=11 // pred_check
        %p213 = pneg %p143
      $region22: #{predict_disparity.1} parent=11 // pred_check_branch
        %215 = sbr.rel (%p213) target = $region24
      $region23: #{predict_disparity.1} parent=11 // pred_region
        _
      $region24: #{predict_disparity.1} parent=11 // pred_fallthru
        _
      // Predicated region
      $region25: #{predict_disparity.1} parent=11 // pred_check
        %p216 = pneg %p164
      $region26: #{predict_disparity.1} parent=11 // pred_check_branch
        %218 = sbr.rel (%p216) target = $region28
      $region27: #{predict_disparity.1} parent=11 // pred_region
        _
      $region28: #{predict_disparity.1} parent=11 // pred_fallthru
        _
    $region12: #{predict_disparity.1} parent=5 // pred_fallthru
      _
    %p219 = scmp.lt.s32.totalorder %s14, 4
    // Predicated region
    $region29: #{predict_disparity.1} parent=5 // pred_check
      %p220 = pneg %p219
    $region30: #{predict_disparity.1} parent=5 // pred_check_branch
      %222 = sbr.rel (%p220) target = $region32
    $region31: #{predict_disparity.1} parent=5 // pred_region
      // Predicated region
      $region33: #{predict_disparity.1} parent=31 // pred_check
        %p223 = pneg %p48
      $region34: #{predict_disparity.1} parent=31 // pred_check_branch
        %225 = sbr.rel (%p223) target = $region36
      $region35: #{predict_disparity.1} parent=31 // pred_region
        %p226 = scmp.lt.s32.totalorder %s21, 1
        %s227 = scalar_select %p226, %s21, 1
        %p228 = scmp.lt.s32.totalorder %s22, 1
        %s229 = scalar_select %p228, %s22, 1
        %s230 = smul.addr %s229, 35
        %s231 = smul.addr %s227, 70
        %s232 = sadd.s32 %s230, %s231
        %s233 = smul.addr %s232, 8
        %s234 = scalar_lea.vmem %s0, %s233
      $region36: #{predict_disparity.1} parent=31 // pred_fallthru
        _
      // Predicated region
      $region37: #{predict_disparity.1} parent=31 // pred_check
        %p235 = pneg %p74
      $region38: #{predict_disparity.1} parent=31 // pred_check_branch
        %237 = sbr.rel (%p235) target = $region40
      $region39: #{predict_disparity.1} parent=31 // pred_region
        %p238 = scmp.lt.s32.totalorder %s22, 1
        %s239 = scalar_select %p238, %s22, 1
        %s240 = smul.addr %s239, 28
        %s241 = smul.addr %s240, 8
        %s242 = scalar_lea.vmem %s1, %s241
      $region40: #{predict_disparity.1} parent=31 // pred_fallthru
        _
    $region32: #{predict_disparity.1} parent=5 // pred_fallthru
      _
    %p243 = scmp.le.s32.totalorder 1, %s14
    %p244 = scmp.lt.s32.totalorder %s14, 5
    %p245 = pnand %p243, %p244
    %p246 = pneg %p245
    // Predicated region
    $region41: #{predict_disparity.1} parent=5 // pred_check
      _
    $region42: #{predict_disparity.1} parent=5 // pred_check_branch
      %248 = sbr.rel (%p245) target = $region44
    $region43: #{predict_disparity.1} parent=5 // pred_region
      %s249 = ssub.s32 %s14, 1
      %p250 = scmp.lt.s32.totalorder %s23, 1
      %s251 = scalar_select %p250, %s23, 1
      %p252 = scmp.lt.s32.totalorder %s24, 1
      %s253 = scalar_select %p252, %s24, 1
      %s254 = smul.addr %s253, 35
      %s255 = smul.addr %s251, 70
      %s256 = sadd.s32 %s254, %s255
      %s257 = smul.addr %s256, 8
      %s258 = scalar_lea.vmem %s0, %s257
      %p259 = pneg %p54
      %p260 = pneg %p51
      %p261 = scmp.lt.s32.totalorder %s24, 1
      %s262 = scalar_select %p261, %s24, 1
      %s263 = smul.addr %s262, 28
      %s264 = smul.addr %s263, 8
      %s265 = scalar_lea.vmem %s1, %s264
      %p266 = pneg %p80
      %p267 = pneg %p77
      %p268 = pneg %p101
      %p269 = pneg %p98
      %p270 = pneg %p122
      %p271 = pneg %p119
      %p272 = pneg %p143
      %p273 = pneg %p140
      %p274 = pneg %p164
      %p275 = pneg %p161
      %p276 = pneg %p192
      %p277 = pneg %p189
      %p278 = scmp.lt.s32.totalorder %s23, 1
      %s279 = scalar_select %p278, %s23, 1
      %p280 = scmp.lt.s32.totalorder %s24, 1
      %s281 = scalar_select %p280, %s24, 1
      %s282 = smul.addr %s281, 20
      %s283 = smul.addr %s279, 40
      %s284 = sadd.s32 %s282, %s283
      %s285 = smul.addr %s284, 8
      %s286 = scalar_lea.vmem %s6, %s285
      %p287 = scmp.lt.s32.totalorder %s23, 1
      %s288 = scalar_select %p287, %s23, 1
      %p289 = scmp.lt.s32.totalorder %s24, 1
      %s290 = scalar_select %p289, %s24, 1
      %s291 = smul.addr %s290, 35
      %s292 = smul.addr %s288, 70
      %s293 = sadd.s32 %s291, %s292
      %s294 = smul.addr %s293, 8
      %s295 = scalar_lea.vmem %s0, %s294
      %p296 = scmp.lt.s32.totalorder %s24, 1
      %s297 = scalar_select %p296, %s24, 1
      %s298 = smul.addr %s297, 28
      %s299 = smul.addr %s298, 8
      %s300 = scalar_lea.vmem %s1, %s299
      %p301 = scmp.lt.s32.totalorder %s23, 1
      %s302 = scalar_select %p301, %s23, 1
      %p303 = scmp.lt.s32.totalorder %s24, 1
      %s304 = scalar_select %p303, %s24, 1
      %s305 = smul.addr %s304, 20
      %s306 = smul.addr %s302, 40
      %s307 = sadd.s32 %s305, %s306
      %s308 = smul.addr %s307, 8
      %s309 = scalar_lea.vmem %s6, %s308
      %v310 = vld [vmem:[%s295] sm:$0xff]
      %v311 = vld [vmem:[%s295 + $0x8] sm:$0xff]
      %v312 = vld [vmem:[%s295 + $0x10] sm:$0xff]
      %v313 = vld [vmem:[%s295 + $0x18] sm:$0xff]
      %v314 = vld [vmem:[%s295 + $0x20] sm:$0xff]
      %v315 = vld [vmem:[%s295 + $0x28] sm:$0xff]
      %v316 = vld [vmem:[%s295 + $0x30] sm:$0xff]
      %v317 = vld [vmem:[%s295 + $0x38] sm:$0xff]
      %v318 = vld [vmem:[%s295 + $0x40] sm:$0xff]
      %v319 = vld [vmem:[%s295 + $0x48] sm:$0xff]
      %v320 = vld [vmem:[%s295 + $0x50] sm:$0xff]
      %v321 = vld [vmem:[%s295 + $0x58] sm:$0xff]
      %v322 = vld [vmem:[%s295 + $0x60] sm:$0xff]
      %v323 = vld [vmem:[%s295 + $0x68] sm:$0xff]
      %v324 = vld [vmem:[%s295 + $0x70] sm:$0xff]
      %v325 = vld [vmem:[%s295 + $0x78] sm:$0xff]
      %v326 = vld [vmem:[%s295 + $0x80] sm:$0xff]
      %v327 = vld [vmem:[%s295 + $0x88] sm:$0xff]
      %v328 = vld [vmem:[%s295 + $0x90] sm:$0xff]
      %v329 = vld [vmem:[%s295 + $0x98] sm:$0xff]
      %v330 = vld [vmem:[%s295 + $0xa0] sm:$0xff]
      %v331 = vld [vmem:[%s295 + $0xa8] sm:$0xff]
      %v332 = vld [vmem:[%s295 + $0xb0] sm:$0xff]
      %v333 = vld [vmem:[%s295 + $0xb8] sm:$0xff]
      %v334 = vld [vmem:[%s295 + $0xc0] sm:$0xff]
      %v335 = vld [vmem:[%s295 + $0xc8] sm:$0xff]
      %v336 = vld [vmem:[%s295 + $0xd0] sm:$0xff]
      %v337 = vld [vmem:[%s295 + $0xd8] sm:$0xf]
      %v338 = vld [vmem:[%s2] sm:$0xf]
      %v339 = vld [vmem:[%s295 + $0x1] sm:$0xff]
      %v340 = vld [vmem:[%s295 + $0x9] sm:$0xff]
      %v341 = vld [vmem:[%s295 + $0x11] sm:$0xff]
      %v342 = vld [vmem:[%s295 + $0x19] sm:$0xff]
      %v343 = vld [vmem:[%s295 + $0x21] sm:$0xff]
      %v344 = vld [vmem:[%s295 + $0x29] sm:$0xff]
      %v345 = vld [vmem:[%s295 + $0x31] sm:$0xff]
      %v346 = vld [vmem:[%s295 + $0x39] sm:$0xff]
      %v347 = vld [vmem:[%s295 + $0x41] sm:$0xff]
      %v348 = vld [vmem:[%s295 + $0x49] sm:$0xff]
      %v349 = vld [vmem:[%s295 + $0x51] sm:$0xff]
      %v350 = vld [vmem:[%s295 + $0x59] sm:$0xff]
      %v351 = vld [vmem:[%s295 + $0x61] sm:$0xff]
      %v352 = vld [vmem:[%s295 + $0x69] sm:$0xff]
      %v353 = vld [vmem:[%s295 + $0x71] sm:$0xff]
      %v354 = vld [vmem:[%s295 + $0x79] sm:$0xff]
      %v355 = vld [vmem:[%s295 + $0x81] sm:$0xff]
      %v356 = vld [vmem:[%s295 + $0x89] sm:$0xff]
      %v357 = vld [vmem:[%s295 + $0x91] sm:$0xff]
      %v358 = vld [vmem:[%s295 + $0x99] sm:$0xff]
      %v359 = vld [vmem:[%s295 + $0xa1] sm:$0xff]
      %v360 = vld [vmem:[%s295 + $0xa9] sm:$0xff]
      %v361 = vld [vmem:[%s295 + $0xb1] sm:$0xff]
      %v362 = vld [vmem:[%s295 + $0xb9] sm:$0xff]
      %v363 = vld [vmem:[%s295 + $0xc1] sm:$0xff]
      %v364 = vld [vmem:[%s295 + $0xc9] sm:$0xff]
      %v365 = vld [vmem:[%s295 + $0xd1] sm:$0xff]
      %v366 = vld [vmem:[%s295 + $0xd9] sm:$0xf]
      %s367 = scalar_lea.vmem %s2, 4
      %v368 = vld [vmem:[%s367] sm:$0xf]
      %vm369 = vcmask 31744
      %v371 = vsel %vm369, %v339, 0
      %v374 = vsel %vm369, %v340, 0
      %v377 = vsel %vm369, %v341, 0
      %v380 = vsel %vm369, %v342, 0
      %v383 = vsel %vm369, %v343, 0
      %v386 = vsel %vm369, %v344, 0
      %v389 = vsel %vm369, %v345, 0
      %v392 = vsel %vm369, %v346, 0
      %v395 = vsel %vm369, %v347, 0
      %v398 = vsel %vm369, %v348, 0
      %v401 = vsel %vm369, %v349, 0
      %v404 = vsel %vm369, %v350, 0
      %v407 = vsel %vm369, %v351, 0
      %v410 = vsel %vm369, %v352, 0
      %v413 = vsel %vm369, %v353, 0
      %v416 = vsel %vm369, %v354, 0
      %v419 = vsel %vm369, %v355, 0
      %v422 = vsel %vm369, %v356, 0
      %v425 = vsel %vm369, %v357, 0
      %v428 = vsel %vm369, %v358, 0
      %v431 = vsel %vm369, %v359, 0
      %v434 = vsel %vm369, %v360, 0
      %v437 = vsel %vm369, %v361, 0
      %v440 = vsel %vm369, %v362, 0
      %v443 = vsel %vm369, %v363, 0
      %v446 = vsel %vm369, %v364, 0
      %v449 = vsel %vm369, %v365, 0
      %v452 = vsel %vm369, %v366, 0
      %vm454 = vcmask 1043456
      %v456 = vsel %vm454, %v368, 0
      %458 = vmatprep.subr.mxu0 0.0
      %459 = vmatpush1.msra.mxu0 %v456
      %460 = vmatprep.subr.mxu0 0.0
      %461 = vmatpush1.msra.mxu0 0.0
      %462 = vmatprep.subr.mxu0 0.0
      %463 = vmatpush1.msra.mxu0 0.0
      %464 = vmatprep.subr.mxu0 0.0
      %465 = vmatpush1.msra.mxu0 0.0
      %466 = vmatprep.subr.mxu0 0.0
      %467 = vmatpush1.msra.mxu0 0.0
      %468 = vmatprep.subr.mxu0 0.0
      %469 = vmatpush1.msra.mxu0 0.0
      %470 = vmatprep.subr.mxu0 0.0
      %471 = vmatpush1.msra.mxu0 0.0
      %472 = vmatprep.subr.mxu0 0.0
      %473 = vmatpush1.msra.mxu0 0.0
      %474 = vmatprep.subr.mxu0 0.0
      %475 = vmatpush1.msra.mxu0 0.0
      %476 = vmatprep.subr.mxu0 0.0
      %477 = vmatpush1.msra.mxu0 0.0
      %478 = vmatprep.subr.mxu0 0.0
      %479 = vmatpush1.msra.mxu0 0.0
      %480 = vmatprep.subr.mxu0 0.0
      %481 = vmatpush1.msra.mxu0 0.0
      %482 = vmatprep.subr.mxu0 0.0
      %483 = vmatpush1.msra.mxu0 0.0
      %484 = vmatprep.subr.mxu0 0.0
      %485 = vmatpush1.msra.mxu0 0.0
      %486 = vmatprep.subr.mxu0 0.0
      %487 = vmatpush1.msra.mxu0 0.0
      %488 = vmatprep.subr.mxu0 0.0
      %489 = vmatpush1.msra.mxu0 0.0
      %490 = vmatprep.subr.mxu0 0.0
      %491 = vmatpush1.msra.mxu0 0.0
      %492 = vmatprep.subr.mxu0 0.0
      %493 = vmatpush1.msra.mxu0 0.0
      %494 = vmatprep.subr.mxu0 0.0
      %495 = vmatpush1.msra.mxu0 0.0
      %496 = vmatprep.subr.mxu0 0.0
      %497 = vmatpush1.msra.mxu0 0.0
      %498 = vmatprep.subr.mxu0 0.0
      %499 = vmatpush1.msra.mxu0 0.0
      %500 = vmatprep.subr.mxu0 0.0
      %501 = vmatpush1.msra.mxu0 0.0
      %502 = vmatprep.subr.mxu0 0.0
      %503 = vmatpush1.msra.mxu0 0.0
      %504 = vmatprep.subr.mxu0 0.0
      %505 = vmatpush1.msra.mxu0 0.0
      %506 = vmatprep.subr.mxu0 0.0
      %507 = vmatpush1.msra.mxu0 0.0
      %508 = vmatprep.subr.mxu0 0.0
      %509 = vmatpush1.msra.mxu0 0.0
      %510 = vmatprep.subr.mxu0 0.0
      %511 = vmatpush1.msra.mxu0 0.0
      %512 = vmatprep.subr.mxu0 0.0
      %513 = vmatpush1.msra.mxu0 0.0
      %514 = vmatprep.subr.mxu0 0.0
      %515 = vmatpush1.msra.mxu0 0.0
      %516 = vmatprep.subr.mxu0 0.0
      %517 = vmatpush1.msra.mxu0 0.0
      %518 = vmatprep.subr.mxu0 0.0
      %519 = vmatpush1.msra.mxu0 0.0
      %520 = vmatprep.subr.mxu0 0.0
      %521 = vmatpush1.msra.mxu0 0.0
      %522 = vmatprep.mubr.f32.mxu0 0.0
      %523 = vmatmul.mubr.f32.gmra.mrb[0].mxu0 %v371
      %v524 = vpop.f32.mrb[0].mxu0
      %v525 = vadd.f32 0.0, %v524
      %v526 = vpop.f32.mrb[0].mxu0
      %527 = vmatprep.mubr.f32.mxu0 0.0
      %528 = vmatmul.mubr.f32.gmra.mrb[0].mxu0 %v374
      %v529 = vpop.f32.mrb[0].mxu0
      %v530 = vadd.f32 0.0, %v529
      %v531 = vpop.f32.mrb[0].mxu0
      %532 = vmatprep.mubr.f32.mxu0 0.0
      %533 = vmatmul.mubr.f32.gmra.mrb[0].mxu0 %v377
      %v534 = vpop.f32.mrb[0].mxu0
      %v535 = vadd.f32 0.0, %v534
      %v536 = vpop.f32.mrb[0].mxu0
      %537 = vmatprep.mubr.f32.mxu0 0.0
      %538 = vmatmul.mubr.f32.gmra.mrb[0].mxu0 %v380
      %v539 = vpop.f32.mrb[0].mxu0
      %v540 = vadd.f32 0.0, %v539
      %v541 = vpop.f32.mrb[0].mxu0
      %542 = vmatprep.mubr.f32.mxu0 0.0
      %543 = vmatmul.mubr.f32.gmra.mrb[0].mxu0 %v383
      %v544 = vpop.f32.mrb[0].mxu0
      %v545 = vadd.f32 0.0, %v544
      %v546 = vpop.f32.mrb[0].mxu0
      %547 = vmatprep.mubr.f32.mxu0 0.0
      %548 = vmatmul.mubr.f32.gmra.mrb[0].mxu0 %v386
      %v549 = vpop.f32.mrb[0].mxu0
      %v550 = vadd.f32 0.0, %v549
      %v551 = vpop.f32.mrb[0].mxu0
      %552 = vmatprep.mubr.f32.mxu0 0.0
      %553 = vmatmul.mubr.f32.gmra.mrb[0].mxu0 %v389
      %v554 = vpop.f32.mrb[0].mxu0
      %v555 = vadd.f32 0.0, %v554
      %v556 = vpop.f32.mrb[0].mxu0
      %557 = vmatprep.mubr.f32.mxu0 0.0
      %558 = vmatmul.mubr.f32.gmra.mrb[0].mxu0 %v392
      %v559 = vpop.f32.mrb[0].mxu0
      %v560 = vadd.f32 0.0, %v559
      %v561 = vpop.f32.mrb[0].mxu0
      %562 = vmatprep.mubr.f32.mxu0 0.0
      %563 = vmatmul.mubr.f32.gmra.mrb[0].mxu0 %v395
      %v564 = vpop.f32.mrb[0].mxu0
      %v565 = vadd.f32 0.0, %v564
      %v566 = vpop.f32.mrb[0].mxu0
      %567 = vmatprep.mubr.f32.mxu0 0.0
      %568 = vmatmul.mubr.f32.gmra.mrb[0].mxu0 %v398
      %v569 = vpop.f32.mrb[0].mxu0
      %v570 = vadd.f32 0.0, %v569
      %v571 = vpop.f32.mrb[0].mxu0
      %572 = vmatprep.mubr.f32.mxu0 0.0
      %573 = vmatmul.mubr.f32.gmra.mrb[0].mxu0 %v401
      %v574 = vpop.f32.mrb[0].mxu0
      %v575 = vadd.f32 0.0, %v574
      %v576 = vpop.f32.mrb[0].mxu0
      %577 = vmatprep.mubr.f32.mxu0 0.0
      %578 = vmatmul.mubr.f32.gmra.mrb[0].mxu0 %v404
      %v579 = vpop.f32.mrb[0].mxu0
      %v580 = vadd.f32 0.0, %v579
      %v581 = vpop.f32.mrb[0].mxu0
      %582 = vmatprep.mubr.f32.mxu0 0.0
      %583 = vmatmul.mubr.f32.gmra.mrb[0].mxu0 %v407
      %v584 = vpop.f32.mrb[0].mxu0
      %v585 = vadd.f32 0.0, %v584
      %v586 = vpop.f32.mrb[0].mxu0
      %587 = vmatprep.mubr.f32.mxu0 0.0
      %588 = vmatmul.mubr.f32.gmra.mrb[0].mxu0 %v410
      %v589 = vpop.f32.mrb[0].mxu0
      %v590 = vadd.f32 0.0, %v589
      %v591 = vpop.f32.mrb[0].mxu0
      %592 = vmatprep.mubr.f32.mxu0 0.0
      %593 = vmatmul.mubr.f32.gmra.mrb[0].mxu0 %v413
      %v594 = vpop.f32.mrb[0].mxu0
      %v595 = vadd.f32 0.0, %v594
      %v596 = vpop.f32.mrb[0].mxu0
      %597 = vmatprep.mubr.f32.mxu0 0.0
      %598 = vmatmul.mubr.f32.gmra.mrb[0].mxu0 %v416
      %v599 = vpop.f32.mrb[0].mxu0
      %v600 = vadd.f32 0.0, %v599
      %v601 = vpop.f32.mrb[0].mxu0
      %602 = vmatprep.mubr.f32.mxu0 0.0
      %603 = vmatmul.mubr.f32.gmra.mrb[0].mxu0 %v419
      %v604 = vpop.f32.mrb[0].mxu0
      %v605 = vadd.f32 0.0, %v604
      %v606 = vpop.f32.mrb[0].mxu0
      %607 = vmatprep.mubr.f32.mxu0 0.0
      %608 = vmatmul.mubr.f32.gmra.mrb[0].mxu0 %v422
      %v609 = vpop.f32.mrb[0].mxu0
      %v610 = vadd.f32 0.0, %v609
      %v611 = vpop.f32.mrb[0].mxu0
      %612 = vmatprep.mubr.f32.mxu0 0.0
      %613 = vmatmul.mubr.f32.gmra.mrb[0].mxu0 %v425
      %v614 = vpop.f32.mrb[0].mxu0
      %v615 = vadd.f32 0.0, %v614
      %v616 = vpop.f32.mrb[0].mxu0
      %617 = vmatprep.mubr.f32.mxu0 0.0
      %618 = vmatmul.mubr.f32.gmra.mrb[0].mxu0 %v428
      %v619 = vpop.f32.mrb[0].mxu0
      %v620 = vadd.f32 0.0, %v619
      %v621 = vpop.f32.mrb[0].mxu0
      %622 = vmatprep.mubr.f32.mxu0 0.0
      %623 = vmatmul.mubr.f32.gmra.mrb[0].mxu0 %v431
      %v624 = vpop.f32.mrb[0].mxu0
      %v625 = vadd.f32 0.0, %v624
      %v626 = vpop.f32.mrb[0].mxu0
      %627 = vmatprep.mubr.f32.mxu0 0.0
      %628 = vmatmul.mubr.f32.gmra.mrb[0].mxu0 %v434
      %v629 = vpop.f32.mrb[0].mxu0
      %v630 = vadd.f32 0.0, %v629
      %v631 = vpop.f32.mrb[0].mxu0
      %632 = vmatprep.mubr.f32.mxu0 0.0
      %633 = vmatmul.mubr.f32.gmra.mrb[0].mxu0 %v437
      %v634 = vpop.f32.mrb[0].mxu0
      %v635 = vadd.f32 0.0, %v634
      %v636 = vpop.f32.mrb[0].mxu0
      %637 = vmatprep.mubr.f32.mxu0 0.0
      %638 = vmatmul.mubr.f32.gmra.mrb[0].mxu0 %v440
      %v639 = vpop.f32.mrb[0].mxu0
      %v640 = vadd.f32 0.0, %v639
      %v641 = vpop.f32.mrb[0].mxu0
      %642 = vmatprep.mubr.f32.mxu0 0.0
      %643 = vmatmul.mubr.f32.gmra.mrb[0].mxu0 %v443
      %v644 = vpop.f32.mrb[0].mxu0
      %v645 = vadd.f32 0.0, %v644
      %v646 = vpop.f32.mrb[0].mxu0
      %647 = vmatprep.mubr.f32.mxu0 0.0
      %648 = vmatmul.mubr.f32.gmra.mrb[0].mxu0 %v446
      %v649 = vpop.f32.mrb[0].mxu0
      %v650 = vadd.f32 0.0, %v649
      %v651 = vpop.f32.mrb[0].mxu0
      %652 = vmatprep.mubr.f32.mxu0 0.0
      %653 = vmatmul.mubr.f32.gmra.mrb[0].mxu0 %v449
      %v654 = vpop.f32.mrb[0].mxu0
      %v655 = vpop.f32.mrb[0].mxu0
      %656 = vmatprep.mubr.f32.mxu0 0.0
      %657 = vmatmul.mubr.f32.gmra.mrb[0].mxu0 %v452
      %v658 = vpop.f32.mrb[0].mxu0
      %v659 = vpop.f32.mrb[0].mxu0
      %660 = vdwg.mxu0
      %v662 = vsel %vm369, %v310, 0
      %v665 = vsel %vm369, %v311, 0
      %v668 = vsel %vm369, %v312, 0
      %v671 = vsel %vm369, %v313, 0
      %v674 = vsel %vm369, %v314, 0
      %v677 = vsel %vm369, %v315, 0
      %v680 = vsel %vm369, %v316, 0
      %v683 = vsel %vm369, %v317, 0
      %v686 = vsel %vm369, %v318, 0
      %v689 = vsel %vm369, %v319, 0
      %v692 = vsel %vm369, %v320, 0
      %v695 = vsel %vm369, %v321, 0
      %v698 = vsel %vm369, %v322, 0
      %v701 = vsel %vm369, %v323, 0
      %v704 = vsel %vm369, %v324, 0
      %v707 = vsel %vm369, %v325, 0
      %v710 = vsel %vm369, %v326, 0
      %v713 = vsel %vm369, %v327, 0
      %v716 = vsel %vm369, %v328, 0
      %v719 = vsel %vm369, %v329, 0
      %v722 = vsel %vm369, %v330, 0
      %v725 = vsel %vm369, %v331, 0
      %v728 = vsel %vm369, %v332, 0
      %v731 = vsel %vm369, %v333, 0
      %v734 = vsel %vm369, %v334, 0
      %v737 = vsel %vm369, %v335, 0
      %v740 = vsel %vm369, %v336, 0
      %v743 = vsel %vm369, %v337, 0
      %v746 = vsel %vm454, %v338, 0
      %748 = vmatprep.subr.mxu0 0.0
      %749 = vmatpush1.msra.mxu0 %v746
      %750 = vmatprep.subr.mxu0 0.0
      %751 = vmatpush1.msra.mxu0 0.0
      %752 = vmatprep.subr.mxu0 0.0
      %753 = vmatpush1.msra.mxu0 0.0
      %754 = vmatprep.subr.mxu0 0.0
      %755 = vmatpush1.msra.mxu0 0.0
      %756 = vmatprep.subr.mxu0 0.0
      %757 = vmatpush1.msra.mxu0 0.0
      %758 = vmatprep.subr.mxu0 0.0
      %759 = vmatpush1.msra.mxu0 0.0
      %760 = vmatprep.subr.mxu0 0.0
      %761 = vmatpush1.msra.mxu0 0.0
      %762 = vmatprep.subr.mxu0 0.0
      %763 = vmatpush1.msra.mxu0 0.0
      %764 = vmatprep.subr.mxu0 0.0
      %765 = vmatpush1.msra.mxu0 0.0
      %766 = vmatprep.subr.mxu0 0.0
      %767 = vmatpush1.msra.mxu0 0.0
      %768 = vmatprep.subr.mxu0 0.0
      %769 = vmatpush1.msra.mxu0 0.0
      %770 = vmatprep.subr.mxu0 0.0
      %771 = vmatpush1.msra.mxu0 0.0
      %772 = vmatprep.subr.mxu0 0.0
      %773 = vmatpush1.msra.mxu0 0.0
      %774 = vmatprep.subr.mxu0 0.0
      %775 = vmatpush1.msra.mxu0 0.0
      %776 = vmatprep.subr.mxu0 0.0
      %777 = vmatpush1.msra.mxu0 0.0
      %778 = vmatprep.subr.mxu0 0.0
      %779 = vmatpush1.msra.mxu0 0.0
      %780 = vmatprep.subr.mxu0 0.0
      %781 = vmatpush1.msra.mxu0 0.0
      %782 = vmatprep.subr.mxu0 0.0
      %783 = vmatpush1.msra.mxu0 0.0
      %784 = vmatprep.subr.mxu0 0.0
      %785 = vmatpush1.msra.mxu0 0.0
      %786 = vmatprep.subr.mxu0 0.0
      %787 = vmatpush1.msra.mxu0 0.0
      %788 = vmatprep.subr.mxu0 0.0
      %789 = vmatpush1.msra.mxu0 0.0
      %790 = vmatprep.subr.mxu0 0.0
      %791 = vmatpush1.msra.mxu0 0.0
      %792 = vmatprep.subr.mxu0 0.0
      %793 = vmatpush1.msra.mxu0 0.0
      %794 = vmatprep.subr.mxu0 0.0
      %795 = vmatpush1.msra.mxu0 0.0
      %796 = vmatprep.subr.mxu0 0.0
      %797 = vmatpush1.msra.mxu0 0.0
      %798 = vmatprep.subr.mxu0 0.0
      %799 = vmatpush1.msra.mxu0 0.0
      %800 = vmatprep.subr.mxu0 0.0
      %801 = vmatpush1.msra.mxu0 0.0
      %802 = vmatprep.subr.mxu0 0.0
      %803 = vmatpush1.msra.mxu0 0.0
      %804 = vmatprep.subr.mxu0 0.0
      %805 = vmatpush1.msra.mxu0 0.0
      %806 = vmatprep.subr.mxu0 0.0
      %807 = vmatpush1.msra.mxu0 0.0
      %808 = vmatprep.subr.mxu0 0.0
      %809 = vmatpush1.msra.mxu0 0.0
      %810 = vmatprep.subr.mxu0 0.0
      %811 = vmatpush1.msra.mxu0 0.0
      %812 = vmatprep.mubr.f32.mxu0 0.0
      %813 = vmatmul.mubr.f32.gmra.mrb[0].mxu0 %v662
      %v814 = vpop.f32.mrb[0].mxu0
      %v815 = vadd.f32 %v525, %v814
      %v816 = vpop.f32.mrb[0].mxu0
      %817 = vmatprep.mubr.f32.mxu0 0.0
      %818 = vmatmul.mubr.f32.gmra.mrb[0].mxu0 %v665
      %v819 = vpop.f32.mrb[0].mxu0
      %v820 = vadd.f32 %v530, %v819
      %v821 = vpop.f32.mrb[0].mxu0
      %822 = vmatprep.mubr.f32.mxu0 0.0
      %823 = vmatmul.mubr.f32.gmra.mrb[0].mxu0 %v668
      %v824 = vpop.f32.mrb[0].mxu0
      %v825 = vadd.f32 %v535, %v824
      %v826 = vpop.f32.mrb[0].mxu0
      %827 = vmatprep.mubr.f32.mxu0 0.0
      %828 = vmatmul.mubr.f32.gmra.mrb[0].mxu0 %v671
      %v829 = vpop.f32.mrb[0].mxu0
      %v830 = vadd.f32 %v540, %v829
      %v831 = vpop.f32.mrb[0].mxu0
      %832 = vmatprep.mubr.f32.mxu0 0.0
      %833 = vmatmul.mubr.f32.gmra.mrb[0].mxu0 %v674
      %v834 = vpop.f32.mrb[0].mxu0
      %v835 = vadd.f32 %v545, %v834
      %v836 = vpop.f32.mrb[0].mxu0
      %837 = vmatprep.mubr.f32.mxu0 0.0
      %838 = vmatmul.mubr.f32.gmra.mrb[0].mxu0 %v677
      %v839 = vpop.f32.mrb[0].mxu0
      %v840 = vadd.f32 %v550, %v839
      %v841 = vpop.f32.mrb[0].mxu0
      %842 = vmatprep.mubr.f32.mxu0 0.0
      %843 = vmatmul.mubr.f32.gmra.mrb[0].mxu0 %v680
      %v844 = vpop.f32.mrb[0].mxu0
      %v845 = vadd.f32 %v555, %v844
      %v846 = vpop.f32.mrb[0].mxu0
      %847 = vmatprep.mubr.f32.mxu0 0.0
      %848 = vmatmul.mubr.f32.gmra.mrb[0].mxu0 %v683
      %v849 = vpop.f32.mrb[0].mxu0
      %v850 = vadd.f32 %v560, %v849
      %v851 = vpop.f32.mrb[0].mxu0
      %852 = vmatprep.mubr.f32.mxu0 0.0
      %853 = vmatmul.mubr.f32.gmra.mrb[0].mxu0 %v686
      %v854 = vpop.f32.mrb[0].mxu0
      %v855 = vadd.f32 %v565, %v854
      %v856 = vpop.f32.mrb[0].mxu0
      %857 = vmatprep.mubr.f32.mxu0 0.0
      %858 = vmatmul.mubr.f32.gmra.mrb[0].mxu0 %v689
      %v859 = vpop.f32.mrb[0].mxu0
      %v860 = vadd.f32 %v570, %v859
      %v861 = vpop.f32.mrb[0].mxu0
      %862 = vmatprep.mubr.f32.mxu0 0.0
      %863 = vmatmul.mubr.f32.gmra.mrb[0].mxu0 %v692
      %v864 = vpop.f32.mrb[0].mxu0
      %v865 = vadd.f32 %v575, %v864
      %v866 = vpop.f32.mrb[0].mxu0
      %867 = vmatprep.mubr.f32.mxu0 0.0
      %868 = vmatmul.mubr.f32.gmra.mrb[0].mxu0 %v695
      %v869 = vpop.f32.mrb[0].mxu0
      %v870 = vadd.f32 %v580, %v869
      %v871 = vpop.f32.mrb[0].mxu0
      %872 = vmatprep.mubr.f32.mxu0 0.0
      %873 = vmatmul.mubr.f32.gmra.mrb[0].mxu0 %v698
      %v874 = vpop.f32.mrb[0].mxu0
      %v875 = vadd.f32 %v585, %v874
      %v876 = vpop.f32.mrb[0].mxu0
      %877 = vmatprep.mubr.f32.mxu0 0.0
      %878 = vmatmul.mubr.f32.gmra.mrb[0].mxu0 %v701
      %v879 = vpop.f32.mrb[0].mxu0
      %v880 = vadd.f32 %v590, %v879
      %v881 = vpop.f32.mrb[0].mxu0
      %882 = vmatprep.mubr.f32.mxu0 0.0
      %883 = vmatmul.mubr.f32.gmra.mrb[0].mxu0 %v704
      %v884 = vpop.f32.mrb[0].mxu0
      %v885 = vadd.f32 %v595, %v884
      %v886 = vpop.f32.mrb[0].mxu0
      %887 = vmatprep.mubr.f32.mxu0 0.0
      %888 = vmatmul.mubr.f32.gmra.mrb[0].mxu0 %v707
      %v889 = vpop.f32.mrb[0].mxu0
      %v890 = vadd.f32 %v600, %v889
      %v891 = vpop.f32.mrb[0].mxu0
      %892 = vmatprep.mubr.f32.mxu0 0.0
      %893 = vmatmul.mubr.f32.gmra.mrb[0].mxu0 %v710
      %v894 = vpop.f32.mrb[0].mxu0
      %v895 = vadd.f32 %v605, %v894
      %v896 = vpop.f32.mrb[0].mxu0
      %897 = vmatprep.mubr.f32.mxu0 0.0
      %898 = vmatmul.mubr.f32.gmra.mrb[0].mxu0 %v713
      %v899 = vpop.f32.mrb[0].mxu0
      %v900 = vadd.f32 %v610, %v899
      %v901 = vpop.f32.mrb[0].mxu0
      %902 = vmatprep.mubr.f32.mxu0 0.0
      %903 = vmatmul.mubr.f32.gmra.mrb[0].mxu0 %v716
      %v904 = vpop.f32.mrb[0].mxu0
      %v905 = vadd.f32 %v615, %v904
      %v906 = vpop.f32.mrb[0].mxu0
      %907 = vmatprep.mubr.f32.mxu0 0.0
      %908 = vmatmul.mubr.f32.gmra.mrb[0].mxu0 %v719
      %v909 = vpop.f32.mrb[0].mxu0
      %v910 = vadd.f32 %v620, %v909
      %v911 = vpop.f32.mrb[0].mxu0
      %912 = vmatprep.mubr.f32.mxu0 0.0
      %913 = vmatmul.mubr.f32.gmra.mrb[0].mxu0 %v722
      %v914 = vpop.f32.mrb[0].mxu0
      %v915 = vadd.f32 %v625, %v914
      %v916 = vpop.f32.mrb[0].mxu0
      %917 = vmatprep.mubr.f32.mxu0 0.0
      %918 = vmatmul.mubr.f32.gmra.mrb[0].mxu0 %v725
      %v919 = vpop.f32.mrb[0].mxu0
      %v920 = vadd.f32 %v630, %v919
      %v921 = vpop.f32.mrb[0].mxu0
      %922 = vmatprep.mubr.f32.mxu0 0.0
      %923 = vmatmul.mubr.f32.gmra.mrb[0].mxu0 %v728
      %v924 = vpop.f32.mrb[0].mxu0
      %v925 = vadd.f32 %v635, %v924
      %v926 = vpop.f32.mrb[0].mxu0
      %927 = vmatprep.mubr.f32.mxu0 0.0
      %928 = vmatmul.mubr.f32.gmra.mrb[0].mxu0 %v731
      %v929 = vpop.f32.mrb[0].mxu0
      %v930 = vadd.f32 %v640, %v929
      %v931 = vpop.f32.mrb[0].mxu0
      %932 = vmatprep.mubr.f32.mxu0 0.0
      %933 = vmatmul.mubr.f32.gmra.mrb[0].mxu0 %v734
      %v934 = vpop.f32.mrb[0].mxu0
      %v935 = vadd.f32 %v645, %v934
      %v936 = vpop.f32.mrb[0].mxu0
      %937 = vmatprep.mubr.f32.mxu0 0.0
      %938 = vmatmul.mubr.f32.gmra.mrb[0].mxu0 %v737
      %v939 = vpop.f32.mrb[0].mxu0
      %v940 = vadd.f32 %v650, %v939
      %v941 = vpop.f32.mrb[0].mxu0
      %942 = vmatprep.mubr.f32.mxu0 0.0
      %943 = vmatmul.mubr.f32.gmra.mrb[0].mxu0 %v740
      %v944 = vpop.f32.mrb[0].mxu0
      %v945 = vpop.f32.mrb[0].mxu0
      %946 = vmatprep.mubr.f32.mxu0 0.0
      %947 = vmatmul.mubr.f32.gmra.mrb[0].mxu0 %v743
      %v948 = vpop.f32.mrb[0].mxu0
      %v949 = vpop.f32.mrb[0].mxu0
      %950 = vdwg.mxu0
      %v951 = vld [vmem:[%s295 + $0x2] sm:$0xff]
      %v952 = vld [vmem:[%s295 + $0xa] sm:$0xff]
      %v953 = vld [vmem:[%s295 + $0x12] sm:$0xff]
      %v954 = vld [vmem:[%s295 + $0x1a] sm:$0xff]
      %v955 = vld [vmem:[%s295 + $0x22] sm:$0xff]
      %v956 = vld [vmem:[%s295 + $0x2a] sm:$0xff]
      %v957 = vld [vmem:[%s295 + $0x32] sm:$0xff]
      %v958 = vld [vmem:[%s295 + $0x3a] sm:$0xff]
      %v959 = vld [vmem:[%s295 + $0x42] sm:$0xff]
      %v960 = vld [vmem:[%s295 + $0x4a] sm:$0xff]
      %v961 = vld [vmem:[%s295 + $0x52] sm:$0xff]
      %v962 = vld [vmem:[%s295 + $0x5a] sm:$0xff]
      %v963 = vld [vmem:[%s295 + $0x62] sm:$0xff]
      %v964 = vld [vmem:[%s295 + $0x6a] sm:$0xff]
      %v965 = vld [vmem:[%s295 + $0x72] sm:$0xff]
      %v966 = vld [vmem:[%s295 + $0x7a] sm:$0xff]
      %v967 = vld [vmem:[%s295 + $0x82] sm:$0xff]
      %v968 = vld [vmem:[%s295 + $0x8a] sm:$0xff]
      %v969 = vld [vmem:[%s295 + $0x92] sm:$0xff]
      %v970 = vld [vmem:[%s295 + $0x9a] sm:$0xff]
      %v971 = vld [vmem:[%s295 + $0xa2] sm:$0xff]
      %v972 = vld [vmem:[%s295 + $0xaa] sm:$0xff]
      %v973 = vld [vmem:[%s295 + $0xb2] sm:$0xff]
      %v974 = vld [vmem:[%s295 + $0xba] sm:$0xff]
      %v975 = vld [vmem:[%s295 + $0xc2] sm:$0xff]
      %v976 = vld [vmem:[%s295 + $0xca] sm:$0xff]
      %v977 = vld [vmem:[%s295 + $0xd2] sm:$0xff]
      %v978 = vld [vmem:[%s295 + $0xda] sm:$0xf]
      %s979 = scalar_lea.vmem %s2, 8
      %v980 = vld [vmem:[%s979] sm:$0xf]
      %v982 = vsel %vm369, %v951, 0
      %v985 = vsel %vm369, %v952, 0
      %v988 = vsel %vm369, %v953, 0
      %v991 = vsel %vm369, %v954, 0
      %v994 = vsel %vm369, %v955, 0
      %v997 = vsel %vm369, %v956, 0
      %v1000 = vsel %vm369, %v957, 0
      %v1003 = vsel %vm369, %v958, 0
      %v1006 = vsel %vm369, %v959, 0
      %v1009 = vsel %vm369, %v960, 0
      %v1012 = vsel %vm369, %v961, 0
      %v1015 = vsel %vm369, %v962, 0
      %v1018 = vsel %vm369, %v963, 0
      %v1021 = vsel %vm369, %v964, 0
      %v1024 = vsel %vm369, %v965, 0
      %v1027 = vsel %vm369, %v966, 0
      %v1030 = vsel %vm369, %v967, 0
      %v1033 = vsel %vm369, %v968, 0
      %v1036 = vsel %vm369, %v969, 0
      %v1039 = vsel %vm369, %v970, 0
      %v1042 = vsel %vm369, %v971, 0
      %v1045 = vsel %vm369, %v972, 0
      %v1048 = vsel %vm369, %v973, 0
      %v1051 = vsel %vm369, %v974, 0
      %v1054 = vsel %vm369, %v975, 0
      %v1057 = vsel %vm369, %v976, 0
      %v1060 = vsel %vm369, %v977, 0
      %v1063 = vsel %vm369, %v978, 0
      %v1066 = vsel %vm454, %v980, 0
      %1068 = vmatprep.subr.mxu0 0.0
      %1069 = vmatpush1.msra.mxu0 %v1066
      %1070 = vmatprep.subr.mxu0 0.0
      %1071 = vmatpush1.msra.mxu0 0.0
      %1072 = vmatprep.subr.mxu0 0.0
      %1073 = vmatpush1.msra.mxu0 0.0
      %1074 = vmatprep.subr.mxu0 0.0
      %1075 = vmatpush1.msra.mxu0 0.0
      %1076 = vmatprep.subr.mxu0 0.0
      %1077 = vmatpush1.msra.mxu0 0.0
      %1078 = vmatprep.subr.mxu0 0.0
      %1079 = vmatpush1.msra.mxu0 0.0
      %1080 = vmatprep.subr.mxu0 0.0
      %1081 = vmatpush1.msra.mxu0 0.0
      %1082 = vmatprep.subr.mxu0 0.0
      %1083 = vmatpush1.msra.mxu0 0.0
      %1084 = vmatprep.subr.mxu0 0.0
      %1085 = vmatpush1.msra.mxu0 0.0
      %1086 = vmatprep.subr.mxu0 0.0
      %1087 = vmatpush1.msra.mxu0 0.0
      %1088 = vmatprep.subr.mxu0 0.0
      %1089 = vmatpush1.msra.mxu0 0.0
      %1090 = vmatprep.subr.mxu0 0.0
      %1091 = vmatpush1.msra.mxu0 0.0
      %1092 = vmatprep.subr.mxu0 0.0
      %1093 = vmatpush1.msra.mxu0 0.0
      %1094 = vmatprep.subr.mxu0 0.0
      %1095 = vmatpush1.msra.mxu0 0.0
      %1096 = vmatprep.subr.mxu0 0.0
      %1097 = vmatpush1.msra.mxu0 0.0
      %1098 = vmatprep.subr.mxu0 0.0
      %1099 = vmatpush1.msra.mxu0 0.0
      %1100 = vmatprep.subr.mxu0 0.0
      %1101 = vmatpush1.msra.mxu0 0.0
      %1102 = vmatprep.subr.mxu0 0.0
      %1103 = vmatpush1.msra.mxu0 0.0
      %1104 = vmatprep.subr.mxu0 0.0
      %1105 = vmatpush1.msra.mxu0 0.0
      %1106 = vmatprep.subr.mxu0 0.0
      %1107 = vmatpush1.msra.mxu0 0.0
      %1108 = vmatprep.subr.mxu0 0.0
      %1109 = vmatpush1.msra.mxu0 0.0
      %1110 = vmatprep.subr.mxu0 0.0
      %1111 = vmatpush1.msra.mxu0 0.0
      %1112 = vmatprep.subr.mxu0 0.0
      %1113 = vmatpush1.msra.mxu0 0.0
      %1114 = vmatprep.subr.mxu0 0.0
      %1115 = vmatpush1.msra.mxu0 0.0
      %1116 = vmatprep.subr.mxu0 0.0
      %1117 = vmatpush1.msra.mxu0 0.0
      %1118 = vmatprep.subr.mxu0 0.0
      %1119 = vmatpush1.msra.mxu0 0.0
      %1120 = vmatprep.subr.mxu0 0.0
      %1121 = vmatpush1.msra.mxu0 0.0
      %1122 = vmatprep.subr.mxu0 0.0
      %1123 = vmatpush1.msra.mxu0 0.0
      %1124 = vmatprep.subr.mxu0 0.0
      %1125 = vmatpush1.msra.mxu0 0.0
      %1126 = vmatprep.subr.mxu0 0.0
      %1127 = vmatpush1.msra.mxu0 0.0
      %1128 = vmatprep.subr.mxu0 0.0
      %1129 = vmatpush1.msra.mxu0 0.0
      %1130 = vmatprep.subr.mxu0 0.0
      %1131 = vmatpush1.msra.mxu0 0.0
      %1132 = vmatprep.mubr.f32.mxu0 0.0
      %1133 = vmatmul.mubr.f32.gmra.mrb[0].mxu0 %v982
      %v1134 = vpop.f32.mrb[0].mxu0
      %v1135 = vadd.f32 0.0, %v1134
      %v1136 = vpop.f32.mrb[0].mxu0
      %1137 = vmatprep.mubr.f32.mxu0 0.0
      %1138 = vmatmul.mubr.f32.gmra.mrb[0].mxu0 %v985
      %v1139 = vpop.f32.mrb[0].mxu0
      %v1140 = vadd.f32 0.0, %v1139
      %v1141 = vpop.f32.mrb[0].mxu0
      %1142 = vmatprep.mubr.f32.mxu0 0.0
      %1143 = vmatmul.mubr.f32.gmra.mrb[0].mxu0 %v988
      %v1144 = vpop.f32.mrb[0].mxu0
      %v1145 = vadd.f32 0.0, %v1144
      %v1146 = vpop.f32.mrb[0].mxu0
      %1147 = vmatprep.mubr.f32.mxu0 0.0
      %1148 = vmatmul.mubr.f32.gmra.mrb[0].mxu0 %v991
      %v1149 = vpop.f32.mrb[0].mxu0
      %v1150 = vadd.f32 0.0, %v1149
      %v1151 = vpop.f32.mrb[0].mxu0
      %1152 = vmatprep.mubr.f32.mxu0 0.0
      %1153 = vmatmul.mubr.f32.gmra.mrb[0].mxu0 %v994
      %v1154 = vpop.f32.mrb[0].mxu0
      %v1155 = vadd.f32 0.0, %v1154
      %v1156 = vpop.f32.mrb[0].mxu0
      %1157 = vmatprep.mubr.f32.mxu0 0.0
      %1158 = vmatmul.mubr.f32.gmra.mrb[0].mxu0 %v997
      %v1159 = vpop.f32.mrb[0].mxu0
      %v1160 = vadd.f32 0.0, %v1159
      %v1161 = vpop.f32.mrb[0].mxu0
      %1162 = vmatprep.mubr.f32.mxu0 0.0
      %1163 = vmatmul.mubr.f32.gmra.mrb[0].mxu0 %v1000
      %v1164 = vpop.f32.mrb[0].mxu0
      %v1165 = vadd.f32 0.0, %v1164
      %v1166 = vpop.f32.mrb[0].mxu0
      %1167 = vmatprep.mubr.f32.mxu0 0.0
      %1168 = vmatmul.mubr.f32.gmra.mrb[0].mxu0 %v1003
      %v1169 = vpop.f32.mrb[0].mxu0
      %v1170 = vadd.f32 0.0, %v1169
      %v1171 = vpop.f32.mrb[0].mxu0
      %1172 = vmatprep.mubr.f32.mxu0 0.0
      %1173 = vmatmul.mubr.f32.gmra.mrb[0].mxu0 %v1006
      %v1174 = vpop.f32.mrb[0].mxu0
      %v1175 = vadd.f32 0.0, %v1174
      %v1176 = vpop.f32.mrb[0].mxu0
      %1177 = vmatprep.mubr.f32.mxu0 0.0
      %1178 = vmatmul.mubr.f32.gmra.mrb[0].mxu0 %v1009
      %v1179 = vpop.f32.mrb[0].mxu0
      %v1180 = vadd.f32 0.0, %v1179
      %v1181 = vpop.f32.mrb[0].mxu0
      %1182 = vmatprep.mubr.f32.mxu0 0.0
      %1183 = vmatmul.mubr.f32.gmra.mrb[0].mxu0 %v1012
      %v1184 = vpop.f32.mrb[0].mxu0
      %v1185 = vadd.f32 0.0, %v1184
      %v1186 = vpop.f32.mrb[0].mxu0
      %1187 = vmatprep.mubr.f32.mxu0 0.0
      %1188 = vmatmul.mubr.f32.gmra.mrb[0].mxu0 %v1015
      %v1189 = vpop.f32.mrb[0].mxu0
      %v1190 = vadd.f32 0.0, %v1189
      %v1191 = vpop.f32.mrb[0].mxu0
      %1192 = vmatprep.mubr.f32.mxu0 0.0
      %1193 = vmatmul.mubr.f32.gmra.mrb[0].mxu0 %v1018
      %v1194 = vpop.f32.mrb[0].mxu0
      %v1195 = vadd.f32 0.0, %v1194
      %v1196 = vpop.f32.mrb[0].mxu0
      %1197 = vmatprep.mubr.f32.mxu0 0.0
      %1198 = vmatmul.mubr.f32.gmra.mrb[0].mxu0 %v1021
      %v1199 = vpop.f32.mrb[0].mxu0
      %v1200 = vadd.f32 0.0, %v1199
      %v1201 = vpop.f32.mrb[0].mxu0
      %1202 = vmatprep.mubr.f32.mxu0 0.0
      %1203 = vmatmul.mubr.f32.gmra.mrb[0].mxu0 %v1024
      %v1204 = vpop.f32.mrb[0].mxu0
      %v1205 = vadd.f32 0.0, %v1204
      %v1206 = vpop.f32.mrb[0].mxu0
      %1207 = vmatprep.mubr.f32.mxu0 0.0
      %1208 = vmatmul.mubr.f32.gmra.mrb[0].mxu0 %v1027
      %v1209 = vpop.f32.mrb[0].mxu0
      %v1210 = vadd.f32 0.0, %v1209
      %v1211 = vpop.f32.mrb[0].mxu0
      %1212 = vmatprep.mubr.f32.mxu0 0.0
      %1213 = vmatmul.mubr.f32.gmra.mrb[0].mxu0 %v1030
      %v1214 = vpop.f32.mrb[0].mxu0
      %v1215 = vadd.f32 0.0, %v1214
      %v1216 = vpop.f32.mrb[0].mxu0
      %1217 = vmatprep.mubr.f32.mxu0 0.0
      %1218 = vmatmul.mubr.f32.gmra.mrb[0].mxu0 %v1033
      %v1219 = vpop.f32.mrb[0].mxu0
      %v1220 = vadd.f32 0.0, %v1219
      %v1221 = vpop.f32.mrb[0].mxu0
      %1222 = vmatprep.mubr.f32.mxu0 0.0
      %1223 = vmatmul.mubr.f32.gmra.mrb[0].mxu0 %v1036
      %v1224 = vpop.f32.mrb[0].mxu0
      %v1225 = vadd.f32 0.0, %v1224
      %v1226 = vpop.f32.mrb[0].mxu0
      %1227 = vmatprep.mubr.f32.mxu0 0.0
      %1228 = vmatmul.mubr.f32.gmra.mrb[0].mxu0 %v1039
      %v1229 = vpop.f32.mrb[0].mxu0
      %v1230 = vadd.f32 0.0, %v1229
      %v1231 = vpop.f32.mrb[0].mxu0
      %1232 = vmatprep.mubr.f32.mxu0 0.0
      %1233 = vmatmul.mubr.f32.gmra.mrb[0].mxu0 %v1042
      %v1234 = vpop.f32.mrb[0].mxu0
      %v1235 = vadd.f32 0.0, %v1234
      %v1236 = vpop.f32.mrb[0].mxu0
      %1237 = vmatprep.mubr.f32.mxu0 0.0
      %1238 = vmatmul.mubr.f32.gmra.mrb[0].mxu0 %v1045
      %v1239 = vpop.f32.mrb[0].mxu0
      %v1240 = vadd.f32 0.0, %v1239
      %v1241 = vpop.f32.mrb[0].mxu0
      %1242 = vmatprep.mubr.f32.mxu0 0.0
      %1243 = vmatmul.mubr.f32.gmra.mrb[0].mxu0 %v1048
      %v1244 = vpop.f32.mrb[0].mxu0
      %v1245 = vadd.f32 0.0, %v1244
      %v1246 = vpop.f32.mrb[0].mxu0
      %1247 = vmatprep.mubr.f32.mxu0 0.0
      %1248 = vmatmul.mubr.f32.gmra.mrb[0].mxu0 %v1051
      %v1249 = vpop.f32.mrb[0].mxu0
      %v1250 = vadd.f32 0.0, %v1249
      %v1251 = vpop.f32.mrb[0].mxu0
      %1252 = vmatprep.mubr.f32.mxu0 0.0
      %1253 = vmatmul.mubr.f32.gmra.mrb[0].mxu0 %v1054
      %v1254 = vpop.f32.mrb[0].mxu0
      %v1255 = vadd.f32 0.0, %v1254
      %v1256 = vpop.f32.mrb[0].mxu0
      %1257 = vmatprep.mubr.f32.mxu0 0.0
      %1258 = vmatmul.mubr.f32.gmra.mrb[0].mxu0 %v1057
      %v1259 = vpop.f32.mrb[0].mxu0
      %v1260 = vadd.f32 0.0, %v1259
      %v1261 = vpop.f32.mrb[0].mxu0
      %1262 = vmatprep.mubr.f32.mxu0 0.0
      %1263 = vmatmul.mubr.f32.gmra.mrb[0].mxu0 %v1060
      %v1264 = vpop.f32.mrb[0].mxu0
      %v1265 = vpop.f32.mrb[0].mxu0
      %1266 = vmatprep.mubr.f32.mxu0 0.0
      %1267 = vmatmul.mubr.f32.gmra.mrb[0].mxu0 %v1063
      %v1268 = vpop.f32.mrb[0].mxu0
      %v1269 = vpop.f32.mrb[0].mxu0
      %1270 = vdwg.mxu0
      %v1271 = vadd.f32 %v815, %v1135
      %v1272 = vadd.f32 %v820, %v1140
      %v1273 = vadd.f32 %v825, %v1145
      %v1274 = vadd.f32 %v830, %v1150
      %v1275 = vadd.f32 %v835, %v1155
      %v1276 = vadd.f32 %v840, %v1160
      %v1277 = vadd.f32 %v845, %v1165
      %v1278 = vadd.f32 %v850, %v1170
      %v1279 = vadd.f32 %v855, %v1175
      %v1280 = vadd.f32 %v860, %v1180
      %v1281 = vadd.f32 %v865, %v1185
      %v1282 = vadd.f32 %v870, %v1190
      %v1283 = vadd.f32 %v875, %v1195
      %v1284 = vadd.f32 %v880, %v1200
      %v1285 = vadd.f32 %v885, %v1205
      %v1286 = vadd.f32 %v890, %v1210
      %v1287 = vadd.f32 %v895, %v1215
      %v1288 = vadd.f32 %v900, %v1220
      %v1289 = vadd.f32 %v905, %v1225
      %v1290 = vadd.f32 %v910, %v1230
      %v1291 = vadd.f32 %v915, %v1235
      %v1292 = vadd.f32 %v920, %v1240
      %v1293 = vadd.f32 %v925, %v1245
      %v1294 = vadd.f32 %v930, %v1250
      %v1295 = vadd.f32 %v935, %v1255
      %v1296 = vadd.f32 %v940, %v1260
      %v1297 = vld [vmem:[%s295 + $0x14] sm:$0xff]
      %v1298 = vld [vmem:[%s295 + $0x1c] sm:$0xff]
      %v1299 = vld [vmem:[%s295 + $0x24] sm:$0xff]
      %v1300 = vld [vmem:[%s295 + $0x2c] sm:$0xff]
      %v1301 = vld [vmem:[%s295 + $0x34] sm:$0xff]
      %v1302 = vld [vmem:[%s295 + $0x3c] sm:$0xff]
      %v1303 = vld [vmem:[%s295 + $0x44] sm:$0xff]
      %v1304 = vld [vmem:[%s295 + $0x4c] sm:$0xff]
      %v1305 = vld [vmem:[%s295 + $0x54] sm:$0xff]
      %v1306 = vld [vmem:[%s295 + $0x5c] sm:$0xff]
      %v1307 = vld [vmem:[%s295 + $0x64] sm:$0xff]
      %v1308 = vld [vmem:[%s295 + $0x6c] sm:$0xff]
      %v1309 = vld [vmem:[%s295 + $0x74] sm:$0xff]
      %v1310 = vld [vmem:[%s295 + $0x7c] sm:$0xff]
      %v1311 = vld [vmem:[%s295 + $0x84] sm:$0xff]
      %v1312 = vld [vmem:[%s295 + $0x8c] sm:$0xff]
      %v1313 = vld [vmem:[%s295 + $0x94] sm:$0xff]
      %v1314 = vld [vmem:[%s295 + $0x9c] sm:$0xff]
      %v1315 = vld [vmem:[%s295 + $0xa4] sm:$0xff]
      %v1316 = vld [vmem:[%s295 + $0xac] sm:$0xff]
      %v1317 = vld [vmem:[%s295 + $0xb4] sm:$0xff]
      %v1318 = vld [vmem:[%s295 + $0xbc] sm:$0xff]
      %v1319 = vld [vmem:[%s295 + $0xc4] sm:$0xff]
      %v1320 = vld [vmem:[%s295 + $0xcc] sm:$0xff]
      %v1321 = vld [vmem:[%s295 + $0xd4] sm:$0xff]
      %v1322 = vld [vmem:[%s295 + $0xdc] sm:$0xff]
      %v1323 = vld [vmem:[%s295 + $0xe4] sm:$0xff]
      %v1324 = vld [vmem:[%s295 + $0xec] sm:$0xf]
      %s1325 = scalar_lea.vmem %s2, 12
      %v1326 = vld [vmem:[%s1325] sm:$0xf]
      %v1328 = vsel %vm369, %v1297, 0
      %v1331 = vsel %vm369, %v1298, 0
      %v1334 = vsel %vm369, %v1299, 0
      %v1337 = vsel %vm369, %v1300, 0
      %v1340 = vsel %vm369, %v1301, 0
      %v1343 = vsel %vm369, %v1302, 0
      %v1346 = vsel %vm369, %v1303, 0
      %v1349 = vsel %vm369, %v1304, 0
      %v1352 = vsel %vm369, %v1305, 0
      %v1355 = vsel %vm369, %v1306, 0
      %v1358 = vsel %vm369, %v1307, 0
      %v1361 = vsel %vm369, %v1308, 0
      %v1364 = vsel %vm369, %v1309, 0
      %v1367 = vsel %vm369, %v1310, 0
      %v1370 = vsel %vm369, %v1311, 0
      %v1373 = vsel %vm369, %v1312, 0
      %v1376 = vsel %vm369, %v1313, 0
      %v1379 = vsel %vm369, %v1314, 0
      %v1382 = vsel %vm369, %v1315, 0
      %v1385 = vsel %vm369, %v1316, 0
      %v1388 = vsel %vm369, %v1317, 0
      %v1391 = vsel %vm369, %v1318, 0
      %v1394 = vsel %vm369, %v1319, 0
      %v1397 = vsel %vm369, %v1320, 0
      %v1400 = vsel %vm369, %v1321, 0
      %v1403 = vsel %vm369, %v1322, 0
      %v1406 = vsel %vm369, %v1323, 0
      %v1409 = vsel %vm369, %v1324, 0
      %v1412 = vsel %vm454, %v1326, 0
      %1414 = vmatprep.subr.mxu0 0.0
      %1415 = vmatpush1.msra.mxu0 %v1412
      %1416 = vmatprep.subr.mxu0 0.0
      %1417 = vmatpush1.msra.mxu0 0.0
      %1418 = vmatprep.subr.mxu0 0.0
      %1419 = vmatpush1.msra.mxu0 0.0
      %1420 = vmatprep.subr.mxu0 0.0
      %1421 = vmatpush1.msra.mxu0 0.0
      %1422 = vmatprep.subr.mxu0 0.0
      %1423 = vmatpush1.msra.mxu0 0.0
      %1424 = vmatprep.subr.mxu0 0.0
      %1425 = vmatpush1.msra.mxu0 0.0
      %1426 = vmatprep.subr.mxu0 0.0
      %1427 = vmatpush1.msra.mxu0 0.0
      %1428 = vmatprep.subr.mxu0 0.0
      %1429 = vmatpush1.msra.mxu0 0.0
      %1430 = vmatprep.subr.mxu0 0.0
      %1431 = vmatpush1.msra.mxu0 0.0
      %1432 = vmatprep.subr.mxu0 0.0
      %1433 = vmatpush1.msra.mxu0 0.0
      %1434 = vmatprep.subr.mxu0 0.0
      %1435 = vmatpush1.msra.mxu0 0.0
      %1436 = vmatprep.subr.mxu0 0.0
      %1437 = vmatpush1.msra.mxu0 0.0
      %1438 = vmatprep.subr.mxu0 0.0
      %1439 = vmatpush1.msra.mxu0 0.0
      %1440 = vmatprep.subr.mxu0 0.0
      %1441 = vmatpush1.msra.mxu0 0.0
      %1442 = vmatprep.subr.mxu0 0.0
      %1443 = vmatpush1.msra.mxu0 0.0
      %1444 = vmatprep.subr.mxu0 0.0
      %1445 = vmatpush1.msra.mxu0 0.0
      %1446 = vmatprep.subr.mxu0 0.0
      %1447 = vmatpush1.msra.mxu0 0.0
      %1448 = vmatprep.subr.mxu0 0.0
      %1449 = vmatpush1.msra.mxu0 0.0
      %1450 = vmatprep.subr.mxu0 0.0
      %1451 = vmatpush1.msra.mxu0 0.0
      %1452 = vmatprep.subr.mxu0 0.0
      %1453 = vmatpush1.msra.mxu0 0.0
      %1454 = vmatprep.subr.mxu0 0.0
      %1455 = vmatpush1.msra.mxu0 0.0
      %1456 = vmatprep.subr.mxu0 0.0
      %1457 = vmatpush1.msra.mxu0 0.0
      %1458 = vmatprep.subr.mxu0 0.0
      %1459 = vmatpush1.msra.mxu0 0.0
      %1460 = vmatprep.subr.mxu0 0.0
      %1461 = vmatpush1.msra.mxu0 0.0
      %1462 = vmatprep.subr.mxu0 0.0
      %1463 = vmatpush1.msra.mxu0 0.0
      %1464 = vmatprep.subr.mxu0 0.0
      %1465 = vmatpush1.msra.mxu0 0.0
      %1466 = vmatprep.subr.mxu0 0.0
      %1467 = vmatpush1.msra.mxu0 0.0
      %1468 = vmatprep.subr.mxu0 0.0
      %1469 = vmatpush1.msra.mxu0 0.0
      %1470 = vmatprep.subr.mxu0 0.0
      %1471 = vmatpush1.msra.mxu0 0.0
      %1472 = vmatprep.subr.mxu0 0.0
      %1473 = vmatpush1.msra.mxu0 0.0
      %1474 = vmatprep.subr.mxu0 0.0
      %1475 = vmatpush1.msra.mxu0 0.0
      %1476 = vmatprep.subr.mxu0 0.0
      %1477 = vmatpush1.msra.mxu0 0.0
      %1478 = vmatprep.mubr.f32.mxu0 0.0
      %1479 = vmatmul.mubr.f32.gmra.mrb[0].mxu0 %v1328
      %v1480 = vpop.f32.mrb[0].mxu0
      %v1481 = vadd.f32 0.0, %v1480
      %v1482 = vpop.f32.mrb[0].mxu0
      %1483 = vmatprep.mubr.f32.mxu0 0.0
      %1484 = vmatmul.mubr.f32.gmra.mrb[0].mxu0 %v1331
      %v1485 = vpop.f32.mrb[0].mxu0
      %v1486 = vadd.f32 0.0, %v1485
      %v1487 = vpop.f32.mrb[0].mxu0
      %1488 = vmatprep.mubr.f32.mxu0 0.0
      %1489 = vmatmul.mubr.f32.gmra.mrb[0].mxu0 %v1334
      %v1490 = vpop.f32.mrb[0].mxu0
      %v1491 = vadd.f32 0.0, %v1490
      %v1492 = vpop.f32.mrb[0].mxu0
      %1493 = vmatprep.mubr.f32.mxu0 0.0
      %1494 = vmatmul.mubr.f32.gmra.mrb[0].mxu0 %v1337
      %v1495 = vpop.f32.mrb[0].mxu0
      %v1496 = vadd.f32 0.0, %v1495
      %v1497 = vpop.f32.mrb[0].mxu0
      %1498 = vmatprep.mubr.f32.mxu0 0.0
      %1499 = vmatmul.mubr.f32.gmra.mrb[0].mxu0 %v1340
      %v1500 = vpop.f32.mrb[0].mxu0
      %v1501 = vadd.f32 0.0, %v1500
      %v1502 = vpop.f32.mrb[0].mxu0
      %1503 = vmatprep.mubr.f32.mxu0 0.0
      %1504 = vmatmul.mubr.f32.gmra.mrb[0].mxu0 %v1343
      %v1505 = vpop.f32.mrb[0].mxu0
      %v1506 = vadd.f32 0.0, %v1505
      %v1507 = vpop.f32.mrb[0].mxu0
      %1508 = vmatprep.mubr.f32.mxu0 0.0
      %1509 = vmatmul.mubr.f32.gmra.mrb[0].mxu0 %v1346
      %v1510 = vpop.f32.mrb[0].mxu0
      %v1511 = vadd.f32 0.0, %v1510
      %v1512 = vpop.f32.mrb[0].mxu0
      %1513 = vmatprep.mubr.f32.mxu0 0.0
      %1514 = vmatmul.mubr.f32.gmra.mrb[0].mxu0 %v1349
      %v1515 = vpop.f32.mrb[0].mxu0
      %v1516 = vadd.f32 0.0, %v1515
      %v1517 = vpop.f32.mrb[0].mxu0
      %1518 = vmatprep.mubr.f32.mxu0 0.0
      %1519 = vmatmul.mubr.f32.gmra.mrb[0].mxu0 %v1352
      %v1520 = vpop.f32.mrb[0].mxu0
      %v1521 = vadd.f32 0.0, %v1520
      %v1522 = vpop.f32.mrb[0].mxu0
      %1523 = vmatprep.mubr.f32.mxu0 0.0
      %1524 = vmatmul.mubr.f32.gmra.mrb[0].mxu0 %v1355
      %v1525 = vpop.f32.mrb[0].mxu0
      %v1526 = vadd.f32 0.0, %v1525
      %v1527 = vpop.f32.mrb[0].mxu0
      %1528 = vmatprep.mubr.f32.mxu0 0.0
      %1529 = vmatmul.mubr.f32.gmra.mrb[0].mxu0 %v1358
      %v1530 = vpop.f32.mrb[0].mxu0
      %v1531 = vadd.f32 0.0, %v1530
      %v1532 = vpop.f32.mrb[0].mxu0
      %1533 = vmatprep.mubr.f32.mxu0 0.0
      %1534 = vmatmul.mubr.f32.gmra.mrb[0].mxu0 %v1361
      %v1535 = vpop.f32.mrb[0].mxu0
      %v1536 = vadd.f32 0.0, %v1535
      %v1537 = vpop.f32.mrb[0].mxu0
      %1538 = vmatprep.mubr.f32.mxu0 0.0
      %1539 = vmatmul.mubr.f32.gmra.mrb[0].mxu0 %v1364
      %v1540 = vpop.f32.mrb[0].mxu0
      %v1541 = vadd.f32 0.0, %v1540
      %v1542 = vpop.f32.mrb[0].mxu0
      %1543 = vmatprep.mubr.f32.mxu0 0.0
      %1544 = vmatmul.mubr.f32.gmra.mrb[0].mxu0 %v1367
      %v1545 = vpop.f32.mrb[0].mxu0
      %v1546 = vadd.f32 0.0, %v1545
      %v1547 = vpop.f32.mrb[0].mxu0
      %1548 = vmatprep.mubr.f32.mxu0 0.0
      %1549 = vmatmul.mubr.f32.gmra.mrb[0].mxu0 %v1370
      %v1550 = vpop.f32.mrb[0].mxu0
      %v1551 = vadd.f32 0.0, %v1550
      %v1552 = vpop.f32.mrb[0].mxu0
      %1553 = vmatprep.mubr.f32.mxu0 0.0
      %1554 = vmatmul.mubr.f32.gmra.mrb[0].mxu0 %v1373
      %v1555 = vpop.f32.mrb[0].mxu0
      %v1556 = vadd.f32 0.0, %v1555
      %v1557 = vpop.f32.mrb[0].mxu0
      %1558 = vmatprep.mubr.f32.mxu0 0.0
      %1559 = vmatmul.mubr.f32.gmra.mrb[0].mxu0 %v1376
      %v1560 = vpop.f32.mrb[0].mxu0
      %v1561 = vadd.f32 0.0, %v1560
      %v1562 = vpop.f32.mrb[0].mxu0
      %1563 = vmatprep.mubr.f32.mxu0 0.0
      %1564 = vmatmul.mubr.f32.gmra.mrb[0].mxu0 %v1379
      %v1565 = vpop.f32.mrb[0].mxu0
      %v1566 = vadd.f32 0.0, %v1565
      %v1567 = vpop.f32.mrb[0].mxu0
      %1568 = vmatprep.mubr.f32.mxu0 0.0
      %1569 = vmatmul.mubr.f32.gmra.mrb[0].mxu0 %v1382
      %v1570 = vpop.f32.mrb[0].mxu0
      %v1571 = vadd.f32 0.0, %v1570
      %v1572 = vpop.f32.mrb[0].mxu0
      %1573 = vmatprep.mubr.f32.mxu0 0.0
      %1574 = vmatmul.mubr.f32.gmra.mrb[0].mxu0 %v1385
      %v1575 = vpop.f32.mrb[0].mxu0
      %v1576 = vadd.f32 0.0, %v1575
      %v1577 = vpop.f32.mrb[0].mxu0
      %1578 = vmatprep.mubr.f32.mxu0 0.0
      %1579 = vmatmul.mubr.f32.gmra.mrb[0].mxu0 %v1388
      %v1580 = vpop.f32.mrb[0].mxu0
      %v1581 = vadd.f32 0.0, %v1580
      %v1582 = vpop.f32.mrb[0].mxu0
      %1583 = vmatprep.mubr.f32.mxu0 0.0
      %1584 = vmatmul.mubr.f32.gmra.mrb[0].mxu0 %v1391
      %v1585 = vpop.f32.mrb[0].mxu0
      %v1586 = vadd.f32 0.0, %v1585
      %v1587 = vpop.f32.mrb[0].mxu0
      %1588 = vmatprep.mubr.f32.mxu0 0.0
      %1589 = vmatmul.mubr.f32.gmra.mrb[0].mxu0 %v1394
      %v1590 = vpop.f32.mrb[0].mxu0
      %v1591 = vadd.f32 0.0, %v1590
      %v1592 = vpop.f32.mrb[0].mxu0
      %1593 = vmatprep.mubr.f32.mxu0 0.0
      %1594 = vmatmul.mubr.f32.gmra.mrb[0].mxu0 %v1397
      %v1595 = vpop.f32.mrb[0].mxu0
      %v1596 = vadd.f32 0.0, %v1595
      %v1597 = vpop.f32.mrb[0].mxu0
      %1598 = vmatprep.mubr.f32.mxu0 0.0
      %1599 = vmatmul.mubr.f32.gmra.mrb[0].mxu0 %v1400
      %v1600 = vpop.f32.mrb[0].mxu0
      %v1601 = vadd.f32 0.0, %v1600
      %v1602 = vpop.f32.mrb[0].mxu0
      %1603 = vmatprep.mubr.f32.mxu0 0.0
      %1604 = vmatmul.mubr.f32.gmra.mrb[0].mxu0 %v1403
      %v1605 = vpop.f32.mrb[0].mxu0
      %v1606 = vadd.f32 0.0, %v1605
      %v1607 = vpop.f32.mrb[0].mxu0
      %1608 = vmatprep.mubr.f32.mxu0 0.0
      %1609 = vmatmul.mubr.f32.gmra.mrb[0].mxu0 %v1406
      %v1610 = vpop.f32.mrb[0].mxu0
      %v1611 = vpop.f32.mrb[0].mxu0
      %1612 = vmatprep.mubr.f32.mxu0 0.0
      %1613 = vmatmul.mubr.f32.gmra.mrb[0].mxu0 %v1409
      %v1614 = vpop.f32.mrb[0].mxu0
      %v1615 = vpop.f32.mrb[0].mxu0
      %1616 = vdwg.mxu0
      %v1617 = vadd.f32 %v1271, %v1481
      %v1618 = vadd.f32 %v1272, %v1486
      %v1619 = vadd.f32 %v1273, %v1491
      %v1620 = vadd.f32 %v1274, %v1496
      %v1621 = vadd.f32 %v1275, %v1501
      %v1622 = vadd.f32 %v1276, %v1506
      %v1623 = vadd.f32 %v1277, %v1511
      %v1624 = vadd.f32 %v1278, %v1516
      %v1625 = vadd.f32 %v1279, %v1521
      %v1626 = vadd.f32 %v1280, %v1526
      %v1627 = vadd.f32 %v1281, %v1531
      %v1628 = vadd.f32 %v1282, %v1536
      %v1629 = vadd.f32 %v1283, %v1541
      %v1630 = vadd.f32 %v1284, %v1546
      %v1631 = vadd.f32 %v1285, %v1551
      %v1632 = vadd.f32 %v1286, %v1556
      %v1633 = vadd.f32 %v1287, %v1561
      %v1634 = vadd.f32 %v1288, %v1566
      %v1635 = vadd.f32 %v1289, %v1571
      %v1636 = vadd.f32 %v1290, %v1576
      %v1637 = vadd.f32 %v1291, %v1581
      %v1638 = vadd.f32 %v1292, %v1586
      %v1639 = vadd.f32 %v1293, %v1591
      %v1640 = vadd.f32 %v1294, %v1596
      %v1641 = vadd.f32 %v1295, %v1601
      %v1642 = vadd.f32 %v1296, %v1606
      %v1643 = vld [vmem:[%s295 + $0x15] sm:$0xff]
      %v1644 = vld [vmem:[%s295 + $0x1d] sm:$0xff]
      %v1645 = vld [vmem:[%s295 + $0x25] sm:$0xff]
      %v1646 = vld [vmem:[%s295 + $0x2d] sm:$0xff]
      %v1647 = vld [vmem:[%s295 + $0x35] sm:$0xff]
      %v1648 = vld [vmem:[%s295 + $0x3d] sm:$0xff]
      %v1649 = vld [vmem:[%s295 + $0x45] sm:$0xff]
      %v1650 = vld [vmem:[%s295 + $0x4d] sm:$0xff]
      %v1651 = vld [vmem:[%s295 + $0x55] sm:$0xff]
      %v1652 = vld [vmem:[%s295 + $0x5d] sm:$0xff]
      %v1653 = vld [vmem:[%s295 + $0x65] sm:$0xff]
      %v1654 = vld [vmem:[%s295 + $0x6d] sm:$0xff]
      %v1655 = vld [vmem:[%s295 + $0x75] sm:$0xff]
      %v1656 = vld [vmem:[%s295 + $0x7d] sm:$0xff]
      %v1657 = vld [vmem:[%s295 + $0x85] sm:$0xff]
      %v1658 = vld [vmem:[%s295 + $0x8d] sm:$0xff]
      %v1659 = vld [vmem:[%s295 + $0x95] sm:$0xff]
      %v1660 = vld [vmem:[%s295 + $0x9d] sm:$0xff]
      %v1661 = vld [vmem:[%s295 + $0xa5] sm:$0xff]
      %v1662 = vld [vmem:[%s295 + $0xad] sm:$0xff]
      %v1663 = vld [vmem:[%s295 + $0xb5] sm:$0xff]
      %v1664 = vld [vmem:[%s295 + $0xbd] sm:$0xff]
      %v1665 = vld [vmem:[%s295 + $0xc5] sm:$0xff]
      %v1666 = vld [vmem:[%s295 + $0xcd] sm:$0xff]
      %v1667 = vld [vmem:[%s295 + $0xd5] sm:$0xff]
      %v1668 = vld [vmem:[%s295 + $0xdd] sm:$0xff]
      %v1669 = vld [vmem:[%s295 + $0xe5] sm:$0xff]
      %v1670 = vld [vmem:[%s295 + $0xed] sm:$0xf]
      %s1671 = scalar_lea.vmem %s2, 16
      %v1672 = vld [vmem:[%s1671] sm:$0xf]
      %v1674 = vsel %vm369, %v1643, 0
      %v1677 = vsel %vm369, %v1644, 0
      %v1680 = vsel %vm369, %v1645, 0
      %v1683 = vsel %vm369, %v1646, 0
      %v1686 = vsel %vm369, %v1647, 0
      %v1689 = vsel %vm369, %v1648, 0
      %v1692 = vsel %vm369, %v1649, 0
      %v1695 = vsel %vm369, %v1650, 0
      %v1698 = vsel %vm369, %v1651, 0
      %v1701 = vsel %vm369, %v1652, 0
      %v1704 = vsel %vm369, %v1653, 0
      %v1707 = vsel %vm369, %v1654, 0
      %v1710 = vsel %vm369, %v1655, 0
      %v1713 = vsel %vm369, %v1656, 0
      %v1716 = vsel %vm369, %v1657, 0
      %v1719 = vsel %vm369, %v1658, 0
      %v1722 = vsel %vm369, %v1659, 0
      %v1725 = vsel %vm369, %v1660, 0
      %v1728 = vsel %vm369, %v1661, 0
      %v1731 = vsel %vm369, %v1662, 0
      %v1734 = vsel %vm369, %v1663, 0
      %v1737 = vsel %vm369, %v1664, 0
      %v1740 = vsel %vm369, %v1665, 0
      %v1743 = vsel %vm369, %v1666, 0
      %v1746 = vsel %vm369, %v1667, 0
      %v1749 = vsel %vm369, %v1668, 0
      %v1752 = vsel %vm369, %v1669, 0
      %v1755 = vsel %vm369, %v1670, 0
      %v1758 = vsel %vm454, %v1672, 0
      %1760 = vmatprep.subr.mxu0 0.0
      %1761 = vmatpush1.msra.mxu0 %v1758
      %1762 = vmatprep.subr.mxu0 0.0
      %1763 = vmatpush1.msra.mxu0 0.0
      %1764 = vmatprep.subr.mxu0 0.0
      %1765 = vmatpush1.msra.mxu0 0.0
      %1766 = vmatprep.subr.mxu0 0.0
      %1767 = vmatpush1.msra.mxu0 0.0
      %1768 = vmatprep.subr.mxu0 0.0
      %1769 = vmatpush1.msra.mxu0 0.0
      %1770 = vmatprep.subr.mxu0 0.0
      %1771 = vmatpush1.msra.mxu0 0.0
      %1772 = vmatprep.subr.mxu0 0.0
      %1773 = vmatpush1.msra.mxu0 0.0
      %1774 = vmatprep.subr.mxu0 0.0
      %1775 = vmatpush1.msra.mxu0 0.0
      %1776 = vmatprep.subr.mxu0 0.0
      %1777 = vmatpush1.msra.mxu0 0.0
      %1778 = vmatprep.subr.mxu0 0.0
      %1779 = vmatpush1.msra.mxu0 0.0
      %1780 = vmatprep.subr.mxu0 0.0
      %1781 = vmatpush1.msra.mxu0 0.0
      %1782 = vmatprep.subr.mxu0 0.0
      %1783 = vmatpush1.msra.mxu0 0.0
      %1784 = vmatprep.subr.mxu0 0.0
      %1785 = vmatpush1.msra.mxu0 0.0
      %1786 = vmatprep.subr.mxu0 0.0
      %1787 = vmatpush1.msra.mxu0 0.0
      %1788 = vmatprep.subr.mxu0 0.0
      %1789 = vmatpush1.msra.mxu0 0.0
      %1790 = vmatprep.subr.mxu0 0.0
      %1791 = vmatpush1.msra.mxu0 0.0
      %1792 = vmatprep.subr.mxu0 0.0
      %1793 = vmatpush1.msra.mxu0 0.0
      %1794 = vmatprep.subr.mxu0 0.0
      %1795 = vmatpush1.msra.mxu0 0.0
      %1796 = vmatprep.subr.mxu0 0.0
      %1797 = vmatpush1.msra.mxu0 0.0
      %1798 = vmatprep.subr.mxu0 0.0
      %1799 = vmatpush1.msra.mxu0 0.0
      %1800 = vmatprep.subr.mxu0 0.0
      %1801 = vmatpush1.msra.mxu0 0.0
      %1802 = vmatprep.subr.mxu0 0.0
      %1803 = vmatpush1.msra.mxu0 0.0
      %1804 = vmatprep.subr.mxu0 0.0
      %1805 = vmatpush1.msra.mxu0 0.0
      %1806 = vmatprep.subr.mxu0 0.0
      %1807 = vmatpush1.msra.mxu0 0.0
      %1808 = vmatprep.subr.mxu0 0.0
      %1809 = vmatpush1.msra.mxu0 0.0
      %1810 = vmatprep.subr.mxu0 0.0
      %1811 = vmatpush1.msra.mxu0 0.0
      %1812 = vmatprep.subr.mxu0 0.0
      %1813 = vmatpush1.msra.mxu0 0.0
      %1814 = vmatprep.subr.mxu0 0.0
      %1815 = vmatpush1.msra.mxu0 0.0
      %1816 = vmatprep.subr.mxu0 0.0
      %1817 = vmatpush1.msra.mxu0 0.0
      %1818 = vmatprep.subr.mxu0 0.0
      %1819 = vmatpush1.msra.mxu0 0.0
      %1820 = vmatprep.subr.mxu0 0.0
      %1821 = vmatpush1.msra.mxu0 0.0
      %1822 = vmatprep.subr.mxu0 0.0
      %1823 = vmatpush1.msra.mxu0 0.0
      %1824 = vmatprep.mubr.f32.mxu0 0.0
      %1825 = vmatmul.mubr.f32.gmra.mrb[0].mxu0 %v1674
      %v1826 = vpop.f32.mrb[0].mxu0
      %v1827 = vadd.f32 0.0, %v1826
      %v1828 = vpop.f32.mrb[0].mxu0
      %1829 = vmatprep.mubr.f32.mxu0 0.0
      %1830 = vmatmul.mubr.f32.gmra.mrb[0].mxu0 %v1677
      %v1831 = vpop.f32.mrb[0].mxu0
      %v1832 = vadd.f32 0.0, %v1831
      %v1833 = vpop.f32.mrb[0].mxu0
      %1834 = vmatprep.mubr.f32.mxu0 0.0
      %1835 = vmatmul.mubr.f32.gmra.mrb[0].mxu0 %v1680
      %v1836 = vpop.f32.mrb[0].mxu0
      %v1837 = vadd.f32 0.0, %v1836
      %v1838 = vpop.f32.mrb[0].mxu0
      %1839 = vmatprep.mubr.f32.mxu0 0.0
      %1840 = vmatmul.mubr.f32.gmra.mrb[0].mxu0 %v1683
      %v1841 = vpop.f32.mrb[0].mxu0
      %v1842 = vadd.f32 0.0, %v1841
      %v1843 = vpop.f32.mrb[0].mxu0
      %1844 = vmatprep.mubr.f32.mxu0 0.0
      %1845 = vmatmul.mubr.f32.gmra.mrb[0].mxu0 %v1686
      %v1846 = vpop.f32.mrb[0].mxu0
      %v1847 = vadd.f32 0.0, %v1846
      %v1848 = vpop.f32.mrb[0].mxu0
      %1849 = vmatprep.mubr.f32.mxu0 0.0
      %1850 = vmatmul.mubr.f32.gmra.mrb[0].mxu0 %v1689
      %v1851 = vpop.f32.mrb[0].mxu0
      %v1852 = vadd.f32 0.0, %v1851
      %v1853 = vpop.f32.mrb[0].mxu0
      %1854 = vmatprep.mubr.f32.mxu0 0.0
      %1855 = vmatmul.mubr.f32.gmra.mrb[0].mxu0 %v1692
      %v1856 = vpop.f32.mrb[0].mxu0
      %v1857 = vadd.f32 0.0, %v1856
      %v1858 = vpop.f32.mrb[0].mxu0
      %1859 = vmatprep.mubr.f32.mxu0 0.0
      %1860 = vmatmul.mubr.f32.gmra.mrb[0].mxu0 %v1695
      %v1861 = vpop.f32.mrb[0].mxu0
      %v1862 = vadd.f32 0.0, %v1861
      %v1863 = vpop.f32.mrb[0].mxu0
      %1864 = vmatprep.mubr.f32.mxu0 0.0
      %1865 = vmatmul.mubr.f32.gmra.mrb[0].mxu0 %v1698
      %v1866 = vpop.f32.mrb[0].mxu0
      %v1867 = vadd.f32 0.0, %v1866
      %v1868 = vpop.f32.mrb[0].mxu0
      %1869 = vmatprep.mubr.f32.mxu0 0.0
      %1870 = vmatmul.mubr.f32.gmra.mrb[0].mxu0 %v1701
      %v1871 = vpop.f32.mrb[0].mxu0
      %v1872 = vadd.f32 0.0, %v1871
      %v1873 = vpop.f32.mrb[0].mxu0
      %1874 = vmatprep.mubr.f32.mxu0 0.0
      %1875 = vmatmul.mubr.f32.gmra.mrb[0].mxu0 %v1704
      %v1876 = vpop.f32.mrb[0].mxu0
      %v1877 = vadd.f32 0.0, %v1876
      %v1878 = vpop.f32.mrb[0].mxu0
      %1879 = vmatprep.mubr.f32.mxu0 0.0
      %1880 = vmatmul.mubr.f32.gmra.mrb[0].mxu0 %v1707
      %v1881 = vpop.f32.mrb[0].mxu0
      %v1882 = vadd.f32 0.0, %v1881
      %v1883 = vpop.f32.mrb[0].mxu0
      %1884 = vmatprep.mubr.f32.mxu0 0.0
      %1885 = vmatmul.mubr.f32.gmra.mrb[0].mxu0 %v1710
      %v1886 = vpop.f32.mrb[0].mxu0
      %v1887 = vadd.f32 0.0, %v1886
      %v1888 = vpop.f32.mrb[0].mxu0
      %1889 = vmatprep.mubr.f32.mxu0 0.0
      %1890 = vmatmul.mubr.f32.gmra.mrb[0].mxu0 %v1713
      %v1891 = vpop.f32.mrb[0].mxu0
      %v1892 = vadd.f32 0.0, %v1891
      %v1893 = vpop.f32.mrb[0].mxu0
      %1894 = vmatprep.mubr.f32.mxu0 0.0
      %1895 = vmatmul.mubr.f32.gmra.mrb[0].mxu0 %v1716
      %v1896 = vpop.f32.mrb[0].mxu0
      %v1897 = vadd.f32 0.0, %v1896
      %v1898 = vpop.f32.mrb[0].mxu0
      %1899 = vmatprep.mubr.f32.mxu0 0.0
      %1900 = vmatmul.mubr.f32.gmra.mrb[0].mxu0 %v1719
      %v1901 = vpop.f32.mrb[0].mxu0
      %v1902 = vadd.f32 0.0, %v1901
      %v1903 = vpop.f32.mrb[0].mxu0
      %1904 = vmatprep.mubr.f32.mxu0 0.0
      %1905 = vmatmul.mubr.f32.gmra.mrb[0].mxu0 %v1722
      %v1906 = vpop.f32.mrb[0].mxu0
      %v1907 = vadd.f32 0.0, %v1906
      %v1908 = vpop.f32.mrb[0].mxu0
      %1909 = vmatprep.mubr.f32.mxu0 0.0
      %1910 = vmatmul.mubr.f32.gmra.mrb[0].mxu0 %v1725
      %v1911 = vpop.f32.mrb[0].mxu0
      %v1912 = vadd.f32 0.0, %v1911
      %v1913 = vpop.f32.mrb[0].mxu0
      %1914 = vmatprep.mubr.f32.mxu0 0.0
      %1915 = vmatmul.mubr.f32.gmra.mrb[0].mxu0 %v1728
      %v1916 = vpop.f32.mrb[0].mxu0
      %v1917 = vadd.f32 0.0, %v1916
      %v1918 = vpop.f32.mrb[0].mxu0
      %1919 = vmatprep.mubr.f32.mxu0 0.0
      %1920 = vmatmul.mubr.f32.gmra.mrb[0].mxu0 %v1731
      %v1921 = vpop.f32.mrb[0].mxu0
      %v1922 = vadd.f32 0.0, %v1921
      %v1923 = vpop.f32.mrb[0].mxu0
      %1924 = vmatprep.mubr.f32.mxu0 0.0
      %1925 = vmatmul.mubr.f32.gmra.mrb[0].mxu0 %v1734
      %v1926 = vpop.f32.mrb[0].mxu0
      %v1927 = vadd.f32 0.0, %v1926
      %v1928 = vpop.f32.mrb[0].mxu0
      %1929 = vmatprep.mubr.f32.mxu0 0.0
      %1930 = vmatmul.mubr.f32.gmra.mrb[0].mxu0 %v1737
      %v1931 = vpop.f32.mrb[0].mxu0
      %v1932 = vadd.f32 0.0, %v1931
      %v1933 = vpop.f32.mrb[0].mxu0
      %1934 = vmatprep.mubr.f32.mxu0 0.0
      %1935 = vmatmul.mubr.f32.gmra.mrb[0].mxu0 %v1740
      %v1936 = vpop.f32.mrb[0].mxu0
      %v1937 = vadd.f32 0.0, %v1936
      %v1938 = vpop.f32.mrb[0].mxu0
      %1939 = vmatprep.mubr.f32.mxu0 0.0
      %1940 = vmatmul.mubr.f32.gmra.mrb[0].mxu0 %v1743
      %v1941 = vpop.f32.mrb[0].mxu0
      %v1942 = vadd.f32 0.0, %v1941
      %v1943 = vpop.f32.mrb[0].mxu0
      %1944 = vmatprep.mubr.f32.mxu0 0.0
      %1945 = vmatmul.mubr.f32.gmra.mrb[0].mxu0 %v1746
      %v1946 = vpop.f32.mrb[0].mxu0
      %v1947 = vadd.f32 0.0, %v1946
      %v1948 = vpop.f32.mrb[0].mxu0
      %1949 = vmatprep.mubr.f32.mxu0 0.0
      %1950 = vmatmul.mubr.f32.gmra.mrb[0].mxu0 %v1749
      %v1951 = vpop.f32.mrb[0].mxu0
      %v1952 = vadd.f32 0.0, %v1951
      %v1953 = vpop.f32.mrb[0].mxu0
      %1954 = vmatprep.mubr.f32.mxu0 0.0
      %1955 = vmatmul.mubr.f32.gmra.mrb[0].mxu0 %v1752
      %v1956 = vpop.f32.mrb[0].mxu0
      %v1957 = vpop.f32.mrb[0].mxu0
      %1958 = vmatprep.mubr.f32.mxu0 0.0
      %1959 = vmatmul.mubr.f32.gmra.mrb[0].mxu0 %v1755
      %v1960 = vpop.f32.mrb[0].mxu0
      %v1961 = vpop.f32.mrb[0].mxu0
      %1962 = vdwg.mxu0
      %v1963 = vadd.f32 %v1617, %v1827
      %v1964 = vadd.f32 %v1618, %v1832
      %v1965 = vadd.f32 %v1619, %v1837
      %v1966 = vadd.f32 %v1620, %v1842
      %v1967 = vadd.f32 %v1621, %v1847
      %v1968 = vadd.f32 %v1622, %v1852
      %v1969 = vadd.f32 %v1623, %v1857
      %v1970 = vadd.f32 %v1624, %v1862
      %v1971 = vadd.f32 %v1625, %v1867
      %v1972 = vadd.f32 %v1626, %v1872
      %v1973 = vadd.f32 %v1627, %v1877
      %v1974 = vadd.f32 %v1628, %v1882
      %v1975 = vadd.f32 %v1629, %v1887
      %v1976 = vadd.f32 %v1630, %v1892
      %v1977 = vadd.f32 %v1631, %v1897
      %v1978 = vadd.f32 %v1632, %v1902
      %v1979 = vadd.f32 %v1633, %v1907
      %v1980 = vadd.f32 %v1634, %v1912
      %v1981 = vadd.f32 %v1635, %v1917
      %v1982 = vadd.f32 %v1636, %v1922
      %v1983 = vadd.f32 %v1637, %v1927
      %v1984 = vadd.f32 %v1638, %v1932
      %v1985 = vadd.f32 %v1639, %v1937
      %v1986 = vadd.f32 %v1640, %v1942
      %v1987 = vadd.f32 %v1641, %v1947
      %v1988 = vadd.f32 %v1642, %v1952
      %v1989 = vld [vmem:[%s295 + $0x16] sm:$0xff]
      %v1990 = vld [vmem:[%s295 + $0x1e] sm:$0xff]
      %v1991 = vld [vmem:[%s295 + $0x26] sm:$0xff]
      %v1992 = vld [vmem:[%s295 + $0x2e] sm:$0xff]
      %v1993 = vld [vmem:[%s295 + $0x36] sm:$0xff]
      %v1994 = vld [vmem:[%s295 + $0x3e] sm:$0xff]
      %v1995 = vld [vmem:[%s295 + $0x46] sm:$0xff]
      %v1996 = vld [vmem:[%s295 + $0x4e] sm:$0xff]
      %v1997 = vld [vmem:[%s295 + $0x56] sm:$0xff]
      %v1998 = vld [vmem:[%s295 + $0x5e] sm:$0xff]
      %v1999 = vld [vmem:[%s295 + $0x66] sm:$0xff]
      %v2000 = vld [vmem:[%s295 + $0x6e] sm:$0xff]
      %v2001 = vld [vmem:[%s295 + $0x76] sm:$0xff]
      %v2002 = vld [vmem:[%s295 + $0x7e] sm:$0xff]
      %v2003 = vld [vmem:[%s295 + $0x86] sm:$0xff]
      %v2004 = vld [vmem:[%s295 + $0x8e] sm:$0xff]
      %v2005 = vld [vmem:[%s295 + $0x96] sm:$0xff]
      %v2006 = vld [vmem:[%s295 + $0x9e] sm:$0xff]
      %v2007 = vld [vmem:[%s295 + $0xa6] sm:$0xff]
      %v2008 = vld [vmem:[%s295 + $0xae] sm:$0xff]
      %v2009 = vld [vmem:[%s295 + $0xb6] sm:$0xff]
      %v2010 = vld [vmem:[%s295 + $0xbe] sm:$0xff]
      %v2011 = vld [vmem:[%s295 + $0xc6] sm:$0xff]
      %v2012 = vld [vmem:[%s295 + $0xce] sm:$0xff]
      %v2013 = vld [vmem:[%s295 + $0xd6] sm:$0xff]
      %v2014 = vld [vmem:[%s295 + $0xde] sm:$0xff]
      %v2015 = vld [vmem:[%s295 + $0xe6] sm:$0xff]
      %v2016 = vld [vmem:[%s295 + $0xee] sm:$0xf]
      %s2017 = scalar_lea.vmem %s2, 20
      %v2018 = vld [vmem:[%s2017] sm:$0xf]
      %v2020 = vsel %vm369, %v1989, 0
      %v2023 = vsel %vm369, %v1990, 0
      %v2026 = vsel %vm369, %v1991, 0
      %v2029 = vsel %vm369, %v1992, 0
      %v2032 = vsel %vm369, %v1993, 0
      %v2035 = vsel %vm369, %v1994, 0
      %v2038 = vsel %vm369, %v1995, 0
      %v2041 = vsel %vm369, %v1996, 0
      %v2044 = vsel %vm369, %v1997, 0
      %v2047 = vsel %vm369, %v1998, 0
      %v2050 = vsel %vm369, %v1999, 0
      %v2053 = vsel %vm369, %v2000, 0
      %v2056 = vsel %vm369, %v2001, 0
      %v2059 = vsel %vm369, %v2002, 0
      %v2062 = vsel %vm369, %v2003, 0
      %v2065 = vsel %vm369, %v2004, 0
      %v2068 = vsel %vm369, %v2005, 0
      %v2071 = vsel %vm369, %v2006, 0
      %v2074 = vsel %vm369, %v2007, 0
      %v2077 = vsel %vm369, %v2008, 0
      %v2080 = vsel %vm369, %v2009, 0
      %v2083 = vsel %vm369, %v2010, 0
      %v2086 = vsel %vm369, %v2011, 0
      %v2089 = vsel %vm369, %v2012, 0
      %v2092 = vsel %vm369, %v2013, 0
      %v2095 = vsel %vm369, %v2014, 0
      %v2098 = vsel %vm369, %v2015, 0
      %v2101 = vsel %vm369, %v2016, 0
      %v2104 = vsel %vm454, %v2018, 0
      %2106 = vmatprep.subr.mxu0 0.0
      %2107 = vmatpush1.msra.mxu0 %v2104
      %2108 = vmatprep.subr.mxu0 0.0
      %2109 = vmatpush1.msra.mxu0 0.0
      %2110 = vmatprep.subr.mxu0 0.0
      %2111 = vmatpush1.msra.mxu0 0.0
      %2112 = vmatprep.subr.mxu0 0.0
      %2113 = vmatpush1.msra.mxu0 0.0
      %2114 = vmatprep.subr.mxu0 0.0
      %2115 = vmatpush1.msra.mxu0 0.0
      %2116 = vmatprep.subr.mxu0 0.0
      %2117 = vmatpush1.msra.mxu0 0.0
      %2118 = vmatprep.subr.mxu0 0.0
      %2119 = vmatpush1.msra.mxu0 0.0
      %2120 = vmatprep.subr.mxu0 0.0
      %2121 = vmatpush1.msra.mxu0 0.0
      %2122 = vmatprep.subr.mxu0 0.0
      %2123 = vmatpush1.msra.mxu0 0.0
      %2124 = vmatprep.subr.mxu0 0.0
      %2125 = vmatpush1.msra.mxu0 0.0
      %2126 = vmatprep.subr.mxu0 0.0
      %2127 = vmatpush1.msra.mxu0 0.0
      %2128 = vmatprep.subr.mxu0 0.0
      %2129 = vmatpush1.msra.mxu0 0.0
      %2130 = vmatprep.subr.mxu0 0.0
      %2131 = vmatpush1.msra.mxu0 0.0
      %2132 = vmatprep.subr.mxu0 0.0
      %2133 = vmatpush1.msra.mxu0 0.0
      %2134 = vmatprep.subr.mxu0 0.0
      %2135 = vmatpush1.msra.mxu0 0.0
      %2136 = vmatprep.subr.mxu0 0.0
      %2137 = vmatpush1.msra.mxu0 0.0
      %2138 = vmatprep.subr.mxu0 0.0
      %2139 = vmatpush1.msra.mxu0 0.0
      %2140 = vmatprep.subr.mxu0 0.0
      %2141 = vmatpush1.msra.mxu0 0.0
      %2142 = vmatprep.subr.mxu0 0.0
      %2143 = vmatpush1.msra.mxu0 0.0
      %2144 = vmatprep.subr.mxu0 0.0
      %2145 = vmatpush1.msra.mxu0 0.0
      %2146 = vmatprep.subr.mxu0 0.0
      %2147 = vmatpush1.msra.mxu0 0.0
      %2148 = vmatprep.subr.mxu0 0.0
      %2149 = vmatpush1.msra.mxu0 0.0
      %2150 = vmatprep.subr.mxu0 0.0
      %2151 = vmatpush1.msra.mxu0 0.0
      %2152 = vmatprep.subr.mxu0 0.0
      %2153 = vmatpush1.msra.mxu0 0.0
      %2154 = vmatprep.subr.mxu0 0.0
      %2155 = vmatpush1.msra.mxu0 0.0
      %2156 = vmatprep.subr.mxu0 0.0
      %2157 = vmatpush1.msra.mxu0 0.0
      %2158 = vmatprep.subr.mxu0 0.0
      %2159 = vmatpush1.msra.mxu0 0.0
      %2160 = vmatprep.subr.mxu0 0.0
      %2161 = vmatpush1.msra.mxu0 0.0
      %2162 = vmatprep.subr.mxu0 0.0
      %2163 = vmatpush1.msra.mxu0 0.0
      %2164 = vmatprep.subr.mxu0 0.0
      %2165 = vmatpush1.msra.mxu0 0.0
      %2166 = vmatprep.subr.mxu0 0.0
      %2167 = vmatpush1.msra.mxu0 0.0
      %2168 = vmatprep.subr.mxu0 0.0
      %2169 = vmatpush1.msra.mxu0 0.0
      %2170 = vmatprep.mubr.f32.mxu0 0.0
      %2171 = vmatmul.mubr.f32.gmra.mrb[0].mxu0 %v2020
      %v2172 = vpop.f32.mrb[0].mxu0
      %v2173 = vadd.f32 0.0, %v2172
      %v2174 = vpop.f32.mrb[0].mxu0
      %2175 = vmatprep.mubr.f32.mxu0 0.0
      %2176 = vmatmul.mubr.f32.gmra.mrb[0].mxu0 %v2023
      %v2177 = vpop.f32.mrb[0].mxu0
      %v2178 = vadd.f32 0.0, %v2177
      %v2179 = vpop.f32.mrb[0].mxu0
      %2180 = vmatprep.mubr.f32.mxu0 0.0
      %2181 = vmatmul.mubr.f32.gmra.mrb[0].mxu0 %v2026
      %v2182 = vpop.f32.mrb[0].mxu0
      %v2183 = vadd.f32 0.0, %v2182
      %v2184 = vpop.f32.mrb[0].mxu0
      %2185 = vmatprep.mubr.f32.mxu0 0.0
      %2186 = vmatmul.mubr.f32.gmra.mrb[0].mxu0 %v2029
      %v2187 = vpop.f32.mrb[0].mxu0
      %v2188 = vadd.f32 0.0, %v2187
      %v2189 = vpop.f32.mrb[0].mxu0
      %2190 = vmatprep.mubr.f32.mxu0 0.0
      %2191 = vmatmul.mubr.f32.gmra.mrb[0].mxu0 %v2032
      %v2192 = vpop.f32.mrb[0].mxu0
      %v2193 = vadd.f32 0.0, %v2192
      %v2194 = vpop.f32.mrb[0].mxu0
      %2195 = vmatprep.mubr.f32.mxu0 0.0
      %2196 = vmatmul.mubr.f32.gmra.mrb[0].mxu0 %v2035
      %v2197 = vpop.f32.mrb[0].mxu0
      %v2198 = vadd.f32 0.0, %v2197
      %v2199 = vpop.f32.mrb[0].mxu0
      %2200 = vmatprep.mubr.f32.mxu0 0.0
      %2201 = vmatmul.mubr.f32.gmra.mrb[0].mxu0 %v2038
      %v2202 = vpop.f32.mrb[0].mxu0
      %v2203 = vadd.f32 0.0, %v2202
      %v2204 = vpop.f32.mrb[0].mxu0
      %2205 = vmatprep.mubr.f32.mxu0 0.0
      %2206 = vmatmul.mubr.f32.gmra.mrb[0].mxu0 %v2041
      %v2207 = vpop.f32.mrb[0].mxu0
      %v2208 = vadd.f32 0.0, %v2207
      %v2209 = vpop.f32.mrb[0].mxu0
      %2210 = vmatprep.mubr.f32.mxu0 0.0
      %2211 = vmatmul.mubr.f32.gmra.mrb[0].mxu0 %v2044
      %v2212 = vpop.f32.mrb[0].mxu0
      %v2213 = vadd.f32 0.0, %v2212
      %v2214 = vpop.f32.mrb[0].mxu0
      %2215 = vmatprep.mubr.f32.mxu0 0.0
      %2216 = vmatmul.mubr.f32.gmra.mrb[0].mxu0 %v2047
      %v2217 = vpop.f32.mrb[0].mxu0
      %v2218 = vadd.f32 0.0, %v2217
      %v2219 = vpop.f32.mrb[0].mxu0
      %2220 = vmatprep.mubr.f32.mxu0 0.0
      %2221 = vmatmul.mubr.f32.gmra.mrb[0].mxu0 %v2050
      %v2222 = vpop.f32.mrb[0].mxu0
      %v2223 = vadd.f32 0.0, %v2222
      %v2224 = vpop.f32.mrb[0].mxu0
      %2225 = vmatprep.mubr.f32.mxu0 0.0
      %2226 = vmatmul.mubr.f32.gmra.mrb[0].mxu0 %v2053
      %v2227 = vpop.f32.mrb[0].mxu0
      %v2228 = vadd.f32 0.0, %v2227
      %v2229 = vpop.f32.mrb[0].mxu0
      %2230 = vmatprep.mubr.f32.mxu0 0.0
      %2231 = vmatmul.mubr.f32.gmra.mrb[0].mxu0 %v2056
      %v2232 = vpop.f32.mrb[0].mxu0
      %v2233 = vadd.f32 0.0, %v2232
      %v2234 = vpop.f32.mrb[0].mxu0
      %2235 = vmatprep.mubr.f32.mxu0 0.0
      %2236 = vmatmul.mubr.f32.gmra.mrb[0].mxu0 %v2059
      %v2237 = vpop.f32.mrb[0].mxu0
      %v2238 = vadd.f32 0.0, %v2237
      %v2239 = vpop.f32.mrb[0].mxu0
      %2240 = vmatprep.mubr.f32.mxu0 0.0
      %2241 = vmatmul.mubr.f32.gmra.mrb[0].mxu0 %v2062
      %v2242 = vpop.f32.mrb[0].mxu0
      %v2243 = vadd.f32 0.0, %v2242
      %v2244 = vpop.f32.mrb[0].mxu0
      %2245 = vmatprep.mubr.f32.mxu0 0.0
      %2246 = vmatmul.mubr.f32.gmra.mrb[0].mxu0 %v2065
      %v2247 = vpop.f32.mrb[0].mxu0
      %v2248 = vadd.f32 0.0, %v2247
      %v2249 = vpop.f32.mrb[0].mxu0
      %2250 = vmatprep.mubr.f32.mxu0 0.0
      %2251 = vmatmul.mubr.f32.gmra.mrb[0].mxu0 %v2068
      %v2252 = vpop.f32.mrb[0].mxu0
      %v2253 = vadd.f32 0.0, %v2252
      %v2254 = vpop.f32.mrb[0].mxu0
      %2255 = vmatprep.mubr.f32.mxu0 0.0
      %2256 = vmatmul.mubr.f32.gmra.mrb[0].mxu0 %v2071
      %v2257 = vpop.f32.mrb[0].mxu0
      %v2258 = vadd.f32 0.0, %v2257
      %v2259 = vpop.f32.mrb[0].mxu0
      %2260 = vmatprep.mubr.f32.mxu0 0.0
      %2261 = vmatmul.mubr.f32.gmra.mrb[0].mxu0 %v2074
      %v2262 = vpop.f32.mrb[0].mxu0
      %v2263 = vadd.f32 0.0, %v2262
      %v2264 = vpop.f32.mrb[0].mxu0
      %2265 = vmatprep.mubr.f32.mxu0 0.0
      %2266 = vmatmul.mubr.f32.gmra.mrb[0].mxu0 %v2077
      %v2267 = vpop.f32.mrb[0].mxu0
      %v2268 = vadd.f32 0.0, %v2267
      %v2269 = vpop.f32.mrb[0].mxu0
      %2270 = vmatprep.mubr.f32.mxu0 0.0
      %2271 = vmatmul.mubr.f32.gmra.mrb[0].mxu0 %v2080
      %v2272 = vpop.f32.mrb[0].mxu0
      %v2273 = vadd.f32 0.0, %v2272
      %v2274 = vpop.f32.mrb[0].mxu0
      %2275 = vmatprep.mubr.f32.mxu0 0.0
      %2276 = vmatmul.mubr.f32.gmra.mrb[0].mxu0 %v2083
      %v2277 = vpop.f32.mrb[0].mxu0
      %v2278 = vadd.f32 0.0, %v2277
      %v2279 = vpop.f32.mrb[0].mxu0
      %2280 = vmatprep.mubr.f32.mxu0 0.0
      %2281 = vmatmul.mubr.f32.gmra.mrb[0].mxu0 %v2086
      %v2282 = vpop.f32.mrb[0].mxu0
      %v2283 = vadd.f32 0.0, %v2282
      %v2284 = vpop.f32.mrb[0].mxu0
      %2285 = vmatprep.mubr.f32.mxu0 0.0
      %2286 = vmatmul.mubr.f32.gmra.mrb[0].mxu0 %v2089
      %v2287 = vpop.f32.mrb[0].mxu0
      %v2288 = vadd.f32 0.0, %v2287
      %v2289 = vpop.f32.mrb[0].mxu0
      %2290 = vmatprep.mubr.f32.mxu0 0.0
      %2291 = vmatmul.mubr.f32.gmra.mrb[0].mxu0 %v2092
      %v2292 = vpop.f32.mrb[0].mxu0
      %v2293 = vadd.f32 0.0, %v2292
      %v2294 = vpop.f32.mrb[0].mxu0
      %2295 = vmatprep.mubr.f32.mxu0 0.0
      %2296 = vmatmul.mubr.f32.gmra.mrb[0].mxu0 %v2095
      %v2297 = vpop.f32.mrb[0].mxu0
      %v2298 = vadd.f32 0.0, %v2297
      %v2299 = vpop.f32.mrb[0].mxu0
      %2300 = vmatprep.mubr.f32.mxu0 0.0
      %2301 = vmatmul.mubr.f32.gmra.mrb[0].mxu0 %v2098
      %v2302 = vpop.f32.mrb[0].mxu0
      %v2303 = vpop.f32.mrb[0].mxu0
      %2304 = vmatprep.mubr.f32.mxu0 0.0
      %2305 = vmatmul.mubr.f32.gmra.mrb[0].mxu0 %v2101
      %v2306 = vpop.f32.mrb[0].mxu0
      %v2307 = vpop.f32.mrb[0].mxu0
      %2308 = vdwg.mxu0
      %v2309 = vadd.f32 %v1963, %v2173
      %v2310 = vadd.f32 %v1964, %v2178
      %v2311 = vadd.f32 %v1965, %v2183
      %v2312 = vadd.f32 %v1966, %v2188
      %v2313 = vadd.f32 %v1967, %v2193
      %v2314 = vadd.f32 %v1968, %v2198
      %v2315 = vadd.f32 %v1969, %v2203
      %v2316 = vadd.f32 %v1970, %v2208
      %v2317 = vadd.f32 %v1971, %v2213
      %v2318 = vadd.f32 %v1972, %v2218
      %v2319 = vadd.f32 %v1973, %v2223
      %v2320 = vadd.f32 %v1974, %v2228
      %v2321 = vadd.f32 %v1975, %v2233
      %v2322 = vadd.f32 %v1976, %v2238
      %v2323 = vadd.f32 %v1977, %v2243
      %v2324 = vadd.f32 %v1978, %v2248
      %v2325 = vadd.f32 %v1979, %v2253
      %v2326 = vadd.f32 %v1980, %v2258
      %v2327 = vadd.f32 %v1981, %v2263
      %v2328 = vadd.f32 %v1982, %v2268
      %v2329 = vadd.f32 %v1983, %v2273
      %v2330 = vadd.f32 %v1984, %v2278
      %v2331 = vadd.f32 %v1985, %v2283
      %v2332 = vadd.f32 %v1986, %v2288
      %v2333 = vadd.f32 %v1987, %v2293
      %v2334 = vadd.f32 %v1988, %v2298
      %v2335 = vld [vmem:[%s295 + $0x28] sm:$0xff]
      %v2336 = vld [vmem:[%s295 + $0x30] sm:$0xff]
      %v2337 = vld [vmem:[%s295 + $0x38] sm:$0xff]
      %v2338 = vld [vmem:[%s295 + $0x40] sm:$0xff]
      %v2339 = vld [vmem:[%s295 + $0x48] sm:$0xff]
      %v2340 = vld [vmem:[%s295 + $0x50] sm:$0xff]
      %v2341 = vld [vmem:[%s295 + $0x58] sm:$0xff]
      %v2342 = vld [vmem:[%s295 + $0x60] sm:$0xff]
      %v2343 = vld [vmem:[%s295 + $0x68] sm:$0xff]
      %v2344 = vld [vmem:[%s295 + $0x70] sm:$0xff]
      %v2345 = vld [vmem:[%s295 + $0x78] sm:$0xff]
      %v2346 = vld [vmem:[%s295 + $0x80] sm:$0xff]
      %v2347 = vld [vmem:[%s295 + $0x88] sm:$0xff]
      %v2348 = vld [vmem:[%s295 + $0x90] sm:$0xff]
      %v2349 = vld [vmem:[%s295 + $0x98] sm:$0xff]
      %v2350 = vld [vmem:[%s295 + $0xa0] sm:$0xff]
      %v2351 = vld [vmem:[%s295 + $0xa8] sm:$0xff]
      %v2352 = vld [vmem:[%s295 + $0xb0] sm:$0xff]
      %v2353 = vld [vmem:[%s295 + $0xb8] sm:$0xff]
      %v2354 = vld [vmem:[%s295 + $0xc0] sm:$0xff]
      %v2355 = vld [vmem:[%s295 + $0xc8] sm:$0xff]
      %v2356 = vld [vmem:[%s295 + $0xd0] sm:$0xff]
      %v2357 = vld [vmem:[%s295 + $0xd8] sm:$0xff]
      %v2358 = vld [vmem:[%s295 + $0xe0] sm:$0xff]
      %v2359 = vld [vmem:[%s295 + $0xe8] sm:$0xff]
      %v2360 = vld [vmem:[%s295 + $0xf0] sm:$0xff]
      %v2361 = vld [vmem:[%s295 + $0xf8] sm:$0xff]
      %v2362 = vld [vmem:[%s295 + $0x100] sm:$0xf]
      %s2363 = scalar_lea.vmem %s2, 24
      %v2364 = vld [vmem:[%s2363] sm:$0xf]
      %v2366 = vsel %vm369, %v2335, 0
      %v2369 = vsel %vm369, %v2336, 0
      %v2372 = vsel %vm369, %v2337, 0
      %v2375 = vsel %vm369, %v2338, 0
      %v2378 = vsel %vm369, %v2339, 0
      %v2381 = vsel %vm369, %v2340, 0
      %v2384 = vsel %vm369, %v2341, 0
      %v2387 = vsel %vm369, %v2342, 0
      %v2390 = vsel %vm369, %v2343, 0
      %v2393 = vsel %vm369, %v2344, 0
      %v2396 = vsel %vm369, %v2345, 0
      %v2399 = vsel %vm369, %v2346, 0
      %v2402 = vsel %vm369, %v2347, 0
      %v2405 = vsel %vm369, %v2348, 0
      %v2408 = vsel %vm369, %v2349, 0
      %v2411 = vsel %vm369, %v2350, 0
      %v2414 = vsel %vm369, %v2351, 0
      %v2417 = vsel %vm369, %v2352, 0
      %v2420 = vsel %vm369, %v2353, 0
      %v2423 = vsel %vm369, %v2354, 0
      %v2426 = vsel %vm369, %v2355, 0
      %v2429 = vsel %vm369, %v2356, 0
      %v2432 = vsel %vm369, %v2357, 0
      %v2435 = vsel %vm369, %v2358, 0
      %v2438 = vsel %vm369, %v2359, 0
      %v2441 = vsel %vm369, %v2360, 0
      %v2444 = vsel %vm369, %v2361, 0
      %v2447 = vsel %vm369, %v2362, 0
      %v2450 = vsel %vm454, %v2364, 0
      %2452 = vmatprep.subr.mxu0 0.0
      %2453 = vmatpush1.msra.mxu0 %v2450
      %2454 = vmatprep.subr.mxu0 0.0
      %2455 = vmatpush1.msra.mxu0 0.0
      %2456 = vmatprep.subr.mxu0 0.0
      %2457 = vmatpush1.msra.mxu0 0.0
      %2458 = vmatprep.subr.mxu0 0.0
      %2459 = vmatpush1.msra.mxu0 0.0
      %2460 = vmatprep.subr.mxu0 0.0
      %2461 = vmatpush1.msra.mxu0 0.0
      %2462 = vmatprep.subr.mxu0 0.0
      %2463 = vmatpush1.msra.mxu0 0.0
      %2464 = vmatprep.subr.mxu0 0.0
      %2465 = vmatpush1.msra.mxu0 0.0
      %2466 = vmatprep.subr.mxu0 0.0
      %2467 = vmatpush1.msra.mxu0 0.0
      %2468 = vmatprep.subr.mxu0 0.0
      %2469 = vmatpush1.msra.mxu0 0.0
      %2470 = vmatprep.subr.mxu0 0.0
      %2471 = vmatpush1.msra.mxu0 0.0
      %2472 = vmatprep.subr.mxu0 0.0
      %2473 = vmatpush1.msra.mxu0 0.0
      %2474 = vmatprep.subr.mxu0 0.0
      %2475 = vmatpush1.msra.mxu0 0.0
      %2476 = vmatprep.subr.mxu0 0.0
      %2477 = vmatpush1.msra.mxu0 0.0
      %2478 = vmatprep.subr.mxu0 0.0
      %2479 = vmatpush1.msra.mxu0 0.0
      %2480 = vmatprep.subr.mxu0 0.0
      %2481 = vmatpush1.msra.mxu0 0.0
      %2482 = vmatprep.subr.mxu0 0.0
      %2483 = vmatpush1.msra.mxu0 0.0
      %2484 = vmatprep.subr.mxu0 0.0
      %2485 = vmatpush1.msra.mxu0 0.0
      %2486 = vmatprep.subr.mxu0 0.0
      %2487 = vmatpush1.msra.mxu0 0.0
      %2488 = vmatprep.subr.mxu0 0.0
      %2489 = vmatpush1.msra.mxu0 0.0
      %2490 = vmatprep.subr.mxu0 0.0
      %2491 = vmatpush1.msra.mxu0 0.0
      %2492 = vmatprep.subr.mxu0 0.0
      %2493 = vmatpush1.msra.mxu0 0.0
      %2494 = vmatprep.subr.mxu0 0.0
      %2495 = vmatpush1.msra.mxu0 0.0
      %2496 = vmatprep.subr.mxu0 0.0
      %2497 = vmatpush1.msra.mxu0 0.0
      %2498 = vmatprep.subr.mxu0 0.0
      %2499 = vmatpush1.msra.mxu0 0.0
      %2500 = vmatprep.subr.mxu0 0.0
      %2501 = vmatpush1.msra.mxu0 0.0
      %2502 = vmatprep.subr.mxu0 0.0
      %2503 = vmatpush1.msra.mxu0 0.0
      %2504 = vmatprep.subr.mxu0 0.0
      %2505 = vmatpush1.msra.mxu0 0.0
      %2506 = vmatprep.subr.mxu0 0.0
      %2507 = vmatpush1.msra.mxu0 0.0
      %2508 = vmatprep.subr.mxu0 0.0
      %2509 = vmatpush1.msra.mxu0 0.0
      %2510 = vmatprep.subr.mxu0 0.0
      %2511 = vmatpush1.msra.mxu0 0.0
      %2512 = vmatprep.subr.mxu0 0.0
      %2513 = vmatpush1.msra.mxu0 0.0
      %2514 = vmatprep.subr.mxu0 0.0
      %2515 = vmatpush1.msra.mxu0 0.0
      %2516 = vmatprep.mubr.f32.mxu0 0.0
      %2517 = vmatmul.mubr.f32.gmra.mrb[0].mxu0 %v2366
      %v2518 = vpop.f32.mrb[0].mxu0
      %v2519 = vadd.f32 0.0, %v2518
      %v2520 = vpop.f32.mrb[0].mxu0
      %2521 = vmatprep.mubr.f32.mxu0 0.0
      %2522 = vmatmul.mubr.f32.gmra.mrb[0].mxu0 %v2369
      %v2523 = vpop.f32.mrb[0].mxu0
      %v2524 = vadd.f32 0.0, %v2523
      %v2525 = vpop.f32.mrb[0].mxu0
      %2526 = vmatprep.mubr.f32.mxu0 0.0
      %2527 = vmatmul.mubr.f32.gmra.mrb[0].mxu0 %v2372
      %v2528 = vpop.f32.mrb[0].mxu0
      %v2529 = vadd.f32 0.0, %v2528
      %v2530 = vpop.f32.mrb[0].mxu0
      %2531 = vmatprep.mubr.f32.mxu0 0.0
      %2532 = vmatmul.mubr.f32.gmra.mrb[0].mxu0 %v2375
      %v2533 = vpop.f32.mrb[0].mxu0
      %v2534 = vadd.f32 0.0, %v2533
      %v2535 = vpop.f32.mrb[0].mxu0
      %2536 = vmatprep.mubr.f32.mxu0 0.0
      %2537 = vmatmul.mubr.f32.gmra.mrb[0].mxu0 %v2378
      %v2538 = vpop.f32.mrb[0].mxu0
      %v2539 = vadd.f32 0.0, %v2538
      %v2540 = vpop.f32.mrb[0].mxu0
      %2541 = vmatprep.mubr.f32.mxu0 0.0
      %2542 = vmatmul.mubr.f32.gmra.mrb[0].mxu0 %v2381
      %v2543 = vpop.f32.mrb[0].mxu0
      %v2544 = vadd.f32 0.0, %v2543
      %v2545 = vpop.f32.mrb[0].mxu0
      %2546 = vmatprep.mubr.f32.mxu0 0.0
      %2547 = vmatmul.mubr.f32.gmra.mrb[0].mxu0 %v2384
      %v2548 = vpop.f32.mrb[0].mxu0
      %v2549 = vadd.f32 0.0, %v2548
      %v2550 = vpop.f32.mrb[0].mxu0
      %2551 = vmatprep.mubr.f32.mxu0 0.0
      %2552 = vmatmul.mubr.f32.gmra.mrb[0].mxu0 %v2387
      %v2553 = vpop.f32.mrb[0].mxu0
      %v2554 = vadd.f32 0.0, %v2553
      %v2555 = vpop.f32.mrb[0].mxu0
      %2556 = vmatprep.mubr.f32.mxu0 0.0
      %2557 = vmatmul.mubr.f32.gmra.mrb[0].mxu0 %v2390
      %v2558 = vpop.f32.mrb[0].mxu0
      %v2559 = vadd.f32 0.0, %v2558
      %v2560 = vpop.f32.mrb[0].mxu0
      %2561 = vmatprep.mubr.f32.mxu0 0.0
      %2562 = vmatmul.mubr.f32.gmra.mrb[0].mxu0 %v2393
      %v2563 = vpop.f32.mrb[0].mxu0
      %v2564 = vadd.f32 0.0, %v2563
      %v2565 = vpop.f32.mrb[0].mxu0
      %2566 = vmatprep.mubr.f32.mxu0 0.0
      %2567 = vmatmul.mubr.f32.gmra.mrb[0].mxu0 %v2396
      %v2568 = vpop.f32.mrb[0].mxu0
      %v2569 = vadd.f32 0.0, %v2568
      %v2570 = vpop.f32.mrb[0].mxu0
      %2571 = vmatprep.mubr.f32.mxu0 0.0
      %2572 = vmatmul.mubr.f32.gmra.mrb[0].mxu0 %v2399
      %v2573 = vpop.f32.mrb[0].mxu0
      %v2574 = vadd.f32 0.0, %v2573
      %v2575 = vpop.f32.mrb[0].mxu0
      %2576 = vmatprep.mubr.f32.mxu0 0.0
      %2577 = vmatmul.mubr.f32.gmra.mrb[0].mxu0 %v2402
      %v2578 = vpop.f32.mrb[0].mxu0
      %v2579 = vadd.f32 0.0, %v2578
      %v2580 = vpop.f32.mrb[0].mxu0
      %2581 = vmatprep.mubr.f32.mxu0 0.0
      %2582 = vmatmul.mubr.f32.gmra.mrb[0].mxu0 %v2405
      %v2583 = vpop.f32.mrb[0].mxu0
      %v2584 = vadd.f32 0.0, %v2583
      %v2585 = vpop.f32.mrb[0].mxu0
      %2586 = vmatprep.mubr.f32.mxu0 0.0
      %2587 = vmatmul.mubr.f32.gmra.mrb[0].mxu0 %v2408
      %v2588 = vpop.f32.mrb[0].mxu0
      %v2589 = vadd.f32 0.0, %v2588
      %v2590 = vpop.f32.mrb[0].mxu0
      %2591 = vmatprep.mubr.f32.mxu0 0.0
      %2592 = vmatmul.mubr.f32.gmra.mrb[0].mxu0 %v2411
      %v2593 = vpop.f32.mrb[0].mxu0
      %v2594 = vadd.f32 0.0, %v2593
      %v2595 = vpop.f32.mrb[0].mxu0
      %2596 = vmatprep.mubr.f32.mxu0 0.0
      %2597 = vmatmul.mubr.f32.gmra.mrb[0].mxu0 %v2414
      %v2598 = vpop.f32.mrb[0].mxu0
      %v2599 = vadd.f32 0.0, %v2598
      %v2600 = vpop.f32.mrb[0].mxu0
      %2601 = vmatprep.mubr.f32.mxu0 0.0
      %2602 = vmatmul.mubr.f32.gmra.mrb[0].mxu0 %v2417
      %v2603 = vpop.f32.mrb[0].mxu0
      %v2604 = vadd.f32 0.0, %v2603
      %v2605 = vpop.f32.mrb[0].mxu0
      %2606 = vmatprep.mubr.f32.mxu0 0.0
      %2607 = vmatmul.mubr.f32.gmra.mrb[0].mxu0 %v2420
      %v2608 = vpop.f32.mrb[0].mxu0
      %v2609 = vadd.f32 0.0, %v2608
      %v2610 = vpop.f32.mrb[0].mxu0
      %2611 = vmatprep.mubr.f32.mxu0 0.0
      %2612 = vmatmul.mubr.f32.gmra.mrb[0].mxu0 %v2423
      %v2613 = vpop.f32.mrb[0].mxu0
      %v2614 = vadd.f32 0.0, %v2613
      %v2615 = vpop.f32.mrb[0].mxu0
      %2616 = vmatprep.mubr.f32.mxu0 0.0
      %2617 = vmatmul.mubr.f32.gmra.mrb[0].mxu0 %v2426
      %v2618 = vpop.f32.mrb[0].mxu0
      %v2619 = vadd.f32 0.0, %v2618
      %v2620 = vpop.f32.mrb[0].mxu0
      %2621 = vmatprep.mubr.f32.mxu0 0.0
      %2622 = vmatmul.mubr.f32.gmra.mrb[0].mxu0 %v2429
      %v2623 = vpop.f32.mrb[0].mxu0
      %v2624 = vadd.f32 0.0, %v2623
      %v2625 = vpop.f32.mrb[0].mxu0
      %2626 = vmatprep.mubr.f32.mxu0 0.0
      %2627 = vmatmul.mubr.f32.gmra.mrb[0].mxu0 %v2432
      %v2628 = vpop.f32.mrb[0].mxu0
      %v2629 = vadd.f32 0.0, %v2628
      %v2630 = vpop.f32.mrb[0].mxu0
      %2631 = vmatprep.mubr.f32.mxu0 0.0
      %2632 = vmatmul.mubr.f32.gmra.mrb[0].mxu0 %v2435
      %v2633 = vpop.f32.mrb[0].mxu0
      %v2634 = vadd.f32 0.0, %v2633
      %v2635 = vpop.f32.mrb[0].mxu0
      %2636 = vmatprep.mubr.f32.mxu0 0.0
      %2637 = vmatmul.mubr.f32.gmra.mrb[0].mxu0 %v2438
      %v2638 = vpop.f32.mrb[0].mxu0
      %v2639 = vadd.f32 0.0, %v2638
      %v2640 = vpop.f32.mrb[0].mxu0
      %2641 = vmatprep.mubr.f32.mxu0 0.0
      %2642 = vmatmul.mubr.f32.gmra.mrb[0].mxu0 %v2441
      %v2643 = vpop.f32.mrb[0].mxu0
      %v2644 = vadd.f32 0.0, %v2643
      %v2645 = vpop.f32.mrb[0].mxu0
      %2646 = vmatprep.mubr.f32.mxu0 0.0
      %2647 = vmatmul.mubr.f32.gmra.mrb[0].mxu0 %v2444
      %v2648 = vpop.f32.mrb[0].mxu0
      %v2649 = vpop.f32.mrb[0].mxu0
      %2650 = vmatprep.mubr.f32.mxu0 0.0
      %2651 = vmatmul.mubr.f32.gmra.mrb[0].mxu0 %v2447
      %v2652 = vpop.f32.mrb[0].mxu0
      %v2653 = vpop.f32.mrb[0].mxu0
      %2654 = vdwg.mxu0
      %v2655 = vadd.f32 %v2309, %v2519
      %v2656 = vadd.f32 %v2310, %v2524
      %v2657 = vadd.f32 %v2311, %v2529
      %v2658 = vadd.f32 %v2312, %v2534
      %v2659 = vadd.f32 %v2313, %v2539
      %v2660 = vadd.f32 %v2314, %v2544
      %v2661 = vadd.f32 %v2315, %v2549
      %v2662 = vadd.f32 %v2316, %v2554
      %v2663 = vadd.f32 %v2317, %v2559
      %v2664 = vadd.f32 %v2318, %v2564
      %v2665 = vadd.f32 %v2319, %v2569
      %v2666 = vadd.f32 %v2320, %v2574
      %v2667 = vadd.f32 %v2321, %v2579
      %v2668 = vadd.f32 %v2322, %v2584
      %v2669 = vadd.f32 %v2323, %v2589
      %v2670 = vadd.f32 %v2324, %v2594
      %v2671 = vadd.f32 %v2325, %v2599
      %v2672 = vadd.f32 %v2326, %v2604
      %v2673 = vadd.f32 %v2327, %v2609
      %v2674 = vadd.f32 %v2328, %v2614
      %v2675 = vadd.f32 %v2329, %v2619
      %v2676 = vadd.f32 %v2330, %v2624
      %v2677 = vadd.f32 %v2331, %v2629
      %v2678 = vadd.f32 %v2332, %v2634
      %v2679 = vadd.f32 %v2333, %v2639
      %v2680 = vadd.f32 %v2334, %v2644
      %v2681 = vld [vmem:[%s295 + $0x29] sm:$0xff]
      %v2682 = vld [vmem:[%s295 + $0x31] sm:$0xff]
      %v2683 = vld [vmem:[%s295 + $0x39] sm:$0xff]
      %v2684 = vld [vmem:[%s295 + $0x41] sm:$0xff]
      %v2685 = vld [vmem:[%s295 + $0x49] sm:$0xff]
      %v2686 = vld [vmem:[%s295 + $0x51] sm:$0xff]
      %v2687 = vld [vmem:[%s295 + $0x59] sm:$0xff]
      %v2688 = vld [vmem:[%s295 + $0x61] sm:$0xff]
      %v2689 = vld [vmem:[%s295 + $0x69] sm:$0xff]
      %v2690 = vld [vmem:[%s295 + $0x71] sm:$0xff]
      %v2691 = vld [vmem:[%s295 + $0x79] sm:$0xff]
      %v2692 = vld [vmem:[%s295 + $0x81] sm:$0xff]
      %v2693 = vld [vmem:[%s295 + $0x89] sm:$0xff]
      %v2694 = vld [vmem:[%s295 + $0x91] sm:$0xff]
      %v2695 = vld [vmem:[%s295 + $0x99] sm:$0xff]
      %v2696 = vld [vmem:[%s295 + $0xa1] sm:$0xff]
      %v2697 = vld [vmem:[%s295 + $0xa9] sm:$0xff]
      %v2698 = vld [vmem:[%s295 + $0xb1] sm:$0xff]
      %v2699 = vld [vmem:[%s295 + $0xb9] sm:$0xff]
      %v2700 = vld [vmem:[%s295 + $0xc1] sm:$0xff]
      %v2701 = vld [vmem:[%s295 + $0xc9] sm:$0xff]
      %v2702 = vld [vmem:[%s295 + $0xd1] sm:$0xff]
      %v2703 = vld [vmem:[%s295 + $0xd9] sm:$0xff]
      %v2704 = vld [vmem:[%s295 + $0xe1] sm:$0xff]
      %v2705 = vld [vmem:[%s295 + $0xe9] sm:$0xff]
      %v2706 = vld [vmem:[%s295 + $0xf1] sm:$0xff]
      %v2707 = vld [vmem:[%s295 + $0xf9] sm:$0xff]
      %v2708 = vld [vmem:[%s295 + $0x101] sm:$0xf]
      %s2709 = scalar_lea.vmem %s2, 28
      %v2710 = vld [vmem:[%s2709] sm:$0xf]
      %v2712 = vsel %vm369, %v2681, 0
      %v2715 = vsel %vm369, %v2682, 0
      %v2718 = vsel %vm369, %v2683, 0
      %v2721 = vsel %vm369, %v2684, 0
      %v2724 = vsel %vm369, %v2685, 0
      %v2727 = vsel %vm369, %v2686, 0
      %v2730 = vsel %vm369, %v2687, 0
      %v2733 = vsel %vm369, %v2688, 0
      %v2736 = vsel %vm369, %v2689, 0
      %v2739 = vsel %vm369, %v2690, 0
      %v2742 = vsel %vm369, %v2691, 0
      %v2745 = vsel %vm369, %v2692, 0
      %v2748 = vsel %vm369, %v2693, 0
      %v2751 = vsel %vm369, %v2694, 0
      %v2754 = vsel %vm369, %v2695, 0
      %v2757 = vsel %vm369, %v2696, 0
      %v2760 = vsel %vm369, %v2697, 0
      %v2763 = vsel %vm369, %v2698, 0
      %v2766 = vsel %vm369, %v2699, 0
      %v2769 = vsel %vm369, %v2700, 0
      %v2772 = vsel %vm369, %v2701, 0
      %v2775 = vsel %vm369, %v2702, 0
      %v2778 = vsel %vm369, %v2703, 0
      %v2781 = vsel %vm369, %v2704, 0
      %v2784 = vsel %vm369, %v2705, 0
      %v2787 = vsel %vm369, %v2706, 0
      %v2790 = vsel %vm369, %v2707, 0
      %v2793 = vsel %vm369, %v2708, 0
      %v2796 = vsel %vm454, %v2710, 0
      %2798 = vmatprep.subr.mxu0 0.0
      %2799 = vmatpush1.msra.mxu0 %v2796
      %2800 = vmatprep.subr.mxu0 0.0
      %2801 = vmatpush1.msra.mxu0 0.0
      %2802 = vmatprep.subr.mxu0 0.0
      %2803 = vmatpush1.msra.mxu0 0.0
      %2804 = vmatprep.subr.mxu0 0.0
      %2805 = vmatpush1.msra.mxu0 0.0
      %2806 = vmatprep.subr.mxu0 0.0
      %2807 = vmatpush1.msra.mxu0 0.0
      %2808 = vmatprep.subr.mxu0 0.0
      %2809 = vmatpush1.msra.mxu0 0.0
      %2810 = vmatprep.subr.mxu0 0.0
      %2811 = vmatpush1.msra.mxu0 0.0
      %2812 = vmatprep.subr.mxu0 0.0
      %2813 = vmatpush1.msra.mxu0 0.0
      %2814 = vmatprep.subr.mxu0 0.0
      %2815 = vmatpush1.msra.mxu0 0.0
      %2816 = vmatprep.subr.mxu0 0.0
      %2817 = vmatpush1.msra.mxu0 0.0
      %2818 = vmatprep.subr.mxu0 0.0
      %2819 = vmatpush1.msra.mxu0 0.0
      %2820 = vmatprep.subr.mxu0 0.0
      %2821 = vmatpush1.msra.mxu0 0.0
      %2822 = vmatprep.subr.mxu0 0.0
      %2823 = vmatpush1.msra.mxu0 0.0
      %2824 = vmatprep.subr.mxu0 0.0
      %2825 = vmatpush1.msra.mxu0 0.0
      %2826 = vmatprep.subr.mxu0 0.0
      %2827 = vmatpush1.msra.mxu0 0.0
      %2828 = vmatprep.subr.mxu0 0.0
      %2829 = vmatpush1.msra.mxu0 0.0
      %2830 = vmatprep.subr.mxu0 0.0
      %2831 = vmatpush1.msra.mxu0 0.0
      %2832 = vmatprep.subr.mxu0 0.0
      %2833 = vmatpush1.msra.mxu0 0.0
      %2834 = vmatprep.subr.mxu0 0.0
      %2835 = vmatpush1.msra.mxu0 0.0
      %2836 = vmatprep.subr.mxu0 0.0
      %2837 = vmatpush1.msra.mxu0 0.0
      %2838 = vmatprep.subr.mxu0 0.0
      %2839 = vmatpush1.msra.mxu0 0.0
      %2840 = vmatprep.subr.mxu0 0.0
      %2841 = vmatpush1.msra.mxu0 0.0
      %2842 = vmatprep.subr.mxu0 0.0
      %2843 = vmatpush1.msra.mxu0 0.0
      %2844 = vmatprep.subr.mxu0 0.0
      %2845 = vmatpush1.msra.mxu0 0.0
      %2846 = vmatprep.subr.mxu0 0.0
      %2847 = vmatpush1.msra.mxu0 0.0
      %2848 = vmatprep.subr.mxu0 0.0
      %2849 = vmatpush1.msra.mxu0 0.0
      %2850 = vmatprep.subr.mxu0 0.0
      %2851 = vmatpush1.msra.mxu0 0.0
      %2852 = vmatprep.subr.mxu0 0.0
      %2853 = vmatpush1.msra.mxu0 0.0
      %2854 = vmatprep.subr.mxu0 0.0
      %2855 = vmatpush1.msra.mxu0 0.0
      %2856 = vmatprep.subr.mxu0 0.0
      %2857 = vmatpush1.msra.mxu0 0.0
      %2858 = vmatprep.subr.mxu0 0.0
      %2859 = vmatpush1.msra.mxu0 0.0
      %2860 = vmatprep.subr.mxu0 0.0
      %2861 = vmatpush1.msra.mxu0 0.0
      %2862 = vmatprep.mubr.f32.mxu0 0.0
      %2863 = vmatmul.mubr.f32.gmra.mrb[0].mxu0 %v2712
      %v2864 = vpop.f32.mrb[0].mxu0
      %v2865 = vadd.f32 0.0, %v2864
      %v2866 = vpop.f32.mrb[0].mxu0
      %2867 = vmatprep.mubr.f32.mxu0 0.0
      %2868 = vmatmul.mubr.f32.gmra.mrb[0].mxu0 %v2715
      %v2869 = vpop.f32.mrb[0].mxu0
      %v2870 = vadd.f32 0.0, %v2869
      %v2871 = vpop.f32.mrb[0].mxu0
      %2872 = vmatprep.mubr.f32.mxu0 0.0
      %2873 = vmatmul.mubr.f32.gmra.mrb[0].mxu0 %v2718
      %v2874 = vpop.f32.mrb[0].mxu0
      %v2875 = vadd.f32 0.0, %v2874
      %v2876 = vpop.f32.mrb[0].mxu0
      %2877 = vmatprep.mubr.f32.mxu0 0.0
      %2878 = vmatmul.mubr.f32.gmra.mrb[0].mxu0 %v2721
      %v2879 = vpop.f32.mrb[0].mxu0
      %v2880 = vadd.f32 0.0, %v2879
      %v2881 = vpop.f32.mrb[0].mxu0
      %2882 = vmatprep.mubr.f32.mxu0 0.0
      %2883 = vmatmul.mubr.f32.gmra.mrb[0].mxu0 %v2724
      %v2884 = vpop.f32.mrb[0].mxu0
      %v2885 = vadd.f32 0.0, %v2884
      %v2886 = vpop.f32.mrb[0].mxu0
      %2887 = vmatprep.mubr.f32.mxu0 0.0
      %2888 = vmatmul.mubr.f32.gmra.mrb[0].mxu0 %v2727
      %v2889 = vpop.f32.mrb[0].mxu0
      %v2890 = vadd.f32 0.0, %v2889
      %v2891 = vpop.f32.mrb[0].mxu0
      %2892 = vmatprep.mubr.f32.mxu0 0.0
      %2893 = vmatmul.mubr.f32.gmra.mrb[0].mxu0 %v2730
      %v2894 = vpop.f32.mrb[0].mxu0
      %v2895 = vadd.f32 0.0, %v2894
      %v2896 = vpop.f32.mrb[0].mxu0
      %2897 = vmatprep.mubr.f32.mxu0 0.0
      %2898 = vmatmul.mubr.f32.gmra.mrb[0].mxu0 %v2733
      %v2899 = vpop.f32.mrb[0].mxu0
      %v2900 = vadd.f32 0.0, %v2899
      %v2901 = vpop.f32.mrb[0].mxu0
      %2902 = vmatprep.mubr.f32.mxu0 0.0
      %2903 = vmatmul.mubr.f32.gmra.mrb[0].mxu0 %v2736
      %v2904 = vpop.f32.mrb[0].mxu0
      %v2905 = vadd.f32 0.0, %v2904
      %v2906 = vpop.f32.mrb[0].mxu0
      %2907 = vmatprep.mubr.f32.mxu0 0.0
      %2908 = vmatmul.mubr.f32.gmra.mrb[0].mxu0 %v2739
      %v2909 = vpop.f32.mrb[0].mxu0
      %v2910 = vadd.f32 0.0, %v2909
      %v2911 = vpop.f32.mrb[0].mxu0
      %2912 = vmatprep.mubr.f32.mxu0 0.0
      %2913 = vmatmul.mubr.f32.gmra.mrb[0].mxu0 %v2742
      %v2914 = vpop.f32.mrb[0].mxu0
      %v2915 = vadd.f32 0.0, %v2914
      %v2916 = vpop.f32.mrb[0].mxu0
      %2917 = vmatprep.mubr.f32.mxu0 0.0
      %2918 = vmatmul.mubr.f32.gmra.mrb[0].mxu0 %v2745
      %v2919 = vpop.f32.mrb[0].mxu0
      %v2920 = vadd.f32 0.0, %v2919
      %v2921 = vpop.f32.mrb[0].mxu0
      %2922 = vmatprep.mubr.f32.mxu0 0.0
      %2923 = vmatmul.mubr.f32.gmra.mrb[0].mxu0 %v2748
      %v2924 = vpop.f32.mrb[0].mxu0
      %v2925 = vadd.f32 0.0, %v2924
      %v2926 = vpop.f32.mrb[0].mxu0
      %2927 = vmatprep.mubr.f32.mxu0 0.0
      %2928 = vmatmul.mubr.f32.gmra.mrb[0].mxu0 %v2751
      %v2929 = vpop.f32.mrb[0].mxu0
      %v2930 = vadd.f32 0.0, %v2929
      %v2931 = vpop.f32.mrb[0].mxu0
      %2932 = vmatprep.mubr.f32.mxu0 0.0
      %2933 = vmatmul.mubr.f32.gmra.mrb[0].mxu0 %v2754
      %v2934 = vpop.f32.mrb[0].mxu0
      %v2935 = vadd.f32 0.0, %v2934
      %v2936 = vpop.f32.mrb[0].mxu0
      %2937 = vmatprep.mubr.f32.mxu0 0.0
      %2938 = vmatmul.mubr.f32.gmra.mrb[0].mxu0 %v2757
      %v2939 = vpop.f32.mrb[0].mxu0
      %v2940 = vadd.f32 0.0, %v2939
      %v2941 = vpop.f32.mrb[0].mxu0
      %2942 = vmatprep.mubr.f32.mxu0 0.0
      %2943 = vmatmul.mubr.f32.gmra.mrb[0].mxu0 %v2760
      %v2944 = vpop.f32.mrb[0].mxu0
      %v2945 = vadd.f32 0.0, %v2944
      %v2946 = vpop.f32.mrb[0].mxu0
      %2947 = vmatprep.mubr.f32.mxu0 0.0
      %2948 = vmatmul.mubr.f32.gmra.mrb[0].mxu0 %v2763
      %v2949 = vpop.f32.mrb[0].mxu0
      %v2950 = vadd.f32 0.0, %v2949
      %v2951 = vpop.f32.mrb[0].mxu0
      %2952 = vmatprep.mubr.f32.mxu0 0.0
      %2953 = vmatmul.mubr.f32.gmra.mrb[0].mxu0 %v2766
      %v2954 = vpop.f32.mrb[0].mxu0
      %v2955 = vadd.f32 0.0, %v2954
      %v2956 = vpop.f32.mrb[0].mxu0
      %2957 = vmatprep.mubr.f32.mxu0 0.0
      %2958 = vmatmul.mubr.f32.gmra.mrb[0].mxu0 %v2769
      %v2959 = vpop.f32.mrb[0].mxu0
      %v2960 = vadd.f32 0.0, %v2959
      %v2961 = vpop.f32.mrb[0].mxu0
      %2962 = vmatprep.mubr.f32.mxu0 0.0
      %2963 = vmatmul.mubr.f32.gmra.mrb[0].mxu0 %v2772
      %v2964 = vpop.f32.mrb[0].mxu0
      %v2965 = vadd.f32 0.0, %v2964
      %v2966 = vpop.f32.mrb[0].mxu0
      %2967 = vmatprep.mubr.f32.mxu0 0.0
      %2968 = vmatmul.mubr.f32.gmra.mrb[0].mxu0 %v2775
      %v2969 = vpop.f32.mrb[0].mxu0
      %v2970 = vadd.f32 0.0, %v2969
      %v2971 = vpop.f32.mrb[0].mxu0
      %2972 = vmatprep.mubr.f32.mxu0 0.0
      %2973 = vmatmul.mubr.f32.gmra.mrb[0].mxu0 %v2778
      %v2974 = vpop.f32.mrb[0].mxu0
      %v2975 = vadd.f32 0.0, %v2974
      %v2976 = vpop.f32.mrb[0].mxu0
      %2977 = vmatprep.mubr.f32.mxu0 0.0
      %2978 = vmatmul.mubr.f32.gmra.mrb[0].mxu0 %v2781
      %v2979 = vpop.f32.mrb[0].mxu0
      %v2980 = vadd.f32 0.0, %v2979
      %v2981 = vpop.f32.mrb[0].mxu0
      %2982 = vmatprep.mubr.f32.mxu0 0.0
      %2983 = vmatmul.mubr.f32.gmra.mrb[0].mxu0 %v2784
      %v2984 = vpop.f32.mrb[0].mxu0
      %v2985 = vadd.f32 0.0, %v2984
      %v2986 = vpop.f32.mrb[0].mxu0
      %2987 = vmatprep.mubr.f32.mxu0 0.0
      %2988 = vmatmul.mubr.f32.gmra.mrb[0].mxu0 %v2787
      %v2989 = vpop.f32.mrb[0].mxu0
      %v2990 = vadd.f32 0.0, %v2989
      %v2991 = vpop.f32.mrb[0].mxu0
      %2992 = vmatprep.mubr.f32.mxu0 0.0
      %2993 = vmatmul.mubr.f32.gmra.mrb[0].mxu0 %v2790
      %v2994 = vpop.f32.mrb[0].mxu0
      %v2995 = vpop.f32.mrb[0].mxu0
      %2996 = vmatprep.mubr.f32.mxu0 0.0
      %2997 = vmatmul.mubr.f32.gmra.mrb[0].mxu0 %v2793
      %v2998 = vpop.f32.mrb[0].mxu0
      %v2999 = vpop.f32.mrb[0].mxu0
      %3000 = vdwg.mxu0
      %v3001 = vadd.f32 %v2655, %v2865
      %v3002 = vadd.f32 %v2656, %v2870
      %v3003 = vadd.f32 %v2657, %v2875
      %v3004 = vadd.f32 %v2658, %v2880
      %v3005 = vadd.f32 %v2659, %v2885
      %v3006 = vadd.f32 %v2660, %v2890
      %v3007 = vadd.f32 %v2661, %v2895
      %v3008 = vadd.f32 %v2662, %v2900
      %v3009 = vadd.f32 %v2663, %v2905
      %v3010 = vadd.f32 %v2664, %v2910
      %v3011 = vadd.f32 %v2665, %v2915
      %v3012 = vadd.f32 %v2666, %v2920
      %v3013 = vadd.f32 %v2667, %v2925
      %v3014 = vadd.f32 %v2668, %v2930
      %v3015 = vadd.f32 %v2669, %v2935
      %v3016 = vadd.f32 %v2670, %v2940
      %v3017 = vadd.f32 %v2671, %v2945
      %v3018 = vadd.f32 %v2672, %v2950
      %v3019 = vadd.f32 %v2673, %v2955
      %v3020 = vadd.f32 %v2674, %v2960
      %v3021 = vadd.f32 %v2675, %v2965
      %v3022 = vadd.f32 %v2676, %v2970
      %v3023 = vadd.f32 %v2677, %v2975
      %v3024 = vadd.f32 %v2678, %v2980
      %v3025 = vadd.f32 %v2679, %v2985
      %v3026 = vadd.f32 %v2680, %v2990
      %v3027 = vld [vmem:[%s295 + $0x2a] sm:$0xff]
      %v3028 = vld [vmem:[%s295 + $0x32] sm:$0xff]
      %v3029 = vld [vmem:[%s295 + $0x3a] sm:$0xff]
      %v3030 = vld [vmem:[%s295 + $0x42] sm:$0xff]
      %v3031 = vld [vmem:[%s295 + $0x4a] sm:$0xff]
      %v3032 = vld [vmem:[%s295 + $0x52] sm:$0xff]
      %v3033 = vld [vmem:[%s295 + $0x5a] sm:$0xff]
      %v3034 = vld [vmem:[%s295 + $0x62] sm:$0xff]
      %v3035 = vld [vmem:[%s295 + $0x6a] sm:$0xff]
      %v3036 = vld [vmem:[%s295 + $0x72] sm:$0xff]
      %v3037 = vld [vmem:[%s295 + $0x7a] sm:$0xff]
      %v3038 = vld [vmem:[%s295 + $0x82] sm:$0xff]
      %v3039 = vld [vmem:[%s295 + $0x8a] sm:$0xff]
      %v3040 = vld [vmem:[%s295 + $0x92] sm:$0xff]
      %v3041 = vld [vmem:[%s295 + $0x9a] sm:$0xff]
      %v3042 = vld [vmem:[%s295 + $0xa2] sm:$0xff]
      %v3043 = vld [vmem:[%s295 + $0xaa] sm:$0xff]
      %v3044 = vld [vmem:[%s295 + $0xb2] sm:$0xff]
      %v3045 = vld [vmem:[%s295 + $0xba] sm:$0xff]
      %v3046 = vld [vmem:[%s295 + $0xc2] sm:$0xff]
      %v3047 = vld [vmem:[%s295 + $0xca] sm:$0xff]
      %v3048 = vld [vmem:[%s295 + $0xd2] sm:$0xff]
      %v3049 = vld [vmem:[%s295 + $0xda] sm:$0xff]
      %v3050 = vld [vmem:[%s295 + $0xe2] sm:$0xff]
      %v3051 = vld [vmem:[%s295 + $0xea] sm:$0xff]
      %v3052 = vld [vmem:[%s295 + $0xf2] sm:$0xff]
      %v3053 = vld [vmem:[%s295 + $0xfa] sm:$0xff]
      %v3054 = vld [vmem:[%s295 + $0x102] sm:$0xf]
      %s3055 = scalar_lea.vmem %s2, 32
      %v3056 = vld [vmem:[%s3055] sm:$0xf]
      %v3058 = vsel %vm369, %v3027, 0
      %v3061 = vsel %vm369, %v3028, 0
      %v3064 = vsel %vm369, %v3029, 0
      %v3067 = vsel %vm369, %v3030, 0
      %v3070 = vsel %vm369, %v3031, 0
      %v3073 = vsel %vm369, %v3032, 0
      %v3076 = vsel %vm369, %v3033, 0
      %v3079 = vsel %vm369, %v3034, 0
      %v3082 = vsel %vm369, %v3035, 0
      %v3085 = vsel %vm369, %v3036, 0
      %v3088 = vsel %vm369, %v3037, 0
      %v3091 = vsel %vm369, %v3038, 0
      %v3094 = vsel %vm369, %v3039, 0
      %v3097 = vsel %vm369, %v3040, 0
      %v3100 = vsel %vm369, %v3041, 0
      %v3103 = vsel %vm369, %v3042, 0
      %v3106 = vsel %vm369, %v3043, 0
      %v3109 = vsel %vm369, %v3044, 0
      %v3112 = vsel %vm369, %v3045, 0
      %v3115 = vsel %vm369, %v3046, 0
      %v3118 = vsel %vm369, %v3047, 0
      %v3121 = vsel %vm369, %v3048, 0
      %v3124 = vsel %vm369, %v3049, 0
      %v3127 = vsel %vm369, %v3050, 0
      %v3130 = vsel %vm369, %v3051, 0
      %v3133 = vsel %vm369, %v3052, 0
      %v3136 = vsel %vm369, %v3053, 0
      %v3139 = vsel %vm369, %v3054, 0
      %v3142 = vsel %vm454, %v3056, 0
      %3144 = vmatprep.subr.mxu0 0.0
      %3145 = vmatpush1.msra.mxu0 %v3142
      %3146 = vmatprep.subr.mxu0 0.0
      %3147 = vmatpush1.msra.mxu0 0.0
      %3148 = vmatprep.subr.mxu0 0.0
      %3149 = vmatpush1.msra.mxu0 0.0
      %3150 = vmatprep.subr.mxu0 0.0
      %3151 = vmatpush1.msra.mxu0 0.0
      %3152 = vmatprep.subr.mxu0 0.0
      %3153 = vmatpush1.msra.mxu0 0.0
      %3154 = vmatprep.subr.mxu0 0.0
      %3155 = vmatpush1.msra.mxu0 0.0
      %3156 = vmatprep.subr.mxu0 0.0
      %3157 = vmatpush1.msra.mxu0 0.0
      %3158 = vmatprep.subr.mxu0 0.0
      %3159 = vmatpush1.msra.mxu0 0.0
      %3160 = vmatprep.subr.mxu0 0.0
      %3161 = vmatpush1.msra.mxu0 0.0
      %3162 = vmatprep.subr.mxu0 0.0
      %3163 = vmatpush1.msra.mxu0 0.0
      %3164 = vmatprep.subr.mxu0 0.0
      %3165 = vmatpush1.msra.mxu0 0.0
      %3166 = vmatprep.subr.mxu0 0.0
      %3167 = vmatpush1.msra.mxu0 0.0
      %3168 = vmatprep.subr.mxu0 0.0
      %3169 = vmatpush1.msra.mxu0 0.0
      %3170 = vmatprep.subr.mxu0 0.0
      %3171 = vmatpush1.msra.mxu0 0.0
      %3172 = vmatprep.subr.mxu0 0.0
      %3173 = vmatpush1.msra.mxu0 0.0
      %3174 = vmatprep.subr.mxu0 0.0
      %3175 = vmatpush1.msra.mxu0 0.0
      %3176 = vmatprep.subr.mxu0 0.0
      %3177 = vmatpush1.msra.mxu0 0.0
      %3178 = vmatprep.subr.mxu0 0.0
      %3179 = vmatpush1.msra.mxu0 0.0
      %3180 = vmatprep.subr.mxu0 0.0
      %3181 = vmatpush1.msra.mxu0 0.0
      %3182 = vmatprep.subr.mxu0 0.0
      %3183 = vmatpush1.msra.mxu0 0.0
      %3184 = vmatprep.subr.mxu0 0.0
      %3185 = vmatpush1.msra.mxu0 0.0
      %3186 = vmatprep.subr.mxu0 0.0
      %3187 = vmatpush1.msra.mxu0 0.0
      %3188 = vmatprep.subr.mxu0 0.0
      %3189 = vmatpush1.msra.mxu0 0.0
      %3190 = vmatprep.subr.mxu0 0.0
      %3191 = vmatpush1.msra.mxu0 0.0
      %3192 = vmatprep.subr.mxu0 0.0
      %3193 = vmatpush1.msra.mxu0 0.0
      %3194 = vmatprep.subr.mxu0 0.0
      %3195 = vmatpush1.msra.mxu0 0.0
      %3196 = vmatprep.subr.mxu0 0.0
      %3197 = vmatpush1.msra.mxu0 0.0
      %3198 = vmatprep.subr.mxu0 0.0
      %3199 = vmatpush1.msra.mxu0 0.0
      %3200 = vmatprep.subr.mxu0 0.0
      %3201 = vmatpush1.msra.mxu0 0.0
      %3202 = vmatprep.subr.mxu0 0.0
      %3203 = vmatpush1.msra.mxu0 0.0
      %3204 = vmatprep.subr.mxu0 0.0
      %3205 = vmatpush1.msra.mxu0 0.0
      %3206 = vmatprep.subr.mxu0 0.0
      %3207 = vmatpush1.msra.mxu0 0.0
      %3208 = vmatprep.mubr.f32.mxu0 0.0
      %3209 = vmatmul.mubr.f32.gmra.mrb[0].mxu0 %v3058
      %v3210 = vpop.f32.mrb[0].mxu0
      %v3211 = vadd.f32 0.0, %v3210
      %v3212 = vpop.f32.mrb[0].mxu0
      %3213 = vmatprep.mubr.f32.mxu0 0.0
      %3214 = vmatmul.mubr.f32.gmra.mrb[0].mxu0 %v3061
      %v3215 = vpop.f32.mrb[0].mxu0
      %v3216 = vadd.f32 0.0, %v3215
      %v3217 = vpop.f32.mrb[0].mxu0
      %3218 = vmatprep.mubr.f32.mxu0 0.0
      %3219 = vmatmul.mubr.f32.gmra.mrb[0].mxu0 %v3064
      %v3220 = vpop.f32.mrb[0].mxu0
      %v3221 = vadd.f32 0.0, %v3220
      %v3222 = vpop.f32.mrb[0].mxu0
      %3223 = vmatprep.mubr.f32.mxu0 0.0
      %3224 = vmatmul.mubr.f32.gmra.mrb[0].mxu0 %v3067
      %v3225 = vpop.f32.mrb[0].mxu0
      %v3226 = vadd.f32 0.0, %v3225
      %v3227 = vpop.f32.mrb[0].mxu0
      %3228 = vmatprep.mubr.f32.mxu0 0.0
      %3229 = vmatmul.mubr.f32.gmra.mrb[0].mxu0 %v3070
      %v3230 = vpop.f32.mrb[0].mxu0
      %v3231 = vadd.f32 0.0, %v3230
      %v3232 = vpop.f32.mrb[0].mxu0
      %3233 = vmatprep.mubr.f32.mxu0 0.0
      %3234 = vmatmul.mubr.f32.gmra.mrb[0].mxu0 %v3073
      %v3235 = vpop.f32.mrb[0].mxu0
      %v3236 = vadd.f32 0.0, %v3235
      %v3237 = vpop.f32.mrb[0].mxu0
      %3238 = vmatprep.mubr.f32.mxu0 0.0
      %3239 = vmatmul.mubr.f32.gmra.mrb[0].mxu0 %v3076
      %v3240 = vpop.f32.mrb[0].mxu0
      %v3241 = vadd.f32 0.0, %v3240
      %v3242 = vpop.f32.mrb[0].mxu0
      %3243 = vmatprep.mubr.f32.mxu0 0.0
      %3244 = vmatmul.mubr.f32.gmra.mrb[0].mxu0 %v3079
      %v3245 = vpop.f32.mrb[0].mxu0
      %v3246 = vadd.f32 0.0, %v3245
      %v3247 = vpop.f32.mrb[0].mxu0
      %3248 = vmatprep.mubr.f32.mxu0 0.0
      %3249 = vmatmul.mubr.f32.gmra.mrb[0].mxu0 %v3082
      %v3250 = vpop.f32.mrb[0].mxu0
      %v3251 = vadd.f32 0.0, %v3250
      %v3252 = vpop.f32.mrb[0].mxu0
      %3253 = vmatprep.mubr.f32.mxu0 0.0
      %3254 = vmatmul.mubr.f32.gmra.mrb[0].mxu0 %v3085
      %v3255 = vpop.f32.mrb[0].mxu0
      %v3256 = vadd.f32 0.0, %v3255
      %v3257 = vpop.f32.mrb[0].mxu0
      %3258 = vmatprep.mubr.f32.mxu0 0.0
      %3259 = vmatmul.mubr.f32.gmra.mrb[0].mxu0 %v3088
      %v3260 = vpop.f32.mrb[0].mxu0
      %v3261 = vadd.f32 0.0, %v3260
      %v3262 = vpop.f32.mrb[0].mxu0
      %3263 = vmatprep.mubr.f32.mxu0 0.0
      %3264 = vmatmul.mubr.f32.gmra.mrb[0].mxu0 %v3091
      %v3265 = vpop.f32.mrb[0].mxu0
      %v3266 = vadd.f32 0.0, %v3265
      %v3267 = vpop.f32.mrb[0].mxu0
      %3268 = vmatprep.mubr.f32.mxu0 0.0
      %3269 = vmatmul.mubr.f32.gmra.mrb[0].mxu0 %v3094
      %v3270 = vpop.f32.mrb[0].mxu0
      %v3271 = vadd.f32 0.0, %v3270
      %v3272 = vpop.f32.mrb[0].mxu0
      %3273 = vmatprep.mubr.f32.mxu0 0.0
      %3274 = vmatmul.mubr.f32.gmra.mrb[0].mxu0 %v3097
      %v3275 = vpop.f32.mrb[0].mxu0
      %v3276 = vadd.f32 0.0, %v3275
      %v3277 = vpop.f32.mrb[0].mxu0
      %3278 = vmatprep.mubr.f32.mxu0 0.0
      %3279 = vmatmul.mubr.f32.gmra.mrb[0].mxu0 %v3100
      %v3280 = vpop.f32.mrb[0].mxu0
      %v3281 = vadd.f32 0.0, %v3280
      %v3282 = vpop.f32.mrb[0].mxu0
      %3283 = vmatprep.mubr.f32.mxu0 0.0
      %3284 = vmatmul.mubr.f32.gmra.mrb[0].mxu0 %v3103
      %v3285 = vpop.f32.mrb[0].mxu0
      %v3286 = vadd.f32 0.0, %v3285
      %v3287 = vpop.f32.mrb[0].mxu0
      %3288 = vmatprep.mubr.f32.mxu0 0.0
      %3289 = vmatmul.mubr.f32.gmra.mrb[0].mxu0 %v3106
      %v3290 = vpop.f32.mrb[0].mxu0
      %v3291 = vadd.f32 0.0, %v3290
      %v3292 = vpop.f32.mrb[0].mxu0
      %3293 = vmatprep.mubr.f32.mxu0 0.0
      %3294 = vmatmul.mubr.f32.gmra.mrb[0].mxu0 %v3109
      %v3295 = vpop.f32.mrb[0].mxu0
      %v3296 = vadd.f32 0.0, %v3295
      %v3297 = vpop.f32.mrb[0].mxu0
      %3298 = vmatprep.mubr.f32.mxu0 0.0
      %3299 = vmatmul.mubr.f32.gmra.mrb[0].mxu0 %v3112
      %v3300 = vpop.f32.mrb[0].mxu0
      %v3301 = vadd.f32 0.0, %v3300
      %v3302 = vpop.f32.mrb[0].mxu0
      %3303 = vmatprep.mubr.f32.mxu0 0.0
      %3304 = vmatmul.mubr.f32.gmra.mrb[0].mxu0 %v3115
      %v3305 = vpop.f32.mrb[0].mxu0
      %v3306 = vadd.f32 0.0, %v3305
      %v3307 = vpop.f32.mrb[0].mxu0
      %3308 = vmatprep.mubr.f32.mxu0 0.0
      %3309 = vmatmul.mubr.f32.gmra.mrb[0].mxu0 %v3118
      %v3310 = vpop.f32.mrb[0].mxu0
      %v3311 = vadd.f32 0.0, %v3310
      %v3312 = vpop.f32.mrb[0].mxu0
      %3313 = vmatprep.mubr.f32.mxu0 0.0
      %3314 = vmatmul.mubr.f32.gmra.mrb[0].mxu0 %v3121
      %v3315 = vpop.f32.mrb[0].mxu0
      %v3316 = vadd.f32 0.0, %v3315
      %v3317 = vpop.f32.mrb[0].mxu0
      %3318 = vmatprep.mubr.f32.mxu0 0.0
      %3319 = vmatmul.mubr.f32.gmra.mrb[0].mxu0 %v3124
      %v3320 = vpop.f32.mrb[0].mxu0
      %v3321 = vadd.f32 0.0, %v3320
      %v3322 = vpop.f32.mrb[0].mxu0
      %3323 = vmatprep.mubr.f32.mxu0 0.0
      %3324 = vmatmul.mubr.f32.gmra.mrb[0].mxu0 %v3127
      %v3325 = vpop.f32.mrb[0].mxu0
      %v3326 = vadd.f32 0.0, %v3325
      %v3327 = vpop.f32.mrb[0].mxu0
      %3328 = vmatprep.mubr.f32.mxu0 0.0
      %3329 = vmatmul.mubr.f32.gmra.mrb[0].mxu0 %v3130
      %v3330 = vpop.f32.mrb[0].mxu0
      %v3331 = vadd.f32 0.0, %v3330
      %v3332 = vpop.f32.mrb[0].mxu0
      %3333 = vmatprep.mubr.f32.mxu0 0.0
      %3334 = vmatmul.mubr.f32.gmra.mrb[0].mxu0 %v3133
      %v3335 = vpop.f32.mrb[0].mxu0
      %v3336 = vadd.f32 0.0, %v3335
      %v3337 = vpop.f32.mrb[0].mxu0
      %3338 = vmatprep.mubr.f32.mxu0 0.0
      %3339 = vmatmul.mubr.f32.gmra.mrb[0].mxu0 %v3136
      %v3340 = vpop.f32.mrb[0].mxu0
      %v3341 = vpop.f32.mrb[0].mxu0
      %3342 = vmatprep.mubr.f32.mxu0 0.0
      %3343 = vmatmul.mubr.f32.gmra.mrb[0].mxu0 %v3139
      %v3344 = vpop.f32.mrb[0].mxu0
      %v3345 = vpop.f32.mrb[0].mxu0
      %3346 = vdwg.mxu0
      %v3347 = vadd.f32 %v3001, %v3211
      %v3348 = vadd.f32 %v3002, %v3216
      %v3349 = vadd.f32 %v3003, %v3221
      %v3350 = vadd.f32 %v3004, %v3226
      %v3351 = vadd.f32 %v3005, %v3231
      %v3352 = vadd.f32 %v3006, %v3236
      %v3353 = vadd.f32 %v3007, %v3241
      %v3354 = vadd.f32 %v3008, %v3246
      %v3355 = vadd.f32 %v3009, %v3251
      %v3356 = vadd.f32 %v3010, %v3256
      %v3357 = vadd.f32 %v3011, %v3261
      %v3358 = vadd.f32 %v3012, %v3266
      %v3359 = vadd.f32 %v3013, %v3271
      %v3360 = vadd.f32 %v3014, %v3276
      %v3361 = vadd.f32 %v3015, %v3281
      %v3362 = vadd.f32 %v3016, %v3286
      %v3363 = vadd.f32 %v3017, %v3291
      %v3364 = vadd.f32 %v3018, %v3296
      %v3365 = vadd.f32 %v3019, %v3301
      %v3366 = vadd.f32 %v3020, %v3306
      %v3367 = vadd.f32 %v3021, %v3311
      %v3368 = vadd.f32 %v3022, %v3316
      %v3369 = vadd.f32 %v3023, %v3321
      %v3370 = vadd.f32 %v3024, %v3326
      %v3371 = vadd.f32 %v3025, %v3331
      %v3372 = vadd.f32 %v3026, %v3336
      %v3373 = vld [vmem:[%s4] sm:$0x1]
      %v3375 = vlaneseq
      %v3376 = vshrl.u32 %v3375, 7
      %v3377 = vsub.s32 0, %v3376
      %v3378 = vrot.slane %v3373, %v3377
      %v3380 = vadd.f32 %v3347, %v3378
      %v3381 = vadd.f32 %v3348, %v3378
      %v3382 = vadd.f32 %v3349, %v3378
      %v3383 = vadd.f32 %v3350, %v3378
      %v3384 = vadd.f32 %v3351, %v3378
      %v3385 = vadd.f32 %v3352, %v3378
      %v3386 = vadd.f32 %v3353, %v3378
      %v3387 = vadd.f32 %v3354, %v3378
      %v3388 = vadd.f32 %v3355, %v3378
      %v3389 = vadd.f32 %v3356, %v3378
      %v3390 = vadd.f32 %v3357, %v3378
      %v3391 = vadd.f32 %v3358, %v3378
      %v3392 = vadd.f32 %v3359, %v3378
      %v3393 = vadd.f32 %v3360, %v3378
      %v3394 = vadd.f32 %v3361, %v3378
      %v3395 = vadd.f32 %v3362, %v3378
      %v3396 = vadd.f32 %v3363, %v3378
      %v3397 = vadd.f32 %v3364, %v3378
      %v3398 = vadd.f32 %v3365, %v3378
      %v3399 = vadd.f32 %v3366, %v3378
      %v3400 = vadd.f32 %v3367, %v3378
      %v3401 = vadd.f32 %v3368, %v3378
      %v3402 = vadd.f32 %v3369, %v3378
      %v3403 = vadd.f32 %v3370, %v3378
      %v3404 = vadd.f32 %v3371, %v3378
      %v3405 = vadd.f32 %v3372, %v3378
      %vm3406 = vcmp.gt.f32.partialorder %v3380, 0.0
      %vm3407 = vcmp.gt.f32.partialorder %v3381, 0.0
      %vm3408 = vcmp.gt.f32.partialorder %v3382, 0.0
      %vm3409 = vcmp.gt.f32.partialorder %v3383, 0.0
      %vm3410 = vcmp.gt.f32.partialorder %v3384, 0.0
      %vm3411 = vcmp.gt.f32.partialorder %v3385, 0.0
      %vm3412 = vcmp.gt.f32.partialorder %v3386, 0.0
      %vm3413 = vcmp.gt.f32.partialorder %v3387, 0.0
      %vm3414 = vcmp.gt.f32.partialorder %v3388, 0.0
      %vm3415 = vcmp.gt.f32.partialorder %v3389, 0.0
      %vm3416 = vcmp.gt.f32.partialorder %v3390, 0.0
      %vm3417 = vcmp.gt.f32.partialorder %v3391, 0.0
      %vm3418 = vcmp.gt.f32.partialorder %v3392, 0.0
      %vm3419 = vcmp.gt.f32.partialorder %v3393, 0.0
      %vm3420 = vcmp.gt.f32.partialorder %v3394, 0.0
      %vm3421 = vcmp.gt.f32.partialorder %v3395, 0.0
      %vm3422 = vcmp.gt.f32.partialorder %v3396, 0.0
      %vm3423 = vcmp.gt.f32.partialorder %v3397, 0.0
      %vm3424 = vcmp.gt.f32.partialorder %v3398, 0.0
      %vm3425 = vcmp.gt.f32.partialorder %v3399, 0.0
      %vm3426 = vcmp.gt.f32.partialorder %v3400, 0.0
      %vm3427 = vcmp.gt.f32.partialorder %v3401, 0.0
      %vm3428 = vcmp.gt.f32.partialorder %v3402, 0.0
      %vm3429 = vcmp.gt.f32.partialorder %v3403, 0.0
      %vm3430 = vcmp.gt.f32.partialorder %v3404, 0.0
      %vm3431 = vcmp.gt.f32.partialorder %v3405, 0.0
      %v3432 = vmul.f32 %v3380, 0.1
      %v3433 = vmul.f32 %v3381, 0.1
      %v3434 = vmul.f32 %v3382, 0.1
      %v3435 = vmul.f32 %v3383, 0.1
      %v3436 = vmul.f32 %v3384, 0.1
      %v3437 = vmul.f32 %v3385, 0.1
      %v3438 = vmul.f32 %v3386, 0.1
      %v3439 = vmul.f32 %v3387, 0.1
      %v3440 = vmul.f32 %v3388, 0.1
      %v3441 = vmul.f32 %v3389, 0.1
      %v3442 = vmul.f32 %v3390, 0.1
      %v3443 = vmul.f32 %v3391, 0.1
      %v3444 = vmul.f32 %v3392, 0.1
      %v3445 = vmul.f32 %v3393, 0.1
      %v3446 = vmul.f32 %v3394, 0.1
      %v3447 = vmul.f32 %v3395, 0.1
      %v3448 = vmul.f32 %v3396, 0.1
      %v3449 = vmul.f32 %v3397, 0.1
      %v3450 = vmul.f32 %v3398, 0.1
      %v3451 = vmul.f32 %v3399, 0.1
      %v3452 = vmul.f32 %v3400, 0.1
      %v3453 = vmul.f32 %v3401, 0.1
      %v3454 = vmul.f32 %v3402, 0.1
      %v3455 = vmul.f32 %v3403, 0.1
      %v3456 = vmul.f32 %v3404, 0.1
      %v3457 = vmul.f32 %v3405, 0.1
      %v3458 = vsel %vm3406, %v3380, %v3432
      %v3459 = vsel %vm3407, %v3381, %v3433
      %v3460 = vsel %vm3408, %v3382, %v3434
      %v3461 = vsel %vm3409, %v3383, %v3435
      %v3462 = vsel %vm3410, %v3384, %v3436
      %v3463 = vsel %vm3411, %v3385, %v3437
      %v3464 = vsel %vm3412, %v3386, %v3438
      %v3465 = vsel %vm3413, %v3387, %v3439
      %v3466 = vsel %vm3414, %v3388, %v3440
      %v3467 = vsel %vm3415, %v3389, %v3441
      %v3468 = vsel %vm3416, %v3390, %v3442
      %v3469 = vsel %vm3417, %v3391, %v3443
      %v3470 = vsel %vm3418, %v3392, %v3444
      %v3471 = vsel %vm3419, %v3393, %v3445
      %v3472 = vsel %vm3420, %v3394, %v3446
      %v3473 = vsel %vm3421, %v3395, %v3447
      %v3474 = vsel %vm3422, %v3396, %v3448
      %v3475 = vsel %vm3423, %v3397, %v3449
      %v3476 = vsel %vm3424, %v3398, %v3450
      %v3477 = vsel %vm3425, %v3399, %v3451
      %v3478 = vsel %vm3426, %v3400, %v3452
      %v3479 = vsel %vm3427, %v3401, %v3453
      %v3480 = vsel %vm3428, %v3402, %v3454
      %v3481 = vsel %vm3429, %v3403, %v3455
      %v3482 = vsel %vm3430, %v3404, %v3456
      %v3483 = vsel %vm3431, %v3405, %v3457
      %v3484 = vld [vmem:[%s300] sm:$0xff]
      %v3485 = vld [vmem:[%s300 + $0x8] sm:$0xff]
      %v3486 = vld [vmem:[%s300 + $0x10] sm:$0xff]
      %v3487 = vld [vmem:[%s300 + $0x18] sm:$0xff]
      %v3488 = vld [vmem:[%s300 + $0x20] sm:$0xff]
      %v3489 = vld [vmem:[%s300 + $0x28] sm:$0xff]
      %v3490 = vld [vmem:[%s300 + $0x30] sm:$0xff]
      %v3491 = vld [vmem:[%s300 + $0x38] sm:$0xff]
      %v3492 = vld [vmem:[%s300 + $0x40] sm:$0xff]
      %v3493 = vld [vmem:[%s300 + $0x48] sm:$0xff]
      %v3494 = vld [vmem:[%s300 + $0x50] sm:$0xff]
      %v3495 = vld [vmem:[%s300 + $0x58] sm:$0xff]
      %v3496 = vld [vmem:[%s300 + $0x60] sm:$0xff]
      %v3497 = vld [vmem:[%s300 + $0x68] sm:$0xff]
      %v3498 = vld [vmem:[%s300 + $0x70] sm:$0xff]
      %v3499 = vld [vmem:[%s300 + $0x78] sm:$0xff]
      %v3500 = vld [vmem:[%s300 + $0x80] sm:$0xff]
      %v3501 = vld [vmem:[%s300 + $0x88] sm:$0xff]
      %v3502 = vld [vmem:[%s300 + $0x90] sm:$0xff]
      %v3503 = vld [vmem:[%s300 + $0x98] sm:$0xff]
      %v3504 = vld [vmem:[%s300 + $0xa0] sm:$0xff]
      %v3505 = vld [vmem:[%s300 + $0xa8] sm:$0xff]
      %v3506 = vld [vmem:[%s300 + $0xb0] sm:$0xff]
      %v3507 = vld [vmem:[%s300 + $0xb8] sm:$0xff]
      %v3508 = vld [vmem:[%s300 + $0xc0] sm:$0xff]
      %v3509 = vld [vmem:[%s300 + $0xc8] sm:$0xff]
      %3511 = vset.pattern.permute.xlu0 0
      %3512 = vperm.xlu0 %3511, %v3484
      %v3513 = vpop.permute.xlu0 %3512
      %3516 = vset.pattern.permute.xlu0 0
      %3517 = vperm.xlu0 %3516, %v3485
      %v3518 = vpop.permute.xlu0 %3517
      %3521 = vset.pattern.permute.xlu0 0
      %3522 = vperm.xlu0 %3521, %v3486
      %v3523 = vpop.permute.xlu0 %3522
      %3526 = vset.pattern.permute.xlu0 0
      %3527 = vperm.xlu0 %3526, %v3487
      %v3528 = vpop.permute.xlu0 %3527
      %3531 = vset.pattern.permute.xlu0 0
      %3532 = vperm.xlu0 %3531, %v3488
      %v3533 = vpop.permute.xlu0 %3532
      %3536 = vset.pattern.permute.xlu0 0
      %3537 = vperm.xlu0 %3536, %v3489
      %v3538 = vpop.permute.xlu0 %3537
      %3541 = vset.pattern.permute.xlu0 0
      %3542 = vperm.xlu0 %3541, %v3490
      %v3543 = vpop.permute.xlu0 %3542
      %3546 = vset.pattern.permute.xlu0 0
      %3547 = vperm.xlu0 %3546, %v3491
      %v3548 = vpop.permute.xlu0 %3547
      %3551 = vset.pattern.permute.xlu0 0
      %3552 = vperm.xlu0 %3551, %v3492
      %v3553 = vpop.permute.xlu0 %3552
      %3556 = vset.pattern.permute.xlu0 0
      %3557 = vperm.xlu0 %3556, %v3493
      %v3558 = vpop.permute.xlu0 %3557
      %3561 = vset.pattern.permute.xlu0 0
      %3562 = vperm.xlu0 %3561, %v3494
      %v3563 = vpop.permute.xlu0 %3562
      %3566 = vset.pattern.permute.xlu0 0
      %3567 = vperm.xlu0 %3566, %v3495
      %v3568 = vpop.permute.xlu0 %3567
      %3571 = vset.pattern.permute.xlu0 0
      %3572 = vperm.xlu0 %3571, %v3496
      %v3573 = vpop.permute.xlu0 %3572
      %3576 = vset.pattern.permute.xlu0 0
      %3577 = vperm.xlu0 %3576, %v3497
      %v3578 = vpop.permute.xlu0 %3577
      %3581 = vset.pattern.permute.xlu0 0
      %3582 = vperm.xlu0 %3581, %v3498
      %v3583 = vpop.permute.xlu0 %3582
      %3586 = vset.pattern.permute.xlu0 0
      %3587 = vperm.xlu0 %3586, %v3499
      %v3588 = vpop.permute.xlu0 %3587
      %3591 = vset.pattern.permute.xlu0 0
      %3592 = vperm.xlu0 %3591, %v3500
      %v3593 = vpop.permute.xlu0 %3592
      %3596 = vset.pattern.permute.xlu0 0
      %3597 = vperm.xlu0 %3596, %v3501
      %v3598 = vpop.permute.xlu0 %3597
      %3601 = vset.pattern.permute.xlu0 0
      %3602 = vperm.xlu0 %3601, %v3502
      %v3603 = vpop.permute.xlu0 %3602
      %3606 = vset.pattern.permute.xlu0 0
      %3607 = vperm.xlu0 %3606, %v3503
      %v3608 = vpop.permute.xlu0 %3607
      %3611 = vset.pattern.permute.xlu0 0
      %3612 = vperm.xlu0 %3611, %v3504
      %v3613 = vpop.permute.xlu0 %3612
      %3616 = vset.pattern.permute.xlu0 0
      %3617 = vperm.xlu0 %3616, %v3505
      %v3618 = vpop.permute.xlu0 %3617
      %3621 = vset.pattern.permute.xlu0 0
      %3622 = vperm.xlu0 %3621, %v3506
      %v3623 = vpop.permute.xlu0 %3622
      %3626 = vset.pattern.permute.xlu0 0
      %3627 = vperm.xlu0 %3626, %v3507
      %v3628 = vpop.permute.xlu0 %3627
      %3631 = vset.pattern.permute.xlu0 0
      %3632 = vperm.xlu0 %3631, %v3508
      %v3633 = vpop.permute.xlu0 %3632
      %3636 = vset.pattern.permute.xlu0 0
      %3637 = vperm.xlu0 %3636, %v3509
      %v3638 = vpop.permute.xlu0 %3637
      %v3640 = vmul.f32 %v3458, %v3513
      %v3641 = vmul.f32 %v3459, %v3518
      %v3642 = vmul.f32 %v3460, %v3523
      %v3643 = vmul.f32 %v3461, %v3528
      %v3644 = vmul.f32 %v3462, %v3533
      %v3645 = vmul.f32 %v3463, %v3538
      %v3646 = vmul.f32 %v3464, %v3543
      %v3647 = vmul.f32 %v3465, %v3548
      %v3648 = vmul.f32 %v3466, %v3553
      %v3649 = vmul.f32 %v3467, %v3558
      %v3650 = vmul.f32 %v3468, %v3563
      %v3651 = vmul.f32 %v3469, %v3568
      %v3652 = vmul.f32 %v3470, %v3573
      %v3653 = vmul.f32 %v3471, %v3578
      %v3654 = vmul.f32 %v3472, %v3583
      %v3655 = vmul.f32 %v3473, %v3588
      %v3656 = vmul.f32 %v3474, %v3593
      %v3657 = vmul.f32 %v3475, %v3598
      %v3658 = vmul.f32 %v3476, %v3603
      %v3659 = vmul.f32 %v3477, %v3608
      %v3660 = vmul.f32 %v3478, %v3613
      %v3661 = vmul.f32 %v3479, %v3618
      %v3662 = vmul.f32 %v3480, %v3623
      %v3663 = vmul.f32 %v3481, %v3628
      %v3664 = vmul.f32 %v3482, %v3633
      %v3665 = vmul.f32 %v3483, %v3638
      %v3666 = vld [vmem:[%s3] sm:$0xff]
      %v3667 = vld [vmem:[%s3 + $0x8] sm:$0xff]
      %v3668 = vld [vmem:[%s3 + $0x10] sm:$0xff]
      %v3669 = vld [vmem:[%s3 + $0x18] sm:$0xff]
      %v3670 = vld [vmem:[%s3 + $0x20] sm:$0xff]
      %v3671 = vld [vmem:[%s3 + $0x28] sm:$0xff]
      %v3672 = vld [vmem:[%s3 + $0x30] sm:$0xff]
      %v3673 = vld [vmem:[%s3 + $0x38] sm:$0xff]
      %s3674 = scalar_lea.vmem %s3, 64
      %v3675 = vld [vmem:[%s3674] sm:$0xff]
      %v3676 = vld [vmem:[%s3674 + $0x8] sm:$0xff]
      %v3677 = vld [vmem:[%s3674 + $0x10] sm:$0xff]
      %v3678 = vld [vmem:[%s3674 + $0x18] sm:$0xff]
      %v3679 = vld [vmem:[%s3674 + $0x20] sm:$0xff]
      %v3680 = vld [vmem:[%s3674 + $0x28] sm:$0xff]
      %v3681 = vld [vmem:[%s3674 + $0x30] sm:$0xff]
      %v3682 = vld [vmem:[%s3674 + $0x38] sm:$0xff]
      %vm3704 = vcmask 1046528
      %v3705 = vrot.slane %v3640, 1
      %v3706 = vrot.slane %v3641, 1
      %v3707 = vsel %vm3704, %v3705, %v3706
      %v3708 = vrot.slane %v3642, 1
      %v3709 = vsel %vm3704, %v3706, %v3708
      %v3710 = vrot.slane %v3643, 1
      %v3711 = vsel %vm3704, %v3708, %v3710
      %v3712 = vrot.slane %v3644, 1
      %v3713 = vsel %vm3704, %v3710, %v3712
      %v3714 = vrot.slane %v3645, 1
      %v3715 = vsel %vm3704, %v3712, %v3714
      %v3716 = vrot.slane %v3646, 1
      %v3717 = vsel %vm3704, %v3714, %v3716
      %v3718 = vrot.slane %v3647, 1
      %v3719 = vsel %vm3704, %v3716, %v3718
      %v3720 = vrot.slane %v3648, 1
      %v3721 = vsel %vm3704, %v3718, %v3720
      %v3722 = vrot.slane %v3649, 1
      %v3723 = vsel %vm3704, %v3720, %v3722
      %v3724 = vrot.slane %v3650, 1
      %v3725 = vsel %vm3704, %v3722, %v3724
      %v3726 = vrot.slane %v3651, 1
      %v3727 = vsel %vm3704, %v3724, %v3726
      %v3728 = vrot.slane %v3652, 1
      %v3729 = vsel %vm3704, %v3726, %v3728
      %v3730 = vrot.slane %v3653, 1
      %v3731 = vsel %vm3704, %v3728, %v3730
      %v3732 = vrot.slane %v3654, 1
      %v3733 = vsel %vm3704, %v3730, %v3732
      %v3734 = vrot.slane %v3655, 1
      %v3735 = vsel %vm3704, %v3732, %v3734
      %v3736 = vrot.slane %v3656, 1
      %v3737 = vsel %vm3704, %v3734, %v3736
      %v3738 = vrot.slane %v3657, 1
      %v3739 = vsel %vm3704, %v3736, %v3738
      %v3740 = vrot.slane %v3658, 1
      %v3741 = vsel %vm3704, %v3738, %v3740
      %v3742 = vrot.slane %v3659, 1
      %v3743 = vsel %vm3704, %v3740, %v3742
      %v3744 = vrot.slane %v3660, 1
      %v3745 = vsel %vm3704, %v3742, %v3744
      %vm3746 = vcmask 523264
      %v3747 = vsel %vm3746, %v3707, 0
      %v3749 = vsel %vm3746, %v3709, 0
      %v3751 = vsel %vm3746, %v3711, 0
      %v3753 = vsel %vm3746, %v3713, 0
      %v3755 = vsel %vm3746, %v3715, 0
      %v3757 = vsel %vm3746, %v3717, 0
      %v3759 = vsel %vm3746, %v3719, 0
      %v3761 = vsel %vm3746, %v3721, 0
      %v3763 = vsel %vm3746, %v3723, 0
      %v3765 = vsel %vm3746, %v3725, 0
      %v3767 = vsel %vm3746, %v3727, 0
      %v3769 = vsel %vm3746, %v3729, 0
      %v3771 = vsel %vm3746, %v3731, 0
      %v3773 = vsel %vm3746, %v3733, 0
      %v3775 = vsel %vm3746, %v3735, 0
      %v3777 = vsel %vm3746, %v3737, 0
      %v3779 = vsel %vm3746, %v3739, 0
      %v3781 = vsel %vm3746, %v3741, 0
      %v3783 = vsel %vm3746, %v3743, 0
      %v3785 = vsel %vm3746, %v3745, 0
      %3787 = vmatprep.subr.mxu0 0.0
      %3788 = vmatpush1.msra.mxu0 %v3675
      %3789 = vmatprep.subr.mxu0 0.0
      %3790 = vmatpush1.msra.mxu0 %v3676
      %3791 = vmatprep.subr.mxu0 0.0
      %3792 = vmatpush1.msra.mxu0 %v3677
      %3793 = vmatprep.subr.mxu0 0.0
      %3794 = vmatpush1.msra.mxu0 %v3678
      %3795 = vmatprep.subr.mxu0 0.0
      %3796 = vmatpush1.msra.mxu0 %v3679
      %3797 = vmatprep.subr.mxu0 0.0
      %3798 = vmatpush1.msra.mxu0 %v3680
      %3799 = vmatprep.subr.mxu0 0.0
      %3800 = vmatpush1.msra.mxu0 %v3681
      %3801 = vmatprep.subr.mxu0 0.0
      %3802 = vmatpush1.msra.mxu0 %v3682
      %3803 = vmatprep.subr.mxu0 0.0
      %3804 = vmatpush1.msra.mxu0 0.0
      %3805 = vmatprep.subr.mxu0 0.0
      %3806 = vmatpush1.msra.mxu0 0.0
      %3807 = vmatprep.subr.mxu0 0.0
      %3808 = vmatpush1.msra.mxu0 0.0
      %3809 = vmatprep.subr.mxu0 0.0
      %3810 = vmatpush1.msra.mxu0 0.0
      %3811 = vmatprep.subr.mxu0 0.0
      %3812 = vmatpush1.msra.mxu0 0.0
      %3813 = vmatprep.subr.mxu0 0.0
      %3814 = vmatpush1.msra.mxu0 0.0
      %3815 = vmatprep.subr.mxu0 0.0
      %3816 = vmatpush1.msra.mxu0 0.0
      %3817 = vmatprep.subr.mxu0 0.0
      %3818 = vmatpush1.msra.mxu0 0.0
      %3819 = vmatprep.subr.mxu0 0.0
      %3820 = vmatpush1.msra.mxu0 0.0
      %3821 = vmatprep.subr.mxu0 0.0
      %3822 = vmatpush1.msra.mxu0 0.0
      %3823 = vmatprep.subr.mxu0 0.0
      %3824 = vmatpush1.msra.mxu0 0.0
      %3825 = vmatprep.subr.mxu0 0.0
      %3826 = vmatpush1.msra.mxu0 0.0
      %3827 = vmatprep.subr.mxu0 0.0
      %3828 = vmatpush1.msra.mxu0 0.0
      %3829 = vmatprep.subr.mxu0 0.0
      %3830 = vmatpush1.msra.mxu0 0.0
      %3831 = vmatprep.subr.mxu0 0.0
      %3832 = vmatpush1.msra.mxu0 0.0
      %3833 = vmatprep.subr.mxu0 0.0
      %3834 = vmatpush1.msra.mxu0 0.0
      %3835 = vmatprep.subr.mxu0 0.0
      %3836 = vmatpush1.msra.mxu0 0.0
      %3837 = vmatprep.subr.mxu0 0.0
      %3838 = vmatpush1.msra.mxu0 0.0
      %3839 = vmatprep.subr.mxu0 0.0
      %3840 = vmatpush1.msra.mxu0 0.0
      %3841 = vmatprep.subr.mxu0 0.0
      %3842 = vmatpush1.msra.mxu0 0.0
      %3843 = vmatprep.subr.mxu0 0.0
      %3844 = vmatpush1.msra.mxu0 0.0
      %3845 = vmatprep.subr.mxu0 0.0
      %3846 = vmatpush1.msra.mxu0 0.0
      %3847 = vmatprep.subr.mxu0 0.0
      %3848 = vmatpush1.msra.mxu0 0.0
      %3849 = vmatprep.subr.mxu0 0.0
      %3850 = vmatpush1.msra.mxu0 0.0
      %3851 = vmatprep.mubr.f32.mxu0 0.0
      %3852 = vmatmul.mubr.f32.gmra.mrb[0].mxu0 %v3747
      %v3853 = vpop.f32.mrb[0].mxu0
      %v3854 = vadd.f32 0.0, %v3853
      %v3855 = vpop.f32.mrb[0].mxu0
      %3856 = vmatprep.mubr.f32.mxu0 0.0
      %3857 = vmatmul.mubr.f32.gmra.mrb[0].mxu0 %v3749
      %v3858 = vpop.f32.mrb[0].mxu0
      %v3859 = vadd.f32 0.0, %v3858
      %v3860 = vpop.f32.mrb[0].mxu0
      %3861 = vmatprep.mubr.f32.mxu0 0.0
      %3862 = vmatmul.mubr.f32.gmra.mrb[0].mxu0 %v3751
      %v3863 = vpop.f32.mrb[0].mxu0
      %v3864 = vadd.f32 0.0, %v3863
      %v3865 = vpop.f32.mrb[0].mxu0
      %3866 = vmatprep.mubr.f32.mxu0 0.0
      %3867 = vmatmul.mubr.f32.gmra.mrb[0].mxu0 %v3753
      %v3868 = vpop.f32.mrb[0].mxu0
      %v3869 = vadd.f32 0.0, %v3868
      %v3870 = vpop.f32.mrb[0].mxu0
      %3871 = vmatprep.mubr.f32.mxu0 0.0
      %3872 = vmatmul.mubr.f32.gmra.mrb[0].mxu0 %v3755
      %v3873 = vpop.f32.mrb[0].mxu0
      %v3874 = vadd.f32 0.0, %v3873
      %v3875 = vpop.f32.mrb[0].mxu0
      %3876 = vmatprep.mubr.f32.mxu0 0.0
      %3877 = vmatmul.mubr.f32.gmra.mrb[0].mxu0 %v3757
      %v3878 = vpop.f32.mrb[0].mxu0
      %v3879 = vadd.f32 0.0, %v3878
      %v3880 = vpop.f32.mrb[0].mxu0
      %3881 = vmatprep.mubr.f32.mxu0 0.0
      %3882 = vmatmul.mubr.f32.gmra.mrb[0].mxu0 %v3759
      %v3883 = vpop.f32.mrb[0].mxu0
      %v3884 = vadd.f32 0.0, %v3883
      %v3885 = vpop.f32.mrb[0].mxu0
      %3886 = vmatprep.mubr.f32.mxu0 0.0
      %3887 = vmatmul.mubr.f32.gmra.mrb[0].mxu0 %v3761
      %v3888 = vpop.f32.mrb[0].mxu0
      %v3889 = vadd.f32 0.0, %v3888
      %v3890 = vpop.f32.mrb[0].mxu0
      %3891 = vmatprep.mubr.f32.mxu0 0.0
      %3892 = vmatmul.mubr.f32.gmra.mrb[0].mxu0 %v3763
      %v3893 = vpop.f32.mrb[0].mxu0
      %v3894 = vadd.f32 0.0, %v3893
      %v3895 = vpop.f32.mrb[0].mxu0
      %3896 = vmatprep.mubr.f32.mxu0 0.0
      %3897 = vmatmul.mubr.f32.gmra.mrb[0].mxu0 %v3765
      %v3898 = vpop.f32.mrb[0].mxu0
      %v3899 = vadd.f32 0.0, %v3898
      %v3900 = vpop.f32.mrb[0].mxu0
      %3901 = vmatprep.mubr.f32.mxu0 0.0
      %3902 = vmatmul.mubr.f32.gmra.mrb[0].mxu0 %v3767
      %v3903 = vpop.f32.mrb[0].mxu0
      %v3904 = vadd.f32 0.0, %v3903
      %v3905 = vpop.f32.mrb[0].mxu0
      %3906 = vmatprep.mubr.f32.mxu0 0.0
      %3907 = vmatmul.mubr.f32.gmra.mrb[0].mxu0 %v3769
      %v3908 = vpop.f32.mrb[0].mxu0
      %v3909 = vadd.f32 0.0, %v3908
      %v3910 = vpop.f32.mrb[0].mxu0
      %3911 = vmatprep.mubr.f32.mxu0 0.0
      %3912 = vmatmul.mubr.f32.gmra.mrb[0].mxu0 %v3771
      %v3913 = vpop.f32.mrb[0].mxu0
      %v3914 = vadd.f32 0.0, %v3913
      %v3915 = vpop.f32.mrb[0].mxu0
      %3916 = vmatprep.mubr.f32.mxu0 0.0
      %3917 = vmatmul.mubr.f32.gmra.mrb[0].mxu0 %v3773
      %v3918 = vpop.f32.mrb[0].mxu0
      %v3919 = vadd.f32 0.0, %v3918
      %v3920 = vpop.f32.mrb[0].mxu0
      %3921 = vmatprep.mubr.f32.mxu0 0.0
      %3922 = vmatmul.mubr.f32.gmra.mrb[0].mxu0 %v3775
      %v3923 = vpop.f32.mrb[0].mxu0
      %v3924 = vadd.f32 0.0, %v3923
      %v3925 = vpop.f32.mrb[0].mxu0
      %3926 = vmatprep.mubr.f32.mxu0 0.0
      %3927 = vmatmul.mubr.f32.gmra.mrb[0].mxu0 %v3777
      %v3928 = vpop.f32.mrb[0].mxu0
      %v3929 = vadd.f32 0.0, %v3928
      %v3930 = vpop.f32.mrb[0].mxu0
      %3931 = vmatprep.mubr.f32.mxu0 0.0
      %3932 = vmatmul.mubr.f32.gmra.mrb[0].mxu0 %v3779
      %v3933 = vpop.f32.mrb[0].mxu0
      %v3934 = vadd.f32 0.0, %v3933
      %v3935 = vpop.f32.mrb[0].mxu0
      %3936 = vmatprep.mubr.f32.mxu0 0.0
      %3937 = vmatmul.mubr.f32.gmra.mrb[0].mxu0 %v3781
      %v3938 = vpop.f32.mrb[0].mxu0
      %v3939 = vadd.f32 0.0, %v3938
      %v3940 = vpop.f32.mrb[0].mxu0
      %3941 = vmatprep.mubr.f32.mxu0 0.0
      %3942 = vmatmul.mubr.f32.gmra.mrb[0].mxu0 %v3783
      %v3943 = vpop.f32.mrb[0].mxu0
      %v3944 = vadd.f32 0.0, %v3943
      %v3945 = vpop.f32.mrb[0].mxu0
      %3946 = vmatprep.mubr.f32.mxu0 0.0
      %3947 = vmatmul.mubr.f32.gmra.mrb[0].mxu0 %v3785
      %v3948 = vpop.f32.mrb[0].mxu0
      %v3949 = vadd.f32 0.0, %v3948
      %v3950 = vpop.f32.mrb[0].mxu0
      %3951 = vdwg.mxu0
      %v3952 = vsel %vm3746, %v3640, 0
      %v3954 = vsel %vm3746, %v3641, 0
      %v3956 = vsel %vm3746, %v3642, 0
      %v3958 = vsel %vm3746, %v3643, 0
      %v3960 = vsel %vm3746, %v3644, 0
      %v3962 = vsel %vm3746, %v3645, 0
      %v3964 = vsel %vm3746, %v3646, 0
      %v3966 = vsel %vm3746, %v3647, 0
      %v3968 = vsel %vm3746, %v3648, 0
      %v3970 = vsel %vm3746, %v3649, 0
      %v3972 = vsel %vm3746, %v3650, 0
      %v3974 = vsel %vm3746, %v3651, 0
      %v3976 = vsel %vm3746, %v3652, 0
      %v3978 = vsel %vm3746, %v3653, 0
      %v3980 = vsel %vm3746, %v3654, 0
      %v3982 = vsel %vm3746, %v3655, 0
      %v3984 = vsel %vm3746, %v3656, 0
      %v3986 = vsel %vm3746, %v3657, 0
      %v3988 = vsel %vm3746, %v3658, 0
      %v3990 = vsel %vm3746, %v3659, 0
      %3992 = vmatprep.subr.mxu0 0.0
      %3993 = vmatpush1.msra.mxu0 %v3666
      %3994 = vmatprep.subr.mxu0 0.0
      %3995 = vmatpush1.msra.mxu0 %v3667
      %3996 = vmatprep.subr.mxu0 0.0
      %3997 = vmatpush1.msra.mxu0 %v3668
      %3998 = vmatprep.subr.mxu0 0.0
      %3999 = vmatpush1.msra.mxu0 %v3669
      %4000 = vmatprep.subr.mxu0 0.0
      %4001 = vmatpush1.msra.mxu0 %v3670
      %4002 = vmatprep.subr.mxu0 0.0
      %4003 = vmatpush1.msra.mxu0 %v3671
      %4004 = vmatprep.subr.mxu0 0.0
      %4005 = vmatpush1.msra.mxu0 %v3672
      %4006 = vmatprep.subr.mxu0 0.0
      %4007 = vmatpush1.msra.mxu0 %v3673
      %4008 = vmatprep.subr.mxu0 0.0
      %4009 = vmatpush1.msra.mxu0 0.0
      %4010 = vmatprep.subr.mxu0 0.0
      %4011 = vmatpush1.msra.mxu0 0.0
      %4012 = vmatprep.subr.mxu0 0.0
      %4013 = vmatpush1.msra.mxu0 0.0
      %4014 = vmatprep.subr.mxu0 0.0
      %4015 = vmatpush1.msra.mxu0 0.0
      %4016 = vmatprep.subr.mxu0 0.0
      %4017 = vmatpush1.msra.mxu0 0.0
      %4018 = vmatprep.subr.mxu0 0.0
      %4019 = vmatpush1.msra.mxu0 0.0
      %4020 = vmatprep.subr.mxu0 0.0
      %4021 = vmatpush1.msra.mxu0 0.0
      %4022 = vmatprep.subr.mxu0 0.0
      %4023 = vmatpush1.msra.mxu0 0.0
      %4024 = vmatprep.subr.mxu0 0.0
      %4025 = vmatpush1.msra.mxu0 0.0
      %4026 = vmatprep.subr.mxu0 0.0
      %4027 = vmatpush1.msra.mxu0 0.0
      %4028 = vmatprep.subr.mxu0 0.0
      %4029 = vmatpush1.msra.mxu0 0.0
      %4030 = vmatprep.subr.mxu0 0.0
      %4031 = vmatpush1.msra.mxu0 0.0
      %4032 = vmatprep.subr.mxu0 0.0
      %4033 = vmatpush1.msra.mxu0 0.0
      %4034 = vmatprep.subr.mxu0 0.0
      %4035 = vmatpush1.msra.mxu0 0.0
      %4036 = vmatprep.subr.mxu0 0.0
      %4037 = vmatpush1.msra.mxu0 0.0
      %4038 = vmatprep.subr.mxu0 0.0
      %4039 = vmatpush1.msra.mxu0 0.0
      %4040 = vmatprep.subr.mxu0 0.0
      %4041 = vmatpush1.msra.mxu0 0.0
      %4042 = vmatprep.subr.mxu0 0.0
      %4043 = vmatpush1.msra.mxu0 0.0
      %4044 = vmatprep.subr.mxu0 0.0
      %4045 = vmatpush1.msra.mxu0 0.0
      %4046 = vmatprep.subr.mxu0 0.0
      %4047 = vmatpush1.msra.mxu0 0.0
      %4048 = vmatprep.subr.mxu0 0.0
      %4049 = vmatpush1.msra.mxu0 0.0
      %4050 = vmatprep.subr.mxu0 0.0
      %4051 = vmatpush1.msra.mxu0 0.0
      %4052 = vmatprep.subr.mxu0 0.0
      %4053 = vmatpush1.msra.mxu0 0.0
      %4054 = vmatprep.subr.mxu0 0.0
      %4055 = vmatpush1.msra.mxu0 0.0
      %4056 = vmatprep.mubr.f32.mxu0 0.0
      %4057 = vmatmul.mubr.f32.gmra.mrb[0].mxu0 %v3952
      %v4058 = vpop.f32.mrb[0].mxu0
      %v4059 = vadd.f32 %v3854, %v4058
      %v4060 = vpop.f32.mrb[0].mxu0
      %4061 = vmatprep.mubr.f32.mxu0 0.0
      %4062 = vmatmul.mubr.f32.gmra.mrb[0].mxu0 %v3954
      %v4063 = vpop.f32.mrb[0].mxu0
      %v4064 = vadd.f32 %v3859, %v4063
      %v4065 = vpop.f32.mrb[0].mxu0
      %4066 = vmatprep.mubr.f32.mxu0 0.0
      %4067 = vmatmul.mubr.f32.gmra.mrb[0].mxu0 %v3956
      %v4068 = vpop.f32.mrb[0].mxu0
      %v4069 = vadd.f32 %v3864, %v4068
      %v4070 = vpop.f32.mrb[0].mxu0
      %4071 = vmatprep.mubr.f32.mxu0 0.0
      %4072 = vmatmul.mubr.f32.gmra.mrb[0].mxu0 %v3958
      %v4073 = vpop.f32.mrb[0].mxu0
      %v4074 = vadd.f32 %v3869, %v4073
      %v4075 = vpop.f32.mrb[0].mxu0
      %4076 = vmatprep.mubr.f32.mxu0 0.0
      %4077 = vmatmul.mubr.f32.gmra.mrb[0].mxu0 %v3960
      %v4078 = vpop.f32.mrb[0].mxu0
      %v4079 = vadd.f32 %v3874, %v4078
      %v4080 = vpop.f32.mrb[0].mxu0
      %4081 = vmatprep.mubr.f32.mxu0 0.0
      %4082 = vmatmul.mubr.f32.gmra.mrb[0].mxu0 %v3962
      %v4083 = vpop.f32.mrb[0].mxu0
      %v4084 = vadd.f32 %v3879, %v4083
      %v4085 = vpop.f32.mrb[0].mxu0
      %4086 = vmatprep.mubr.f32.mxu0 0.0
      %4087 = vmatmul.mubr.f32.gmra.mrb[0].mxu0 %v3964
      %v4088 = vpop.f32.mrb[0].mxu0
      %v4089 = vadd.f32 %v3884, %v4088
      %v4090 = vpop.f32.mrb[0].mxu0
      %4091 = vmatprep.mubr.f32.mxu0 0.0
      %4092 = vmatmul.mubr.f32.gmra.mrb[0].mxu0 %v3966
      %v4093 = vpop.f32.mrb[0].mxu0
      %v4094 = vadd.f32 %v3889, %v4093
      %v4095 = vpop.f32.mrb[0].mxu0
      %4096 = vmatprep.mubr.f32.mxu0 0.0
      %4097 = vmatmul.mubr.f32.gmra.mrb[0].mxu0 %v3968
      %v4098 = vpop.f32.mrb[0].mxu0
      %v4099 = vadd.f32 %v3894, %v4098
      %v4100 = vpop.f32.mrb[0].mxu0
      %4101 = vmatprep.mubr.f32.mxu0 0.0
      %4102 = vmatmul.mubr.f32.gmra.mrb[0].mxu0 %v3970
      %v4103 = vpop.f32.mrb[0].mxu0
      %v4104 = vadd.f32 %v3899, %v4103
      %v4105 = vpop.f32.mrb[0].mxu0
      %4106 = vmatprep.mubr.f32.mxu0 0.0
      %4107 = vmatmul.mubr.f32.gmra.mrb[0].mxu0 %v3972
      %v4108 = vpop.f32.mrb[0].mxu0
      %v4109 = vadd.f32 %v3904, %v4108
      %v4110 = vpop.f32.mrb[0].mxu0
      %4111 = vmatprep.mubr.f32.mxu0 0.0
      %4112 = vmatmul.mubr.f32.gmra.mrb[0].mxu0 %v3974
      %v4113 = vpop.f32.mrb[0].mxu0
      %v4114 = vadd.f32 %v3909, %v4113
      %v4115 = vpop.f32.mrb[0].mxu0
      %4116 = vmatprep.mubr.f32.mxu0 0.0
      %4117 = vmatmul.mubr.f32.gmra.mrb[0].mxu0 %v3976
      %v4118 = vpop.f32.mrb[0].mxu0
      %v4119 = vadd.f32 %v3914, %v4118
      %v4120 = vpop.f32.mrb[0].mxu0
      %4121 = vmatprep.mubr.f32.mxu0 0.0
      %4122 = vmatmul.mubr.f32.gmra.mrb[0].mxu0 %v3978
      %v4123 = vpop.f32.mrb[0].mxu0
      %v4124 = vadd.f32 %v3919, %v4123
      %v4125 = vpop.f32.mrb[0].mxu0
      %4126 = vmatprep.mubr.f32.mxu0 0.0
      %4127 = vmatmul.mubr.f32.gmra.mrb[0].mxu0 %v3980
      %v4128 = vpop.f32.mrb[0].mxu0
      %v4129 = vadd.f32 %v3924, %v4128
      %v4130 = vpop.f32.mrb[0].mxu0
      %4131 = vmatprep.mubr.f32.mxu0 0.0
      %4132 = vmatmul.mubr.f32.gmra.mrb[0].mxu0 %v3982
      %v4133 = vpop.f32.mrb[0].mxu0
      %v4134 = vadd.f32 %v3929, %v4133
      %v4135 = vpop.f32.mrb[0].mxu0
      %4136 = vmatprep.mubr.f32.mxu0 0.0
      %4137 = vmatmul.mubr.f32.gmra.mrb[0].mxu0 %v3984
      %v4138 = vpop.f32.mrb[0].mxu0
      %v4139 = vadd.f32 %v3934, %v4138
      %v4140 = vpop.f32.mrb[0].mxu0
      %4141 = vmatprep.mubr.f32.mxu0 0.0
      %4142 = vmatmul.mubr.f32.gmra.mrb[0].mxu0 %v3986
      %v4143 = vpop.f32.mrb[0].mxu0
      %v4144 = vadd.f32 %v3939, %v4143
      %v4145 = vpop.f32.mrb[0].mxu0
      %4146 = vmatprep.mubr.f32.mxu0 0.0
      %4147 = vmatmul.mubr.f32.gmra.mrb[0].mxu0 %v3988
      %v4148 = vpop.f32.mrb[0].mxu0
      %v4149 = vadd.f32 %v3944, %v4148
      %v4150 = vpop.f32.mrb[0].mxu0
      %4151 = vmatprep.mubr.f32.mxu0 0.0
      %4152 = vmatmul.mubr.f32.gmra.mrb[0].mxu0 %v3990
      %v4153 = vpop.f32.mrb[0].mxu0
      %v4154 = vadd.f32 %v3949, %v4153
      %v4155 = vpop.f32.mrb[0].mxu0
      %4156 = vdwg.mxu0
      %s4157 = scalar_lea.vmem %s3, 128
      %v4158 = vld [vmem:[%s4157] sm:$0xff]
      %v4159 = vld [vmem:[%s4157 + $0x8] sm:$0xff]
      %v4160 = vld [vmem:[%s4157 + $0x10] sm:$0xff]
      %v4161 = vld [vmem:[%s4157 + $0x18] sm:$0xff]
      %v4162 = vld [vmem:[%s4157 + $0x20] sm:$0xff]
      %v4163 = vld [vmem:[%s4157 + $0x28] sm:$0xff]
      %v4164 = vld [vmem:[%s4157 + $0x30] sm:$0xff]
      %v4165 = vld [vmem:[%s4157 + $0x38] sm:$0xff]
      %vm4166 = vcmask 1045504
      %v4167 = vrot.slane %v3640, 2
      %v4168 = vrot.slane %v3641, 2
      %v4169 = vsel %vm4166, %v4167, %v4168
      %v4170 = vrot.slane %v3642, 2
      %v4171 = vsel %vm4166, %v4168, %v4170
      %v4172 = vrot.slane %v3643, 2
      %v4173 = vsel %vm4166, %v4170, %v4172
      %v4174 = vrot.slane %v3644, 2
      %v4175 = vsel %vm4166, %v4172, %v4174
      %v4176 = vrot.slane %v3645, 2
      %v4177 = vsel %vm4166, %v4174, %v4176
      %v4178 = vrot.slane %v3646, 2
      %v4179 = vsel %vm4166, %v4176, %v4178
      %v4180 = vrot.slane %v3647, 2
      %v4181 = vsel %vm4166, %v4178, %v4180
      %v4182 = vrot.slane %v3648, 2
      %v4183 = vsel %vm4166, %v4180, %v4182
      %v4184 = vrot.slane %v3649, 2
      %v4185 = vsel %vm4166, %v4182, %v4184
      %v4186 = vrot.slane %v3650, 2
      %v4187 = vsel %vm4166, %v4184, %v4186
      %v4188 = vrot.slane %v3651, 2
      %v4189 = vsel %vm4166, %v4186, %v4188
      %v4190 = vrot.slane %v3652, 2
      %v4191 = vsel %vm4166, %v4188, %v4190
      %v4192 = vrot.slane %v3653, 2
      %v4193 = vsel %vm4166, %v4190, %v4192
      %v4194 = vrot.slane %v3654, 2
      %v4195 = vsel %vm4166, %v4192, %v4194
      %v4196 = vrot.slane %v3655, 2
      %v4197 = vsel %vm4166, %v4194, %v4196
      %v4198 = vrot.slane %v3656, 2
      %v4199 = vsel %vm4166, %v4196, %v4198
      %v4200 = vrot.slane %v3657, 2
      %v4201 = vsel %vm4166, %v4198, %v4200
      %v4202 = vrot.slane %v3658, 2
      %v4203 = vsel %vm4166, %v4200, %v4202
      %v4204 = vrot.slane %v3659, 2
      %v4205 = vsel %vm4166, %v4202, %v4204
      %v4206 = vrot.slane %v3660, 2
      %v4207 = vsel %vm4166, %v4204, %v4206
      %v4208 = vsel %vm3746, %v4169, 0
      %v4210 = vsel %vm3746, %v4171, 0
      %v4212 = vsel %vm3746, %v4173, 0
      %v4214 = vsel %vm3746, %v4175, 0
      %v4216 = vsel %vm3746, %v4177, 0
      %v4218 = vsel %vm3746, %v4179, 0
      %v4220 = vsel %vm3746, %v4181, 0
      %v4222 = vsel %vm3746, %v4183, 0
      %v4224 = vsel %vm3746, %v4185, 0
      %v4226 = vsel %vm3746, %v4187, 0
      %v4228 = vsel %vm3746, %v4189, 0
      %v4230 = vsel %vm3746, %v4191, 0
      %v4232 = vsel %vm3746, %v4193, 0
      %v4234 = vsel %vm3746, %v4195, 0
      %v4236 = vsel %vm3746, %v4197, 0
      %v4238 = vsel %vm3746, %v4199, 0
      %v4240 = vsel %vm3746, %v4201, 0
      %v4242 = vsel %vm3746, %v4203, 0
      %v4244 = vsel %vm3746, %v4205, 0
      %v4246 = vsel %vm3746, %v4207, 0
      %4248 = vmatprep.subr.mxu0 0.0
      %4249 = vmatpush1.msra.mxu0 %v4158
      %4250 = vmatprep.subr.mxu0 0.0
      %4251 = vmatpush1.msra.mxu0 %v4159
      %4252 = vmatprep.subr.mxu0 0.0
      %4253 = vmatpush1.msra.mxu0 %v4160
      %4254 = vmatprep.subr.mxu0 0.0
      %4255 = vmatpush1.msra.mxu0 %v4161
      %4256 = vmatprep.subr.mxu0 0.0
      %4257 = vmatpush1.msra.mxu0 %v4162
      %4258 = vmatprep.subr.mxu0 0.0
      %4259 = vmatpush1.msra.mxu0 %v4163
      %4260 = vmatprep.subr.mxu0 0.0
      %4261 = vmatpush1.msra.mxu0 %v4164
      %4262 = vmatprep.subr.mxu0 0.0
      %4263 = vmatpush1.msra.mxu0 %v4165
      %4264 = vmatprep.subr.mxu0 0.0
      %4265 = vmatpush1.msra.mxu0 0.0
      %4266 = vmatprep.subr.mxu0 0.0
      %4267 = vmatpush1.msra.mxu0 0.0
      %4268 = vmatprep.subr.mxu0 0.0
      %4269 = vmatpush1.msra.mxu0 0.0
      %4270 = vmatprep.subr.mxu0 0.0
      %4271 = vmatpush1.msra.mxu0 0.0
      %4272 = vmatprep.subr.mxu0 0.0
      %4273 = vmatpush1.msra.mxu0 0.0
      %4274 = vmatprep.subr.mxu0 0.0
      %4275 = vmatpush1.msra.mxu0 0.0
      %4276 = vmatprep.subr.mxu0 0.0
      %4277 = vmatpush1.msra.mxu0 0.0
      %4278 = vmatprep.subr.mxu0 0.0
      %4279 = vmatpush1.msra.mxu0 0.0
      %4280 = vmatprep.subr.mxu0 0.0
      %4281 = vmatpush1.msra.mxu0 0.0
      %4282 = vmatprep.subr.mxu0 0.0
      %4283 = vmatpush1.msra.mxu0 0.0
      %4284 = vmatprep.subr.mxu0 0.0
      %4285 = vmatpush1.msra.mxu0 0.0
      %4286 = vmatprep.subr.mxu0 0.0
      %4287 = vmatpush1.msra.mxu0 0.0
      %4288 = vmatprep.subr.mxu0 0.0
      %4289 = vmatpush1.msra.mxu0 0.0
      %4290 = vmatprep.subr.mxu0 0.0
      %4291 = vmatpush1.msra.mxu0 0.0
      %4292 = vmatprep.subr.mxu0 0.0
      %4293 = vmatpush1.msra.mxu0 0.0
      %4294 = vmatprep.subr.mxu0 0.0
      %4295 = vmatpush1.msra.mxu0 0.0
      %4296 = vmatprep.subr.mxu0 0.0
      %4297 = vmatpush1.msra.mxu0 0.0
      %4298 = vmatprep.subr.mxu0 0.0
      %4299 = vmatpush1.msra.mxu0 0.0
      %4300 = vmatprep.subr.mxu0 0.0
      %4301 = vmatpush1.msra.mxu0 0.0
      %4302 = vmatprep.subr.mxu0 0.0
      %4303 = vmatpush1.msra.mxu0 0.0
      %4304 = vmatprep.subr.mxu0 0.0
      %4305 = vmatpush1.msra.mxu0 0.0
      %4306 = vmatprep.subr.mxu0 0.0
      %4307 = vmatpush1.msra.mxu0 0.0
      %4308 = vmatprep.subr.mxu0 0.0
      %4309 = vmatpush1.msra.mxu0 0.0
      %4310 = vmatprep.subr.mxu0 0.0
      %4311 = vmatpush1.msra.mxu0 0.0
      %4312 = vmatprep.mubr.f32.mxu0 0.0
      %4313 = vmatmul.mubr.f32.gmra.mrb[0].mxu0 %v4208
      %v4314 = vpop.f32.mrb[0].mxu0
      %v4315 = vadd.f32 0.0, %v4314
      %v4316 = vpop.f32.mrb[0].mxu0
      %4317 = vmatprep.mubr.f32.mxu0 0.0
      %4318 = vmatmul.mubr.f32.gmra.mrb[0].mxu0 %v4210
      %v4319 = vpop.f32.mrb[0].mxu0
      %v4320 = vadd.f32 0.0, %v4319
      %v4321 = vpop.f32.mrb[0].mxu0
      %4322 = vmatprep.mubr.f32.mxu0 0.0
      %4323 = vmatmul.mubr.f32.gmra.mrb[0].mxu0 %v4212
      %v4324 = vpop.f32.mrb[0].mxu0
      %v4325 = vadd.f32 0.0, %v4324
      %v4326 = vpop.f32.mrb[0].mxu0
      %4327 = vmatprep.mubr.f32.mxu0 0.0
      %4328 = vmatmul.mubr.f32.gmra.mrb[0].mxu0 %v4214
      %v4329 = vpop.f32.mrb[0].mxu0
      %v4330 = vadd.f32 0.0, %v4329
      %v4331 = vpop.f32.mrb[0].mxu0
      %4332 = vmatprep.mubr.f32.mxu0 0.0
      %4333 = vmatmul.mubr.f32.gmra.mrb[0].mxu0 %v4216
      %v4334 = vpop.f32.mrb[0].mxu0
      %v4335 = vadd.f32 0.0, %v4334
      %v4336 = vpop.f32.mrb[0].mxu0
      %4337 = vmatprep.mubr.f32.mxu0 0.0
      %4338 = vmatmul.mubr.f32.gmra.mrb[0].mxu0 %v4218
      %v4339 = vpop.f32.mrb[0].mxu0
      %v4340 = vadd.f32 0.0, %v4339
      %v4341 = vpop.f32.mrb[0].mxu0
      %4342 = vmatprep.mubr.f32.mxu0 0.0
      %4343 = vmatmul.mubr.f32.gmra.mrb[0].mxu0 %v4220
      %v4344 = vpop.f32.mrb[0].mxu0
      %v4345 = vadd.f32 0.0, %v4344
      %v4346 = vpop.f32.mrb[0].mxu0
      %4347 = vmatprep.mubr.f32.mxu0 0.0
      %4348 = vmatmul.mubr.f32.gmra.mrb[0].mxu0 %v4222
      %v4349 = vpop.f32.mrb[0].mxu0
      %v4350 = vadd.f32 0.0, %v4349
      %v4351 = vpop.f32.mrb[0].mxu0
      %4352 = vmatprep.mubr.f32.mxu0 0.0
      %4353 = vmatmul.mubr.f32.gmra.mrb[0].mxu0 %v4224
      %v4354 = vpop.f32.mrb[0].mxu0
      %v4355 = vadd.f32 0.0, %v4354
      %v4356 = vpop.f32.mrb[0].mxu0
      %4357 = vmatprep.mubr.f32.mxu0 0.0
      %4358 = vmatmul.mubr.f32.gmra.mrb[0].mxu0 %v4226
      %v4359 = vpop.f32.mrb[0].mxu0
      %v4360 = vadd.f32 0.0, %v4359
      %v4361 = vpop.f32.mrb[0].mxu0
      %4362 = vmatprep.mubr.f32.mxu0 0.0
      %4363 = vmatmul.mubr.f32.gmra.mrb[0].mxu0 %v4228
      %v4364 = vpop.f32.mrb[0].mxu0
      %v4365 = vadd.f32 0.0, %v4364
      %v4366 = vpop.f32.mrb[0].mxu0
      %4367 = vmatprep.mubr.f32.mxu0 0.0
      %4368 = vmatmul.mubr.f32.gmra.mrb[0].mxu0 %v4230
      %v4369 = vpop.f32.mrb[0].mxu0
      %v4370 = vadd.f32 0.0, %v4369
      %v4371 = vpop.f32.mrb[0].mxu0
      %4372 = vmatprep.mubr.f32.mxu0 0.0
      %4373 = vmatmul.mubr.f32.gmra.mrb[0].mxu0 %v4232
      %v4374 = vpop.f32.mrb[0].mxu0
      %v4375 = vadd.f32 0.0, %v4374
      %v4376 = vpop.f32.mrb[0].mxu0
      %4377 = vmatprep.mubr.f32.mxu0 0.0
      %4378 = vmatmul.mubr.f32.gmra.mrb[0].mxu0 %v4234
      %v4379 = vpop.f32.mrb[0].mxu0
      %v4380 = vadd.f32 0.0, %v4379
      %v4381 = vpop.f32.mrb[0].mxu0
      %4382 = vmatprep.mubr.f32.mxu0 0.0
      %4383 = vmatmul.mubr.f32.gmra.mrb[0].mxu0 %v4236
      %v4384 = vpop.f32.mrb[0].mxu0
      %v4385 = vadd.f32 0.0, %v4384
      %v4386 = vpop.f32.mrb[0].mxu0
      %4387 = vmatprep.mubr.f32.mxu0 0.0
      %4388 = vmatmul.mubr.f32.gmra.mrb[0].mxu0 %v4238
      %v4389 = vpop.f32.mrb[0].mxu0
      %v4390 = vadd.f32 0.0, %v4389
      %v4391 = vpop.f32.mrb[0].mxu0
      %4392 = vmatprep.mubr.f32.mxu0 0.0
      %4393 = vmatmul.mubr.f32.gmra.mrb[0].mxu0 %v4240
      %v4394 = vpop.f32.mrb[0].mxu0
      %v4395 = vadd.f32 0.0, %v4394
      %v4396 = vpop.f32.mrb[0].mxu0
      %4397 = vmatprep.mubr.f32.mxu0 0.0
      %4398 = vmatmul.mubr.f32.gmra.mrb[0].mxu0 %v4242
      %v4399 = vpop.f32.mrb[0].mxu0
      %v4400 = vadd.f32 0.0, %v4399
      %v4401 = vpop.f32.mrb[0].mxu0
      %4402 = vmatprep.mubr.f32.mxu0 0.0
      %4403 = vmatmul.mubr.f32.gmra.mrb[0].mxu0 %v4244
      %v4404 = vpop.f32.mrb[0].mxu0
      %v4405 = vadd.f32 0.0, %v4404
      %v4406 = vpop.f32.mrb[0].mxu0
      %4407 = vmatprep.mubr.f32.mxu0 0.0
      %4408 = vmatmul.mubr.f32.gmra.mrb[0].mxu0 %v4246
      %v4409 = vpop.f32.mrb[0].mxu0
      %v4410 = vadd.f32 0.0, %v4409
      %v4411 = vpop.f32.mrb[0].mxu0
      %4412 = vdwg.mxu0
      %v4413 = vadd.f32 %v4059, %v4315
      %v4414 = vadd.f32 %v4064, %v4320
      %v4415 = vadd.f32 %v4069, %v4325
      %v4416 = vadd.f32 %v4074, %v4330
      %v4417 = vadd.f32 %v4079, %v4335
      %v4418 = vadd.f32 %v4084, %v4340
      %v4419 = vadd.f32 %v4089, %v4345
      %v4420 = vadd.f32 %v4094, %v4350
      %v4421 = vadd.f32 %v4099, %v4355
      %v4422 = vadd.f32 %v4104, %v4360
      %v4423 = vadd.f32 %v4109, %v4365
      %v4424 = vadd.f32 %v4114, %v4370
      %v4425 = vadd.f32 %v4119, %v4375
      %v4426 = vadd.f32 %v4124, %v4380
      %v4427 = vadd.f32 %v4129, %v4385
      %v4428 = vadd.f32 %v4134, %v4390
      %v4429 = vadd.f32 %v4139, %v4395
      %v4430 = vadd.f32 %v4144, %v4400
      %v4431 = vadd.f32 %v4149, %v4405
      %v4432 = vadd.f32 %v4154, %v4410
      %s4433 = scalar_lea.vmem %s3, 192
      %v4434 = vld [vmem:[%s4433] sm:$0xff]
      %v4435 = vld [vmem:[%s4433 + $0x8] sm:$0xff]
      %v4436 = vld [vmem:[%s4433 + $0x10] sm:$0xff]
      %v4437 = vld [vmem:[%s4433 + $0x18] sm:$0xff]
      %v4438 = vld [vmem:[%s4433 + $0x20] sm:$0xff]
      %v4439 = vld [vmem:[%s4433 + $0x28] sm:$0xff]
      %v4440 = vld [vmem:[%s4433 + $0x30] sm:$0xff]
      %v4441 = vld [vmem:[%s4433 + $0x38] sm:$0xff]
      %v4444 = vrot.slane %v3642, 4
      %v4445 = vrot.slane %v3643, 4
      %v4446 = vsel %vm454, %v4444, %v4445
      %v4447 = vrot.slane %v3644, 4
      %v4448 = vsel %vm454, %v4445, %v4447
      %v4449 = vrot.slane %v3645, 4
      %v4450 = vsel %vm454, %v4447, %v4449
      %v4451 = vrot.slane %v3646, 4
      %v4452 = vsel %vm454, %v4449, %v4451
      %v4453 = vrot.slane %v3647, 4
      %v4454 = vsel %vm454, %v4451, %v4453
      %v4455 = vrot.slane %v3648, 4
      %v4456 = vsel %vm454, %v4453, %v4455
      %v4457 = vrot.slane %v3649, 4
      %v4458 = vsel %vm454, %v4455, %v4457
      %v4459 = vrot.slane %v3650, 4
      %v4460 = vsel %vm454, %v4457, %v4459
      %v4461 = vrot.slane %v3651, 4
      %v4462 = vsel %vm454, %v4459, %v4461
      %v4463 = vrot.slane %v3652, 4
      %v4464 = vsel %vm454, %v4461, %v4463
      %v4465 = vrot.slane %v3653, 4
      %v4466 = vsel %vm454, %v4463, %v4465
      %v4467 = vrot.slane %v3654, 4
      %v4468 = vsel %vm454, %v4465, %v4467
      %v4469 = vrot.slane %v3655, 4
      %v4470 = vsel %vm454, %v4467, %v4469
      %v4471 = vrot.slane %v3656, 4
      %v4472 = vsel %vm454, %v4469, %v4471
      %v4473 = vrot.slane %v3657, 4
      %v4474 = vsel %vm454, %v4471, %v4473
      %v4475 = vrot.slane %v3658, 4
      %v4476 = vsel %vm454, %v4473, %v4475
      %v4477 = vrot.slane %v3659, 4
      %v4478 = vsel %vm454, %v4475, %v4477
      %v4479 = vrot.slane %v3660, 4
      %v4480 = vsel %vm454, %v4477, %v4479
      %v4481 = vrot.slane %v3661, 4
      %v4482 = vsel %vm454, %v4479, %v4481
      %v4483 = vrot.slane %v3662, 4
      %v4484 = vsel %vm454, %v4481, %v4483
      %v4485 = vsel %vm3746, %v4446, 0
      %v4487 = vsel %vm3746, %v4448, 0
      %v4489 = vsel %vm3746, %v4450, 0
      %v4491 = vsel %vm3746, %v4452, 0
      %v4493 = vsel %vm3746, %v4454, 0
      %v4495 = vsel %vm3746, %v4456, 0
      %v4497 = vsel %vm3746, %v4458, 0
      %v4499 = vsel %vm3746, %v4460, 0
      %v4501 = vsel %vm3746, %v4462, 0
      %v4503 = vsel %vm3746, %v4464, 0
      %v4505 = vsel %vm3746, %v4466, 0
      %v4507 = vsel %vm3746, %v4468, 0
      %v4509 = vsel %vm3746, %v4470, 0
      %v4511 = vsel %vm3746, %v4472, 0
      %v4513 = vsel %vm3746, %v4474, 0
      %v4515 = vsel %vm3746, %v4476, 0
      %v4517 = vsel %vm3746, %v4478, 0
      %v4519 = vsel %vm3746, %v4480, 0
      %v4521 = vsel %vm3746, %v4482, 0
      %v4523 = vsel %vm3746, %v4484, 0
      %4525 = vmatprep.subr.mxu0 0.0
      %4526 = vmatpush1.msra.mxu0 %v4434
      %4527 = vmatprep.subr.mxu0 0.0
      %4528 = vmatpush1.msra.mxu0 %v4435
      %4529 = vmatprep.subr.mxu0 0.0
      %4530 = vmatpush1.msra.mxu0 %v4436
      %4531 = vmatprep.subr.mxu0 0.0
      %4532 = vmatpush1.msra.mxu0 %v4437
      %4533 = vmatprep.subr.mxu0 0.0
      %4534 = vmatpush1.msra.mxu0 %v4438
      %4535 = vmatprep.subr.mxu0 0.0
      %4536 = vmatpush1.msra.mxu0 %v4439
      %4537 = vmatprep.subr.mxu0 0.0
      %4538 = vmatpush1.msra.mxu0 %v4440
      %4539 = vmatprep.subr.mxu0 0.0
      %4540 = vmatpush1.msra.mxu0 %v4441
      %4541 = vmatprep.subr.mxu0 0.0
      %4542 = vmatpush1.msra.mxu0 0.0
      %4543 = vmatprep.subr.mxu0 0.0
      %4544 = vmatpush1.msra.mxu0 0.0
      %4545 = vmatprep.subr.mxu0 0.0
      %4546 = vmatpush1.msra.mxu0 0.0
      %4547 = vmatprep.subr.mxu0 0.0
      %4548 = vmatpush1.msra.mxu0 0.0
      %4549 = vmatprep.subr.mxu0 0.0
      %4550 = vmatpush1.msra.mxu0 0.0
      %4551 = vmatprep.subr.mxu0 0.0
      %4552 = vmatpush1.msra.mxu0 0.0
      %4553 = vmatprep.subr.mxu0 0.0
      %4554 = vmatpush1.msra.mxu0 0.0
      %4555 = vmatprep.subr.mxu0 0.0
      %4556 = vmatpush1.msra.mxu0 0.0
      %4557 = vmatprep.subr.mxu0 0.0
      %4558 = vmatpush1.msra.mxu0 0.0
      %4559 = vmatprep.subr.mxu0 0.0
      %4560 = vmatpush1.msra.mxu0 0.0
      %4561 = vmatprep.subr.mxu0 0.0
      %4562 = vmatpush1.msra.mxu0 0.0
      %4563 = vmatprep.subr.mxu0 0.0
      %4564 = vmatpush1.msra.mxu0 0.0
      %4565 = vmatprep.subr.mxu0 0.0
      %4566 = vmatpush1.msra.mxu0 0.0
      %4567 = vmatprep.subr.mxu0 0.0
      %4568 = vmatpush1.msra.mxu0 0.0
      %4569 = vmatprep.subr.mxu0 0.0
      %4570 = vmatpush1.msra.mxu0 0.0
      %4571 = vmatprep.subr.mxu0 0.0
      %4572 = vmatpush1.msra.mxu0 0.0
      %4573 = vmatprep.subr.mxu0 0.0
      %4574 = vmatpush1.msra.mxu0 0.0
      %4575 = vmatprep.subr.mxu0 0.0
      %4576 = vmatpush1.msra.mxu0 0.0
      %4577 = vmatprep.subr.mxu0 0.0
      %4578 = vmatpush1.msra.mxu0 0.0
      %4579 = vmatprep.subr.mxu0 0.0
      %4580 = vmatpush1.msra.mxu0 0.0
      %4581 = vmatprep.subr.mxu0 0.0
      %4582 = vmatpush1.msra.mxu0 0.0
      %4583 = vmatprep.subr.mxu0 0.0
      %4584 = vmatpush1.msra.mxu0 0.0
      %4585 = vmatprep.subr.mxu0 0.0
      %4586 = vmatpush1.msra.mxu0 0.0
      %4587 = vmatprep.subr.mxu0 0.0
      %4588 = vmatpush1.msra.mxu0 0.0
      %4589 = vmatprep.mubr.f32.mxu0 0.0
      %4590 = vmatmul.mubr.f32.gmra.mrb[0].mxu0 %v4485
      %v4591 = vpop.f32.mrb[0].mxu0
      %v4592 = vadd.f32 0.0, %v4591
      %v4593 = vpop.f32.mrb[0].mxu0
      %4594 = vmatprep.mubr.f32.mxu0 0.0
      %4595 = vmatmul.mubr.f32.gmra.mrb[0].mxu0 %v4487
      %v4596 = vpop.f32.mrb[0].mxu0
      %v4597 = vadd.f32 0.0, %v4596
      %v4598 = vpop.f32.mrb[0].mxu0
      %4599 = vmatprep.mubr.f32.mxu0 0.0
      %4600 = vmatmul.mubr.f32.gmra.mrb[0].mxu0 %v4489
      %v4601 = vpop.f32.mrb[0].mxu0
      %v4602 = vadd.f32 0.0, %v4601
      %v4603 = vpop.f32.mrb[0].mxu0
      %4604 = vmatprep.mubr.f32.mxu0 0.0
      %4605 = vmatmul.mubr.f32.gmra.mrb[0].mxu0 %v4491
      %v4606 = vpop.f32.mrb[0].mxu0
      %v4607 = vadd.f32 0.0, %v4606
      %v4608 = vpop.f32.mrb[0].mxu0
      %4609 = vmatprep.mubr.f32.mxu0 0.0
      %4610 = vmatmul.mubr.f32.gmra.mrb[0].mxu0 %v4493
      %v4611 = vpop.f32.mrb[0].mxu0
      %v4612 = vadd.f32 0.0, %v4611
      %v4613 = vpop.f32.mrb[0].mxu0
      %4614 = vmatprep.mubr.f32.mxu0 0.0
      %4615 = vmatmul.mubr.f32.gmra.mrb[0].mxu0 %v4495
      %v4616 = vpop.f32.mrb[0].mxu0
      %v4617 = vadd.f32 0.0, %v4616
      %v4618 = vpop.f32.mrb[0].mxu0
      %4619 = vmatprep.mubr.f32.mxu0 0.0
      %4620 = vmatmul.mubr.f32.gmra.mrb[0].mxu0 %v4497
      %v4621 = vpop.f32.mrb[0].mxu0
      %v4622 = vadd.f32 0.0, %v4621
      %v4623 = vpop.f32.mrb[0].mxu0
      %4624 = vmatprep.mubr.f32.mxu0 0.0
      %4625 = vmatmul.mubr.f32.gmra.mrb[0].mxu0 %v4499
      %v4626 = vpop.f32.mrb[0].mxu0
      %v4627 = vadd.f32 0.0, %v4626
      %v4628 = vpop.f32.mrb[0].mxu0
      %4629 = vmatprep.mubr.f32.mxu0 0.0
      %4630 = vmatmul.mubr.f32.gmra.mrb[0].mxu0 %v4501
      %v4631 = vpop.f32.mrb[0].mxu0
      %v4632 = vadd.f32 0.0, %v4631
      %v4633 = vpop.f32.mrb[0].mxu0
      %4634 = vmatprep.mubr.f32.mxu0 0.0
      %4635 = vmatmul.mubr.f32.gmra.mrb[0].mxu0 %v4503
      %v4636 = vpop.f32.mrb[0].mxu0
      %v4637 = vadd.f32 0.0, %v4636
      %v4638 = vpop.f32.mrb[0].mxu0
      %4639 = vmatprep.mubr.f32.mxu0 0.0
      %4640 = vmatmul.mubr.f32.gmra.mrb[0].mxu0 %v4505
      %v4641 = vpop.f32.mrb[0].mxu0
      %v4642 = vadd.f32 0.0, %v4641
      %v4643 = vpop.f32.mrb[0].mxu0
      %4644 = vmatprep.mubr.f32.mxu0 0.0
      %4645 = vmatmul.mubr.f32.gmra.mrb[0].mxu0 %v4507
      %v4646 = vpop.f32.mrb[0].mxu0
      %v4647 = vadd.f32 0.0, %v4646
      %v4648 = vpop.f32.mrb[0].mxu0
      %4649 = vmatprep.mubr.f32.mxu0 0.0
      %4650 = vmatmul.mubr.f32.gmra.mrb[0].mxu0 %v4509
      %v4651 = vpop.f32.mrb[0].mxu0
      %v4652 = vadd.f32 0.0, %v4651
      %v4653 = vpop.f32.mrb[0].mxu0
      %4654 = vmatprep.mubr.f32.mxu0 0.0
      %4655 = vmatmul.mubr.f32.gmra.mrb[0].mxu0 %v4511
      %v4656 = vpop.f32.mrb[0].mxu0
      %v4657 = vadd.f32 0.0, %v4656
      %v4658 = vpop.f32.mrb[0].mxu0
      %4659 = vmatprep.mubr.f32.mxu0 0.0
      %4660 = vmatmul.mubr.f32.gmra.mrb[0].mxu0 %v4513
      %v4661 = vpop.f32.mrb[0].mxu0
      %v4662 = vadd.f32 0.0, %v4661
      %v4663 = vpop.f32.mrb[0].mxu0
      %4664 = vmatprep.mubr.f32.mxu0 0.0
      %4665 = vmatmul.mubr.f32.gmra.mrb[0].mxu0 %v4515
      %v4666 = vpop.f32.mrb[0].mxu0
      %v4667 = vadd.f32 0.0, %v4666
      %v4668 = vpop.f32.mrb[0].mxu0
      %4669 = vmatprep.mubr.f32.mxu0 0.0
      %4670 = vmatmul.mubr.f32.gmra.mrb[0].mxu0 %v4517
      %v4671 = vpop.f32.mrb[0].mxu0
      %v4672 = vadd.f32 0.0, %v4671
      %v4673 = vpop.f32.mrb[0].mxu0
      %4674 = vmatprep.mubr.f32.mxu0 0.0
      %4675 = vmatmul.mubr.f32.gmra.mrb[0].mxu0 %v4519
      %v4676 = vpop.f32.mrb[0].mxu0
      %v4677 = vadd.f32 0.0, %v4676
      %v4678 = vpop.f32.mrb[0].mxu0
      %4679 = vmatprep.mubr.f32.mxu0 0.0
      %4680 = vmatmul.mubr.f32.gmra.mrb[0].mxu0 %v4521
      %v4681 = vpop.f32.mrb[0].mxu0
      %v4682 = vadd.f32 0.0, %v4681
      %v4683 = vpop.f32.mrb[0].mxu0
      %4684 = vmatprep.mubr.f32.mxu0 0.0
      %4685 = vmatmul.mubr.f32.gmra.mrb[0].mxu0 %v4523
      %v4686 = vpop.f32.mrb[0].mxu0
      %v4687 = vadd.f32 0.0, %v4686
      %v4688 = vpop.f32.mrb[0].mxu0
      %4689 = vdwg.mxu0
      %v4690 = vadd.f32 %v4413, %v4592
      %v4691 = vadd.f32 %v4414, %v4597
      %v4692 = vadd.f32 %v4415, %v4602
      %v4693 = vadd.f32 %v4416, %v4607
      %v4694 = vadd.f32 %v4417, %v4612
      %v4695 = vadd.f32 %v4418, %v4617
      %v4696 = vadd.f32 %v4419, %v4622
      %v4697 = vadd.f32 %v4420, %v4627
      %v4698 = vadd.f32 %v4421, %v4632
      %v4699 = vadd.f32 %v4422, %v4637
      %v4700 = vadd.f32 %v4423, %v4642
      %v4701 = vadd.f32 %v4424, %v4647
      %v4702 = vadd.f32 %v4425, %v4652
      %v4703 = vadd.f32 %v4426, %v4657
      %v4704 = vadd.f32 %v4427, %v4662
      %v4705 = vadd.f32 %v4428, %v4667
      %v4706 = vadd.f32 %v4429, %v4672
      %v4707 = vadd.f32 %v4430, %v4677
      %v4708 = vadd.f32 %v4431, %v4682
      %v4709 = vadd.f32 %v4432, %v4687
      %s4710 = scalar_lea.vmem %s3, 256
      %v4711 = vld [vmem:[%s4710] sm:$0xff]
      %v4712 = vld [vmem:[%s4710 + $0x8] sm:$0xff]
      %v4713 = vld [vmem:[%s4710 + $0x10] sm:$0xff]
      %v4714 = vld [vmem:[%s4710 + $0x18] sm:$0xff]
      %v4715 = vld [vmem:[%s4710 + $0x20] sm:$0xff]
      %v4716 = vld [vmem:[%s4710 + $0x28] sm:$0xff]
      %v4717 = vld [vmem:[%s4710 + $0x30] sm:$0xff]
      %v4718 = vld [vmem:[%s4710 + $0x38] sm:$0xff]
      %vm4719 = vcmask 1042432
      %v4720 = vrot.slane %v3642, 5
      %v4721 = vrot.slane %v3643, 5
      %v4722 = vsel %vm4719, %v4720, %v4721
      %v4723 = vrot.slane %v3644, 5
      %v4724 = vsel %vm4719, %v4721, %v4723
      %v4725 = vrot.slane %v3645, 5
      %v4726 = vsel %vm4719, %v4723, %v4725
      %v4727 = vrot.slane %v3646, 5
      %v4728 = vsel %vm4719, %v4725, %v4727
      %v4729 = vrot.slane %v3647, 5
      %v4730 = vsel %vm4719, %v4727, %v4729
      %v4731 = vrot.slane %v3648, 5
      %v4732 = vsel %vm4719, %v4729, %v4731
      %v4733 = vrot.slane %v3649, 5
      %v4734 = vsel %vm4719, %v4731, %v4733
      %v4735 = vrot.slane %v3650, 5
      %v4736 = vsel %vm4719, %v4733, %v4735
      %v4737 = vrot.slane %v3651, 5
      %v4738 = vsel %vm4719, %v4735, %v4737
      %v4739 = vrot.slane %v3652, 5
      %v4740 = vsel %vm4719, %v4737, %v4739
      %v4741 = vrot.slane %v3653, 5
      %v4742 = vsel %vm4719, %v4739, %v4741
      %v4743 = vrot.slane %v3654, 5
      %v4744 = vsel %vm4719, %v4741, %v4743
      %v4745 = vrot.slane %v3655, 5
      %v4746 = vsel %vm4719, %v4743, %v4745
      %v4747 = vrot.slane %v3656, 5
      %v4748 = vsel %vm4719, %v4745, %v4747
      %v4749 = vrot.slane %v3657, 5
      %v4750 = vsel %vm4719, %v4747, %v4749
      %v4751 = vrot.slane %v3658, 5
      %v4752 = vsel %vm4719, %v4749, %v4751
      %v4753 = vrot.slane %v3659, 5
      %v4754 = vsel %vm4719, %v4751, %v4753
      %v4755 = vrot.slane %v3660, 5
      %v4756 = vsel %vm4719, %v4753, %v4755
      %v4757 = vrot.slane %v3661, 5
      %v4758 = vsel %vm4719, %v4755, %v4757
      %v4759 = vrot.slane %v3662, 5
      %v4760 = vsel %vm4719, %v4757, %v4759
      %v4761 = vsel %vm3746, %v4722, 0
      %v4763 = vsel %vm3746, %v4724, 0
      %v4765 = vsel %vm3746, %v4726, 0
      %v4767 = vsel %vm3746, %v4728, 0
      %v4769 = vsel %vm3746, %v4730, 0
      %v4771 = vsel %vm3746, %v4732, 0
      %v4773 = vsel %vm3746, %v4734, 0
      %v4775 = vsel %vm3746, %v4736, 0
      %v4777 = vsel %vm3746, %v4738, 0
      %v4779 = vsel %vm3746, %v4740, 0
      %v4781 = vsel %vm3746, %v4742, 0
      %v4783 = vsel %vm3746, %v4744, 0
      %v4785 = vsel %vm3746, %v4746, 0
      %v4787 = vsel %vm3746, %v4748, 0
      %v4789 = vsel %vm3746, %v4750, 0
      %v4791 = vsel %vm3746, %v4752, 0
      %v4793 = vsel %vm3746, %v4754, 0
      %v4795 = vsel %vm3746, %v4756, 0
      %v4797 = vsel %vm3746, %v4758, 0
      %v4799 = vsel %vm3746, %v4760, 0
      %4801 = vmatprep.subr.mxu0 0.0
      %4802 = vmatpush1.msra.mxu0 %v4711
      %4803 = vmatprep.subr.mxu0 0.0
      %4804 = vmatpush1.msra.mxu0 %v4712
      %4805 = vmatprep.subr.mxu0 0.0
      %4806 = vmatpush1.msra.mxu0 %v4713
      %4807 = vmatprep.subr.mxu0 0.0
      %4808 = vmatpush1.msra.mxu0 %v4714
      %4809 = vmatprep.subr.mxu0 0.0
      %4810 = vmatpush1.msra.mxu0 %v4715
      %4811 = vmatprep.subr.mxu0 0.0
      %4812 = vmatpush1.msra.mxu0 %v4716
      %4813 = vmatprep.subr.mxu0 0.0
      %4814 = vmatpush1.msra.mxu0 %v4717
      %4815 = vmatprep.subr.mxu0 0.0
      %4816 = vmatpush1.msra.mxu0 %v4718
      %4817 = vmatprep.subr.mxu0 0.0
      %4818 = vmatpush1.msra.mxu0 0.0
      %4819 = vmatprep.subr.mxu0 0.0
      %4820 = vmatpush1.msra.mxu0 0.0
      %4821 = vmatprep.subr.mxu0 0.0
      %4822 = vmatpush1.msra.mxu0 0.0
      %4823 = vmatprep.subr.mxu0 0.0
      %4824 = vmatpush1.msra.mxu0 0.0
      %4825 = vmatprep.subr.mxu0 0.0
      %4826 = vmatpush1.msra.mxu0 0.0
      %4827 = vmatprep.subr.mxu0 0.0
      %4828 = vmatpush1.msra.mxu0 0.0
      %4829 = vmatprep.subr.mxu0 0.0
      %4830 = vmatpush1.msra.mxu0 0.0
      %4831 = vmatprep.subr.mxu0 0.0
      %4832 = vmatpush1.msra.mxu0 0.0
      %4833 = vmatprep.subr.mxu0 0.0
      %4834 = vmatpush1.msra.mxu0 0.0
      %4835 = vmatprep.subr.mxu0 0.0
      %4836 = vmatpush1.msra.mxu0 0.0
      %4837 = vmatprep.subr.mxu0 0.0
      %4838 = vmatpush1.msra.mxu0 0.0
      %4839 = vmatprep.subr.mxu0 0.0
      %4840 = vmatpush1.msra.mxu0 0.0
      %4841 = vmatprep.subr.mxu0 0.0
      %4842 = vmatpush1.msra.mxu0 0.0
      %4843 = vmatprep.subr.mxu0 0.0
      %4844 = vmatpush1.msra.mxu0 0.0
      %4845 = vmatprep.subr.mxu0 0.0
      %4846 = vmatpush1.msra.mxu0 0.0
      %4847 = vmatprep.subr.mxu0 0.0
      %4848 = vmatpush1.msra.mxu0 0.0
      %4849 = vmatprep.subr.mxu0 0.0
      %4850 = vmatpush1.msra.mxu0 0.0
      %4851 = vmatprep.subr.mxu0 0.0
      %4852 = vmatpush1.msra.mxu0 0.0
      %4853 = vmatprep.subr.mxu0 0.0
      %4854 = vmatpush1.msra.mxu0 0.0
      %4855 = vmatprep.subr.mxu0 0.0
      %4856 = vmatpush1.msra.mxu0 0.0
      %4857 = vmatprep.subr.mxu0 0.0
      %4858 = vmatpush1.msra.mxu0 0.0
      %4859 = vmatprep.subr.mxu0 0.0
      %4860 = vmatpush1.msra.mxu0 0.0
      %4861 = vmatprep.subr.mxu0 0.0
      %4862 = vmatpush1.msra.mxu0 0.0
      %4863 = vmatprep.subr.mxu0 0.0
      %4864 = vmatpush1.msra.mxu0 0.0
      %4865 = vmatprep.mubr.f32.mxu0 0.0
      %4866 = vmatmul.mubr.f32.gmra.mrb[0].mxu0 %v4761
      %v4867 = vpop.f32.mrb[0].mxu0
      %v4868 = vadd.f32 0.0, %v4867
      %v4869 = vpop.f32.mrb[0].mxu0
      %4870 = vmatprep.mubr.f32.mxu0 0.0
      %4871 = vmatmul.mubr.f32.gmra.mrb[0].mxu0 %v4763
      %v4872 = vpop.f32.mrb[0].mxu0
      %v4873 = vadd.f32 0.0, %v4872
      %v4874 = vpop.f32.mrb[0].mxu0
      %4875 = vmatprep.mubr.f32.mxu0 0.0
      %4876 = vmatmul.mubr.f32.gmra.mrb[0].mxu0 %v4765
      %v4877 = vpop.f32.mrb[0].mxu0
      %v4878 = vadd.f32 0.0, %v4877
      %v4879 = vpop.f32.mrb[0].mxu0
      %4880 = vmatprep.mubr.f32.mxu0 0.0
      %4881 = vmatmul.mubr.f32.gmra.mrb[0].mxu0 %v4767
      %v4882 = vpop.f32.mrb[0].mxu0
      %v4883 = vadd.f32 0.0, %v4882
      %v4884 = vpop.f32.mrb[0].mxu0
      %4885 = vmatprep.mubr.f32.mxu0 0.0
      %4886 = vmatmul.mubr.f32.gmra.mrb[0].mxu0 %v4769
      %v4887 = vpop.f32.mrb[0].mxu0
      %v4888 = vadd.f32 0.0, %v4887
      %v4889 = vpop.f32.mrb[0].mxu0
      %4890 = vmatprep.mubr.f32.mxu0 0.0
      %4891 = vmatmul.mubr.f32.gmra.mrb[0].mxu0 %v4771
      %v4892 = vpop.f32.mrb[0].mxu0
      %v4893 = vadd.f32 0.0, %v4892
      %v4894 = vpop.f32.mrb[0].mxu0
      %4895 = vmatprep.mubr.f32.mxu0 0.0
      %4896 = vmatmul.mubr.f32.gmra.mrb[0].mxu0 %v4773
      %v4897 = vpop.f32.mrb[0].mxu0
      %v4898 = vadd.f32 0.0, %v4897
      %v4899 = vpop.f32.mrb[0].mxu0
      %4900 = vmatprep.mubr.f32.mxu0 0.0
      %4901 = vmatmul.mubr.f32.gmra.mrb[0].mxu0 %v4775
      %v4902 = vpop.f32.mrb[0].mxu0
      %v4903 = vadd.f32 0.0, %v4902
      %v4904 = vpop.f32.mrb[0].mxu0
      %4905 = vmatprep.mubr.f32.mxu0 0.0
      %4906 = vmatmul.mubr.f32.gmra.mrb[0].mxu0 %v4777
      %v4907 = vpop.f32.mrb[0].mxu0
      %v4908 = vadd.f32 0.0, %v4907
      %v4909 = vpop.f32.mrb[0].mxu0
      %4910 = vmatprep.mubr.f32.mxu0 0.0
      %4911 = vmatmul.mubr.f32.gmra.mrb[0].mxu0 %v4779
      %v4912 = vpop.f32.mrb[0].mxu0
      %v4913 = vadd.f32 0.0, %v4912
      %v4914 = vpop.f32.mrb[0].mxu0
      %4915 = vmatprep.mubr.f32.mxu0 0.0
      %4916 = vmatmul.mubr.f32.gmra.mrb[0].mxu0 %v4781
      %v4917 = vpop.f32.mrb[0].mxu0
      %v4918 = vadd.f32 0.0, %v4917
      %v4919 = vpop.f32.mrb[0].mxu0
      %4920 = vmatprep.mubr.f32.mxu0 0.0
      %4921 = vmatmul.mubr.f32.gmra.mrb[0].mxu0 %v4783
      %v4922 = vpop.f32.mrb[0].mxu0
      %v4923 = vadd.f32 0.0, %v4922
      %v4924 = vpop.f32.mrb[0].mxu0
      %4925 = vmatprep.mubr.f32.mxu0 0.0
      %4926 = vmatmul.mubr.f32.gmra.mrb[0].mxu0 %v4785
      %v4927 = vpop.f32.mrb[0].mxu0
      %v4928 = vadd.f32 0.0, %v4927
      %v4929 = vpop.f32.mrb[0].mxu0
      %4930 = vmatprep.mubr.f32.mxu0 0.0
      %4931 = vmatmul.mubr.f32.gmra.mrb[0].mxu0 %v4787
      %v4932 = vpop.f32.mrb[0].mxu0
      %v4933 = vadd.f32 0.0, %v4932
      %v4934 = vpop.f32.mrb[0].mxu0
      %4935 = vmatprep.mubr.f32.mxu0 0.0
      %4936 = vmatmul.mubr.f32.gmra.mrb[0].mxu0 %v4789
      %v4937 = vpop.f32.mrb[0].mxu0
      %v4938 = vadd.f32 0.0, %v4937
      %v4939 = vpop.f32.mrb[0].mxu0
      %4940 = vmatprep.mubr.f32.mxu0 0.0
      %4941 = vmatmul.mubr.f32.gmra.mrb[0].mxu0 %v4791
      %v4942 = vpop.f32.mrb[0].mxu0
      %v4943 = vadd.f32 0.0, %v4942
      %v4944 = vpop.f32.mrb[0].mxu0
      %4945 = vmatprep.mubr.f32.mxu0 0.0
      %4946 = vmatmul.mubr.f32.gmra.mrb[0].mxu0 %v4793
      %v4947 = vpop.f32.mrb[0].mxu0
      %v4948 = vadd.f32 0.0, %v4947
      %v4949 = vpop.f32.mrb[0].mxu0
      %4950 = vmatprep.mubr.f32.mxu0 0.0
      %4951 = vmatmul.mubr.f32.gmra.mrb[0].mxu0 %v4795
      %v4952 = vpop.f32.mrb[0].mxu0
      %v4953 = vadd.f32 0.0, %v4952
      %v4954 = vpop.f32.mrb[0].mxu0
      %4955 = vmatprep.mubr.f32.mxu0 0.0
      %4956 = vmatmul.mubr.f32.gmra.mrb[0].mxu0 %v4797
      %v4957 = vpop.f32.mrb[0].mxu0
      %v4958 = vadd.f32 0.0, %v4957
      %v4959 = vpop.f32.mrb[0].mxu0
      %4960 = vmatprep.mubr.f32.mxu0 0.0
      %4961 = vmatmul.mubr.f32.gmra.mrb[0].mxu0 %v4799
      %v4962 = vpop.f32.mrb[0].mxu0
      %v4963 = vadd.f32 0.0, %v4962
      %v4964 = vpop.f32.mrb[0].mxu0
      %4965 = vdwg.mxu0
      %v4966 = vadd.f32 %v4690, %v4868
      %v4967 = vadd.f32 %v4691, %v4873
      %v4968 = vadd.f32 %v4692, %v4878
      %v4969 = vadd.f32 %v4693, %v4883
      %v4970 = vadd.f32 %v4694, %v4888
      %v4971 = vadd.f32 %v4695, %v4893
      %v4972 = vadd.f32 %v4696, %v4898
      %v4973 = vadd.f32 %v4697, %v4903
      %v4974 = vadd.f32 %v4698, %v4908
      %v4975 = vadd.f32 %v4699, %v4913
      %v4976 = vadd.f32 %v4700, %v4918
      %v4977 = vadd.f32 %v4701, %v4923
      %v4978 = vadd.f32 %v4702, %v4928
      %v4979 = vadd.f32 %v4703, %v4933
      %v4980 = vadd.f32 %v4704, %v4938
      %v4981 = vadd.f32 %v4705, %v4943
      %v4982 = vadd.f32 %v4706, %v4948
      %v4983 = vadd.f32 %v4707, %v4953
      %v4984 = vadd.f32 %v4708, %v4958
      %v4985 = vadd.f32 %v4709, %v4963
      %s4986 = scalar_lea.vmem %s3, 320
      %v4987 = vld [vmem:[%s4986] sm:$0xff]
      %v4988 = vld [vmem:[%s4986 + $0x8] sm:$0xff]
      %v4989 = vld [vmem:[%s4986 + $0x10] sm:$0xff]
      %v4990 = vld [vmem:[%s4986 + $0x18] sm:$0xff]
      %v4991 = vld [vmem:[%s4986 + $0x20] sm:$0xff]
      %v4992 = vld [vmem:[%s4986 + $0x28] sm:$0xff]
      %v4993 = vld [vmem:[%s4986 + $0x30] sm:$0xff]
      %v4994 = vld [vmem:[%s4986 + $0x38] sm:$0xff]
      %vm4995 = vcmask 1041408
      %v4996 = vrot.slane %v3642, 6
      %v4997 = vrot.slane %v3643, 6
      %v4998 = vsel %vm4995, %v4996, %v4997
      %v4999 = vrot.slane %v3644, 6
      %v5000 = vsel %vm4995, %v4997, %v4999
      %v5001 = vrot.slane %v3645, 6
      %v5002 = vsel %vm4995, %v4999, %v5001
      %v5003 = vrot.slane %v3646, 6
      %v5004 = vsel %vm4995, %v5001, %v5003
      %v5005 = vrot.slane %v3647, 6
      %v5006 = vsel %vm4995, %v5003, %v5005
      %v5007 = vrot.slane %v3648, 6
      %v5008 = vsel %vm4995, %v5005, %v5007
      %v5009 = vrot.slane %v3649, 6
      %v5010 = vsel %vm4995, %v5007, %v5009
      %v5011 = vrot.slane %v3650, 6
      %v5012 = vsel %vm4995, %v5009, %v5011
      %v5013 = vrot.slane %v3651, 6
      %v5014 = vsel %vm4995, %v5011, %v5013
      %v5015 = vrot.slane %v3652, 6
      %v5016 = vsel %vm4995, %v5013, %v5015
      %v5017 = vrot.slane %v3653, 6
      %v5018 = vsel %vm4995, %v5015, %v5017
      %v5019 = vrot.slane %v3654, 6
      %v5020 = vsel %vm4995, %v5017, %v5019
      %v5021 = vrot.slane %v3655, 6
      %v5022 = vsel %vm4995, %v5019, %v5021
      %v5023 = vrot.slane %v3656, 6
      %v5024 = vsel %vm4995, %v5021, %v5023
      %v5025 = vrot.slane %v3657, 6
      %v5026 = vsel %vm4995, %v5023, %v5025
      %v5027 = vrot.slane %v3658, 6
      %v5028 = vsel %vm4995, %v5025, %v5027
      %v5029 = vrot.slane %v3659, 6
      %v5030 = vsel %vm4995, %v5027, %v5029
      %v5031 = vrot.slane %v3660, 6
      %v5032 = vsel %vm4995, %v5029, %v5031
      %v5033 = vrot.slane %v3661, 6
      %v5034 = vsel %vm4995, %v5031, %v5033
      %v5035 = vrot.slane %v3662, 6
      %v5036 = vsel %vm4995, %v5033, %v5035
      %v5037 = vsel %vm3746, %v4998, 0
      %v5039 = vsel %vm3746, %v5000, 0
      %v5041 = vsel %vm3746, %v5002, 0
      %v5043 = vsel %vm3746, %v5004, 0
      %v5045 = vsel %vm3746, %v5006, 0
      %v5047 = vsel %vm3746, %v5008, 0
      %v5049 = vsel %vm3746, %v5010, 0
      %v5051 = vsel %vm3746, %v5012, 0
      %v5053 = vsel %vm3746, %v5014, 0
      %v5055 = vsel %vm3746, %v5016, 0
      %v5057 = vsel %vm3746, %v5018, 0
      %v5059 = vsel %vm3746, %v5020, 0
      %v5061 = vsel %vm3746, %v5022, 0
      %v5063 = vsel %vm3746, %v5024, 0
      %v5065 = vsel %vm3746, %v5026, 0
      %v5067 = vsel %vm3746, %v5028, 0
      %v5069 = vsel %vm3746, %v5030, 0
      %v5071 = vsel %vm3746, %v5032, 0
      %v5073 = vsel %vm3746, %v5034, 0
      %v5075 = vsel %vm3746, %v5036, 0
      %5077 = vmatprep.subr.mxu0 0.0
      %5078 = vmatpush1.msra.mxu0 %v4987
      %5079 = vmatprep.subr.mxu0 0.0
      %5080 = vmatpush1.msra.mxu0 %v4988
      %5081 = vmatprep.subr.mxu0 0.0
      %5082 = vmatpush1.msra.mxu0 %v4989
      %5083 = vmatprep.subr.mxu0 0.0
      %5084 = vmatpush1.msra.mxu0 %v4990
      %5085 = vmatprep.subr.mxu0 0.0
      %5086 = vmatpush1.msra.mxu0 %v4991
      %5087 = vmatprep.subr.mxu0 0.0
      %5088 = vmatpush1.msra.mxu0 %v4992
      %5089 = vmatprep.subr.mxu0 0.0
      %5090 = vmatpush1.msra.mxu0 %v4993
      %5091 = vmatprep.subr.mxu0 0.0
      %5092 = vmatpush1.msra.mxu0 %v4994
      %5093 = vmatprep.subr.mxu0 0.0
      %5094 = vmatpush1.msra.mxu0 0.0
      %5095 = vmatprep.subr.mxu0 0.0
      %5096 = vmatpush1.msra.mxu0 0.0
      %5097 = vmatprep.subr.mxu0 0.0
      %5098 = vmatpush1.msra.mxu0 0.0
      %5099 = vmatprep.subr.mxu0 0.0
      %5100 = vmatpush1.msra.mxu0 0.0
      %5101 = vmatprep.subr.mxu0 0.0
      %5102 = vmatpush1.msra.mxu0 0.0
      %5103 = vmatprep.subr.mxu0 0.0
      %5104 = vmatpush1.msra.mxu0 0.0
      %5105 = vmatprep.subr.mxu0 0.0
      %5106 = vmatpush1.msra.mxu0 0.0
      %5107 = vmatprep.subr.mxu0 0.0
      %5108 = vmatpush1.msra.mxu0 0.0
      %5109 = vmatprep.subr.mxu0 0.0
      %5110 = vmatpush1.msra.mxu0 0.0
      %5111 = vmatprep.subr.mxu0 0.0
      %5112 = vmatpush1.msra.mxu0 0.0
      %5113 = vmatprep.subr.mxu0 0.0
      %5114 = vmatpush1.msra.mxu0 0.0
      %5115 = vmatprep.subr.mxu0 0.0
      %5116 = vmatpush1.msra.mxu0 0.0
      %5117 = vmatprep.subr.mxu0 0.0
      %5118 = vmatpush1.msra.mxu0 0.0
      %5119 = vmatprep.subr.mxu0 0.0
      %5120 = vmatpush1.msra.mxu0 0.0
      %5121 = vmatprep.subr.mxu0 0.0
      %5122 = vmatpush1.msra.mxu0 0.0
      %5123 = vmatprep.subr.mxu0 0.0
      %5124 = vmatpush1.msra.mxu0 0.0
      %5125 = vmatprep.subr.mxu0 0.0
      %5126 = vmatpush1.msra.mxu0 0.0
      %5127 = vmatprep.subr.mxu0 0.0
      %5128 = vmatpush1.msra.mxu0 0.0
      %5129 = vmatprep.subr.mxu0 0.0
      %5130 = vmatpush1.msra.mxu0 0.0
      %5131 = vmatprep.subr.mxu0 0.0
      %5132 = vmatpush1.msra.mxu0 0.0
      %5133 = vmatprep.subr.mxu0 0.0
      %5134 = vmatpush1.msra.mxu0 0.0
      %5135 = vmatprep.subr.mxu0 0.0
      %5136 = vmatpush1.msra.mxu0 0.0
      %5137 = vmatprep.subr.mxu0 0.0
      %5138 = vmatpush1.msra.mxu0 0.0
      %5139 = vmatprep.subr.mxu0 0.0
      %5140 = vmatpush1.msra.mxu0 0.0
      %5141 = vmatprep.mubr.f32.mxu0 0.0
      %5142 = vmatmul.mubr.f32.gmra.mrb[0].mxu0 %v5037
      %v5143 = vpop.f32.mrb[0].mxu0
      %v5144 = vadd.f32 0.0, %v5143
      %v5145 = vpop.f32.mrb[0].mxu0
      %5146 = vmatprep.mubr.f32.mxu0 0.0
      %5147 = vmatmul.mubr.f32.gmra.mrb[0].mxu0 %v5039
      %v5148 = vpop.f32.mrb[0].mxu0
      %v5149 = vadd.f32 0.0, %v5148
      %v5150 = vpop.f32.mrb[0].mxu0
      %5151 = vmatprep.mubr.f32.mxu0 0.0
      %5152 = vmatmul.mubr.f32.gmra.mrb[0].mxu0 %v5041
      %v5153 = vpop.f32.mrb[0].mxu0
      %v5154 = vadd.f32 0.0, %v5153
      %v5155 = vpop.f32.mrb[0].mxu0
      %5156 = vmatprep.mubr.f32.mxu0 0.0
      %5157 = vmatmul.mubr.f32.gmra.mrb[0].mxu0 %v5043
      %v5158 = vpop.f32.mrb[0].mxu0
      %v5159 = vadd.f32 0.0, %v5158
      %v5160 = vpop.f32.mrb[0].mxu0
      %5161 = vmatprep.mubr.f32.mxu0 0.0
      %5162 = vmatmul.mubr.f32.gmra.mrb[0].mxu0 %v5045
      %v5163 = vpop.f32.mrb[0].mxu0
      %v5164 = vadd.f32 0.0, %v5163
      %v5165 = vpop.f32.mrb[0].mxu0
      %5166 = vmatprep.mubr.f32.mxu0 0.0
      %5167 = vmatmul.mubr.f32.gmra.mrb[0].mxu0 %v5047
      %v5168 = vpop.f32.mrb[0].mxu0
      %v5169 = vadd.f32 0.0, %v5168
      %v5170 = vpop.f32.mrb[0].mxu0
      %5171 = vmatprep.mubr.f32.mxu0 0.0
      %5172 = vmatmul.mubr.f32.gmra.mrb[0].mxu0 %v5049
      %v5173 = vpop.f32.mrb[0].mxu0
      %v5174 = vadd.f32 0.0, %v5173
      %v5175 = vpop.f32.mrb[0].mxu0
      %5176 = vmatprep.mubr.f32.mxu0 0.0
      %5177 = vmatmul.mubr.f32.gmra.mrb[0].mxu0 %v5051
      %v5178 = vpop.f32.mrb[0].mxu0
      %v5179 = vadd.f32 0.0, %v5178
      %v5180 = vpop.f32.mrb[0].mxu0
      %5181 = vmatprep.mubr.f32.mxu0 0.0
      %5182 = vmatmul.mubr.f32.gmra.mrb[0].mxu0 %v5053
      %v5183 = vpop.f32.mrb[0].mxu0
      %v5184 = vadd.f32 0.0, %v5183
      %v5185 = vpop.f32.mrb[0].mxu0
      %5186 = vmatprep.mubr.f32.mxu0 0.0
      %5187 = vmatmul.mubr.f32.gmra.mrb[0].mxu0 %v5055
      %v5188 = vpop.f32.mrb[0].mxu0
      %v5189 = vadd.f32 0.0, %v5188
      %v5190 = vpop.f32.mrb[0].mxu0
      %5191 = vmatprep.mubr.f32.mxu0 0.0
      %5192 = vmatmul.mubr.f32.gmra.mrb[0].mxu0 %v5057
      %v5193 = vpop.f32.mrb[0].mxu0
      %v5194 = vadd.f32 0.0, %v5193
      %v5195 = vpop.f32.mrb[0].mxu0
      %5196 = vmatprep.mubr.f32.mxu0 0.0
      %5197 = vmatmul.mubr.f32.gmra.mrb[0].mxu0 %v5059
      %v5198 = vpop.f32.mrb[0].mxu0
      %v5199 = vadd.f32 0.0, %v5198
      %v5200 = vpop.f32.mrb[0].mxu0
      %5201 = vmatprep.mubr.f32.mxu0 0.0
      %5202 = vmatmul.mubr.f32.gmra.mrb[0].mxu0 %v5061
      %v5203 = vpop.f32.mrb[0].mxu0
      %v5204 = vadd.f32 0.0, %v5203
      %v5205 = vpop.f32.mrb[0].mxu0
      %5206 = vmatprep.mubr.f32.mxu0 0.0
      %5207 = vmatmul.mubr.f32.gmra.mrb[0].mxu0 %v5063
      %v5208 = vpop.f32.mrb[0].mxu0
      %v5209 = vadd.f32 0.0, %v5208
      %v5210 = vpop.f32.mrb[0].mxu0
      %5211 = vmatprep.mubr.f32.mxu0 0.0
      %5212 = vmatmul.mubr.f32.gmra.mrb[0].mxu0 %v5065
      %v5213 = vpop.f32.mrb[0].mxu0
      %v5214 = vadd.f32 0.0, %v5213
      %v5215 = vpop.f32.mrb[0].mxu0
      %5216 = vmatprep.mubr.f32.mxu0 0.0
      %5217 = vmatmul.mubr.f32.gmra.mrb[0].mxu0 %v5067
      %v5218 = vpop.f32.mrb[0].mxu0
      %v5219 = vadd.f32 0.0, %v5218
      %v5220 = vpop.f32.mrb[0].mxu0
      %5221 = vmatprep.mubr.f32.mxu0 0.0
      %5222 = vmatmul.mubr.f32.gmra.mrb[0].mxu0 %v5069
      %v5223 = vpop.f32.mrb[0].mxu0
      %v5224 = vadd.f32 0.0, %v5223
      %v5225 = vpop.f32.mrb[0].mxu0
      %5226 = vmatprep.mubr.f32.mxu0 0.0
      %5227 = vmatmul.mubr.f32.gmra.mrb[0].mxu0 %v5071
      %v5228 = vpop.f32.mrb[0].mxu0
      %v5229 = vadd.f32 0.0, %v5228
      %v5230 = vpop.f32.mrb[0].mxu0
      %5231 = vmatprep.mubr.f32.mxu0 0.0
      %5232 = vmatmul.mubr.f32.gmra.mrb[0].mxu0 %v5073
      %v5233 = vpop.f32.mrb[0].mxu0
      %v5234 = vadd.f32 0.0, %v5233
      %v5235 = vpop.f32.mrb[0].mxu0
      %5236 = vmatprep.mubr.f32.mxu0 0.0
      %5237 = vmatmul.mubr.f32.gmra.mrb[0].mxu0 %v5075
      %v5238 = vpop.f32.mrb[0].mxu0
      %v5239 = vadd.f32 0.0, %v5238
      %v5240 = vpop.f32.mrb[0].mxu0
      %5241 = vdwg.mxu0
      %v5242 = vadd.f32 %v4966, %v5144
      %v5243 = vadd.f32 %v4967, %v5149
      %v5244 = vadd.f32 %v4968, %v5154
      %v5245 = vadd.f32 %v4969, %v5159
      %v5246 = vadd.f32 %v4970, %v5164
      %v5247 = vadd.f32 %v4971, %v5169
      %v5248 = vadd.f32 %v4972, %v5174
      %v5249 = vadd.f32 %v4973, %v5179
      %v5250 = vadd.f32 %v4974, %v5184
      %v5251 = vadd.f32 %v4975, %v5189
      %v5252 = vadd.f32 %v4976, %v5194
      %v5253 = vadd.f32 %v4977, %v5199
      %v5254 = vadd.f32 %v4978, %v5204
      %v5255 = vadd.f32 %v4979, %v5209
      %v5256 = vadd.f32 %v4980, %v5214
      %v5257 = vadd.f32 %v4981, %v5219
      %v5258 = vadd.f32 %v4982, %v5224
      %v5259 = vadd.f32 %v4983, %v5229
      %v5260 = vadd.f32 %v4984, %v5234
      %v5261 = vadd.f32 %v4985, %v5239
      %s5262 = scalar_lea.vmem %s3, 384
      %v5263 = vld [vmem:[%s5262] sm:$0xff]
      %v5264 = vld [vmem:[%s5262 + $0x8] sm:$0xff]
      %v5265 = vld [vmem:[%s5262 + $0x10] sm:$0xff]
      %v5266 = vld [vmem:[%s5262 + $0x18] sm:$0xff]
      %v5267 = vld [vmem:[%s5262 + $0x20] sm:$0xff]
      %v5268 = vld [vmem:[%s5262 + $0x28] sm:$0xff]
      %v5269 = vld [vmem:[%s5262 + $0x30] sm:$0xff]
      %v5270 = vld [vmem:[%s5262 + $0x38] sm:$0xff]
      %v5271 = vsel %vm3746, %v3660, 0
      %v5273 = vsel %vm3746, %v3661, 0
      %v5275 = vsel %vm3746, %v3662, 0
      %v5278 = vsel %vm3746, %v3663, 0
      %v5281 = vsel %vm3746, %v3664, 0
      %5283 = vmatprep.subr.mxu0 0.0
      %5284 = vmatpush1.msra.mxu0 %v5263
      %5285 = vmatprep.subr.mxu0 0.0
      %5286 = vmatpush1.msra.mxu0 %v5264
      %5287 = vmatprep.subr.mxu0 0.0
      %5288 = vmatpush1.msra.mxu0 %v5265
      %5289 = vmatprep.subr.mxu0 0.0
      %5290 = vmatpush1.msra.mxu0 %v5266
      %5291 = vmatprep.subr.mxu0 0.0
      %5292 = vmatpush1.msra.mxu0 %v5267
      %5293 = vmatprep.subr.mxu0 0.0
      %5294 = vmatpush1.msra.mxu0 %v5268
      %5295 = vmatprep.subr.mxu0 0.0
      %5296 = vmatpush1.msra.mxu0 %v5269
      %5297 = vmatprep.subr.mxu0 0.0
      %5298 = vmatpush1.msra.mxu0 %v5270
      %5299 = vmatprep.subr.mxu0 0.0
      %5300 = vmatpush1.msra.mxu0 0.0
      %5301 = vmatprep.subr.mxu0 0.0
      %5302 = vmatpush1.msra.mxu0 0.0
      %5303 = vmatprep.subr.mxu0 0.0
      %5304 = vmatpush1.msra.mxu0 0.0
      %5305 = vmatprep.subr.mxu0 0.0
      %5306 = vmatpush1.msra.mxu0 0.0
      %5307 = vmatprep.subr.mxu0 0.0
      %5308 = vmatpush1.msra.mxu0 0.0
      %5309 = vmatprep.subr.mxu0 0.0
      %5310 = vmatpush1.msra.mxu0 0.0
      %5311 = vmatprep.subr.mxu0 0.0
      %5312 = vmatpush1.msra.mxu0 0.0
      %5313 = vmatprep.subr.mxu0 0.0
      %5314 = vmatpush1.msra.mxu0 0.0
      %5315 = vmatprep.subr.mxu0 0.0
      %5316 = vmatpush1.msra.mxu0 0.0
      %5317 = vmatprep.subr.mxu0 0.0
      %5318 = vmatpush1.msra.mxu0 0.0
      %5319 = vmatprep.subr.mxu0 0.0
      %5320 = vmatpush1.msra.mxu0 0.0
      %5321 = vmatprep.subr.mxu0 0.0
      %5322 = vmatpush1.msra.mxu0 0.0
      %5323 = vmatprep.subr.mxu0 0.0
      %5324 = vmatpush1.msra.mxu0 0.0
      %5325 = vmatprep.subr.mxu0 0.0
      %5326 = vmatpush1.msra.mxu0 0.0
      %5327 = vmatprep.subr.mxu0 0.0
      %5328 = vmatpush1.msra.mxu0 0.0
      %5329 = vmatprep.subr.mxu0 0.0
      %5330 = vmatpush1.msra.mxu0 0.0
      %5331 = vmatprep.subr.mxu0 0.0
      %5332 = vmatpush1.msra.mxu0 0.0
      %5333 = vmatprep.subr.mxu0 0.0
      %5334 = vmatpush1.msra.mxu0 0.0
      %5335 = vmatprep.subr.mxu0 0.0
      %5336 = vmatpush1.msra.mxu0 0.0
      %5337 = vmatprep.subr.mxu0 0.0
      %5338 = vmatpush1.msra.mxu0 0.0
      %5339 = vmatprep.subr.mxu0 0.0
      %5340 = vmatpush1.msra.mxu0 0.0
      %5341 = vmatprep.subr.mxu0 0.0
      %5342 = vmatpush1.msra.mxu0 0.0
      %5343 = vmatprep.subr.mxu0 0.0
      %5344 = vmatpush1.msra.mxu0 0.0
      %5345 = vmatprep.subr.mxu0 0.0
      %5346 = vmatpush1.msra.mxu0 0.0
      %5347 = vmatprep.mubr.f32.mxu0 0.0
      %5348 = vmatmul.mubr.f32.gmra.mrb[0].mxu0 %v3962
      %v5349 = vpop.f32.mrb[0].mxu0
      %v5350 = vadd.f32 0.0, %v5349
      %v5351 = vpop.f32.mrb[0].mxu0
      %5352 = vmatprep.mubr.f32.mxu0 0.0
      %5353 = vmatmul.mubr.f32.gmra.mrb[0].mxu0 %v3964
      %v5354 = vpop.f32.mrb[0].mxu0
      %v5355 = vadd.f32 0.0, %v5354
      %v5356 = vpop.f32.mrb[0].mxu0
      %5357 = vmatprep.mubr.f32.mxu0 0.0
      %5358 = vmatmul.mubr.f32.gmra.mrb[0].mxu0 %v3966
      %v5359 = vpop.f32.mrb[0].mxu0
      %v5360 = vadd.f32 0.0, %v5359
      %v5361 = vpop.f32.mrb[0].mxu0
      %5362 = vmatprep.mubr.f32.mxu0 0.0
      %5363 = vmatmul.mubr.f32.gmra.mrb[0].mxu0 %v3968
      %v5364 = vpop.f32.mrb[0].mxu0
      %v5365 = vadd.f32 0.0, %v5364
      %v5366 = vpop.f32.mrb[0].mxu0
      %5367 = vmatprep.mubr.f32.mxu0 0.0
      %5368 = vmatmul.mubr.f32.gmra.mrb[0].mxu0 %v3970
      %v5369 = vpop.f32.mrb[0].mxu0
      %v5370 = vadd.f32 0.0, %v5369
      %v5371 = vpop.f32.mrb[0].mxu0
      %5372 = vmatprep.mubr.f32.mxu0 0.0
      %5373 = vmatmul.mubr.f32.gmra.mrb[0].mxu0 %v3972
      %v5374 = vpop.f32.mrb[0].mxu0
      %v5375 = vadd.f32 0.0, %v5374
      %v5376 = vpop.f32.mrb[0].mxu0
      %5377 = vmatprep.mubr.f32.mxu0 0.0
      %5378 = vmatmul.mubr.f32.gmra.mrb[0].mxu0 %v3974
      %v5379 = vpop.f32.mrb[0].mxu0
      %v5380 = vadd.f32 0.0, %v5379
      %v5381 = vpop.f32.mrb[0].mxu0
      %5382 = vmatprep.mubr.f32.mxu0 0.0
      %5383 = vmatmul.mubr.f32.gmra.mrb[0].mxu0 %v3976
      %v5384 = vpop.f32.mrb[0].mxu0
      %v5385 = vadd.f32 0.0, %v5384
      %v5386 = vpop.f32.mrb[0].mxu0
      %5387 = vmatprep.mubr.f32.mxu0 0.0
      %5388 = vmatmul.mubr.f32.gmra.mrb[0].mxu0 %v3978
      %v5389 = vpop.f32.mrb[0].mxu0
      %v5390 = vadd.f32 0.0, %v5389
      %v5391 = vpop.f32.mrb[0].mxu0
      %5392 = vmatprep.mubr.f32.mxu0 0.0
      %5393 = vmatmul.mubr.f32.gmra.mrb[0].mxu0 %v3980
      %v5394 = vpop.f32.mrb[0].mxu0
      %v5395 = vadd.f32 0.0, %v5394
      %v5396 = vpop.f32.mrb[0].mxu0
      %5397 = vmatprep.mubr.f32.mxu0 0.0
      %5398 = vmatmul.mubr.f32.gmra.mrb[0].mxu0 %v3982
      %v5399 = vpop.f32.mrb[0].mxu0
      %v5400 = vadd.f32 0.0, %v5399
      %v5401 = vpop.f32.mrb[0].mxu0
      %5402 = vmatprep.mubr.f32.mxu0 0.0
      %5403 = vmatmul.mubr.f32.gmra.mrb[0].mxu0 %v3984
      %v5404 = vpop.f32.mrb[0].mxu0
      %v5405 = vadd.f32 0.0, %v5404
      %v5406 = vpop.f32.mrb[0].mxu0
      %5407 = vmatprep.mubr.f32.mxu0 0.0
      %5408 = vmatmul.mubr.f32.gmra.mrb[0].mxu0 %v3986
      %v5409 = vpop.f32.mrb[0].mxu0
      %v5410 = vadd.f32 0.0, %v5409
      %v5411 = vpop.f32.mrb[0].mxu0
      %5412 = vmatprep.mubr.f32.mxu0 0.0
      %5413 = vmatmul.mubr.f32.gmra.mrb[0].mxu0 %v3988
      %v5414 = vpop.f32.mrb[0].mxu0
      %v5415 = vadd.f32 0.0, %v5414
      %v5416 = vpop.f32.mrb[0].mxu0
      %5417 = vmatprep.mubr.f32.mxu0 0.0
      %5418 = vmatmul.mubr.f32.gmra.mrb[0].mxu0 %v3990
      %v5419 = vpop.f32.mrb[0].mxu0
      %v5420 = vadd.f32 0.0, %v5419
      %v5421 = vpop.f32.mrb[0].mxu0
      %5422 = vmatprep.mubr.f32.mxu0 0.0
      %5423 = vmatmul.mubr.f32.gmra.mrb[0].mxu0 %v5271
      %v5424 = vpop.f32.mrb[0].mxu0
      %v5425 = vadd.f32 0.0, %v5424
      %v5426 = vpop.f32.mrb[0].mxu0
      %5427 = vmatprep.mubr.f32.mxu0 0.0
      %5428 = vmatmul.mubr.f32.gmra.mrb[0].mxu0 %v5273
      %v5429 = vpop.f32.mrb[0].mxu0
      %v5430 = vadd.f32 0.0, %v5429
      %v5431 = vpop.f32.mrb[0].mxu0
      %5432 = vmatprep.mubr.f32.mxu0 0.0
      %5433 = vmatmul.mubr.f32.gmra.mrb[0].mxu0 %v5275
      %v5434 = vpop.f32.mrb[0].mxu0
      %v5435 = vadd.f32 0.0, %v5434
      %v5436 = vpop.f32.mrb[0].mxu0
      %5437 = vmatprep.mubr.f32.mxu0 0.0
      %5438 = vmatmul.mubr.f32.gmra.mrb[0].mxu0 %v5278
      %v5439 = vpop.f32.mrb[0].mxu0
      %v5440 = vadd.f32 0.0, %v5439
      %v5441 = vpop.f32.mrb[0].mxu0
      %5442 = vmatprep.mubr.f32.mxu0 0.0
      %5443 = vmatmul.mubr.f32.gmra.mrb[0].mxu0 %v5281
      %v5444 = vpop.f32.mrb[0].mxu0
      %v5445 = vadd.f32 0.0, %v5444
      %v5446 = vpop.f32.mrb[0].mxu0
      %5447 = vdwg.mxu0
      %v5448 = vadd.f32 %v5242, %v5350
      %v5449 = vadd.f32 %v5243, %v5355
      %v5450 = vadd.f32 %v5244, %v5360
      %v5451 = vadd.f32 %v5245, %v5365
      %v5452 = vadd.f32 %v5246, %v5370
      %v5453 = vadd.f32 %v5247, %v5375
      %v5454 = vadd.f32 %v5248, %v5380
      %v5455 = vadd.f32 %v5249, %v5385
      %v5456 = vadd.f32 %v5250, %v5390
      %v5457 = vadd.f32 %v5251, %v5395
      %v5458 = vadd.f32 %v5252, %v5400
      %v5459 = vadd.f32 %v5253, %v5405
      %v5460 = vadd.f32 %v5254, %v5410
      %v5461 = vadd.f32 %v5255, %v5415
      %v5462 = vadd.f32 %v5256, %v5420
      %v5463 = vadd.f32 %v5257, %v5425
      %v5464 = vadd.f32 %v5258, %v5430
      %v5465 = vadd.f32 %v5259, %v5435
      %v5466 = vadd.f32 %v5260, %v5440
      %v5467 = vadd.f32 %v5261, %v5445
      %s5468 = scalar_lea.vmem %s3, 448
      %v5469 = vld [vmem:[%s5468] sm:$0xff]
      %v5470 = vld [vmem:[%s5468 + $0x8] sm:$0xff]
      %v5471 = vld [vmem:[%s5468 + $0x10] sm:$0xff]
      %v5472 = vld [vmem:[%s5468 + $0x18] sm:$0xff]
      %v5473 = vld [vmem:[%s5468 + $0x20] sm:$0xff]
      %v5474 = vld [vmem:[%s5468 + $0x28] sm:$0xff]
      %v5475 = vld [vmem:[%s5468 + $0x30] sm:$0xff]
      %v5476 = vld [vmem:[%s5468 + $0x38] sm:$0xff]
      %v5478 = vrot.slane %v3661, 1
      %v5479 = vsel %vm3704, %v3744, %v5478
      %v5480 = vrot.slane %v3662, 1
      %v5481 = vsel %vm3704, %v5478, %v5480
      %v5482 = vrot.slane %v3663, 1
      %v5483 = vsel %vm3704, %v5480, %v5482
      %v5484 = vrot.slane %v3664, 1
      %v5485 = vsel %vm3704, %v5482, %v5484
      %v5486 = vrot.slane %v3665, 1
      %v5487 = vsel %vm3704, %v5484, %v5486
      %v5488 = vsel %vm3746, %v5479, 0
      %v5490 = vsel %vm3746, %v5481, 0
      %v5492 = vsel %vm3746, %v5483, 0
      %v5494 = vsel %vm3746, %v5485, 0
      %v5496 = vsel %vm3746, %v5487, 0
      %5498 = vmatprep.subr.mxu0 0.0
      %5499 = vmatpush1.msra.mxu0 %v5469
      %5500 = vmatprep.subr.mxu0 0.0
      %5501 = vmatpush1.msra.mxu0 %v5470
      %5502 = vmatprep.subr.mxu0 0.0
      %5503 = vmatpush1.msra.mxu0 %v5471
      %5504 = vmatprep.subr.mxu0 0.0
      %5505 = vmatpush1.msra.mxu0 %v5472
      %5506 = vmatprep.subr.mxu0 0.0
      %5507 = vmatpush1.msra.mxu0 %v5473
      %5508 = vmatprep.subr.mxu0 0.0
      %5509 = vmatpush1.msra.mxu0 %v5474
      %5510 = vmatprep.subr.mxu0 0.0
      %5511 = vmatpush1.msra.mxu0 %v5475
      %5512 = vmatprep.subr.mxu0 0.0
      %5513 = vmatpush1.msra.mxu0 %v5476
      %5514 = vmatprep.subr.mxu0 0.0
      %5515 = vmatpush1.msra.mxu0 0.0
      %5516 = vmatprep.subr.mxu0 0.0
      %5517 = vmatpush1.msra.mxu0 0.0
      %5518 = vmatprep.subr.mxu0 0.0
      %5519 = vmatpush1.msra.mxu0 0.0
      %5520 = vmatprep.subr.mxu0 0.0
      %5521 = vmatpush1.msra.mxu0 0.0
      %5522 = vmatprep.subr.mxu0 0.0
      %5523 = vmatpush1.msra.mxu0 0.0
      %5524 = vmatprep.subr.mxu0 0.0
      %5525 = vmatpush1.msra.mxu0 0.0
      %5526 = vmatprep.subr.mxu0 0.0
      %5527 = vmatpush1.msra.mxu0 0.0
      %5528 = vmatprep.subr.mxu0 0.0
      %5529 = vmatpush1.msra.mxu0 0.0
      %5530 = vmatprep.subr.mxu0 0.0
      %5531 = vmatpush1.msra.mxu0 0.0
      %5532 = vmatprep.subr.mxu0 0.0
      %5533 = vmatpush1.msra.mxu0 0.0
      %5534 = vmatprep.subr.mxu0 0.0
      %5535 = vmatpush1.msra.mxu0 0.0
      %5536 = vmatprep.subr.mxu0 0.0
      %5537 = vmatpush1.msra.mxu0 0.0
      %5538 = vmatprep.subr.mxu0 0.0
      %5539 = vmatpush1.msra.mxu0 0.0
      %5540 = vmatprep.subr.mxu0 0.0
      %5541 = vmatpush1.msra.mxu0 0.0
      %5542 = vmatprep.subr.mxu0 0.0
      %5543 = vmatpush1.msra.mxu0 0.0
      %5544 = vmatprep.subr.mxu0 0.0
      %5545 = vmatpush1.msra.mxu0 0.0
      %5546 = vmatprep.subr.mxu0 0.0
      %5547 = vmatpush1.msra.mxu0 0.0
      %5548 = vmatprep.subr.mxu0 0.0
      %5549 = vmatpush1.msra.mxu0 0.0
      %5550 = vmatprep.subr.mxu0 0.0
      %5551 = vmatpush1.msra.mxu0 0.0
      %5552 = vmatprep.subr.mxu0 0.0
      %5553 = vmatpush1.msra.mxu0 0.0
      %5554 = vmatprep.subr.mxu0 0.0
      %5555 = vmatpush1.msra.mxu0 0.0
      %5556 = vmatprep.subr.mxu0 0.0
      %5557 = vmatpush1.msra.mxu0 0.0
      %5558 = vmatprep.subr.mxu0 0.0
      %5559 = vmatpush1.msra.mxu0 0.0
      %5560 = vmatprep.subr.mxu0 0.0
      %5561 = vmatpush1.msra.mxu0 0.0
      %5562 = vmatprep.mubr.f32.mxu0 0.0
      %5563 = vmatmul.mubr.f32.gmra.mrb[0].mxu0 %v3757
      %v5564 = vpop.f32.mrb[0].mxu0
      %v5565 = vadd.f32 0.0, %v5564
      %v5566 = vpop.f32.mrb[0].mxu0
      %5567 = vmatprep.mubr.f32.mxu0 0.0
      %5568 = vmatmul.mubr.f32.gmra.mrb[0].mxu0 %v3759
      %v5569 = vpop.f32.mrb[0].mxu0
      %v5570 = vadd.f32 0.0, %v5569
      %v5571 = vpop.f32.mrb[0].mxu0
      %5572 = vmatprep.mubr.f32.mxu0 0.0
      %5573 = vmatmul.mubr.f32.gmra.mrb[0].mxu0 %v3761
      %v5574 = vpop.f32.mrb[0].mxu0
      %v5575 = vadd.f32 0.0, %v5574
      %v5576 = vpop.f32.mrb[0].mxu0
      %5577 = vmatprep.mubr.f32.mxu0 0.0
      %5578 = vmatmul.mubr.f32.gmra.mrb[0].mxu0 %v3763
      %v5579 = vpop.f32.mrb[0].mxu0
      %v5580 = vadd.f32 0.0, %v5579
      %v5581 = vpop.f32.mrb[0].mxu0
      %5582 = vmatprep.mubr.f32.mxu0 0.0
      %5583 = vmatmul.mubr.f32.gmra.mrb[0].mxu0 %v3765
      %v5584 = vpop.f32.mrb[0].mxu0
      %v5585 = vadd.f32 0.0, %v5584
      %v5586 = vpop.f32.mrb[0].mxu0
      %5587 = vmatprep.mubr.f32.mxu0 0.0
      %5588 = vmatmul.mubr.f32.gmra.mrb[0].mxu0 %v3767
      %v5589 = vpop.f32.mrb[0].mxu0
      %v5590 = vadd.f32 0.0, %v5589
      %v5591 = vpop.f32.mrb[0].mxu0
      %5592 = vmatprep.mubr.f32.mxu0 0.0
      %5593 = vmatmul.mubr.f32.gmra.mrb[0].mxu0 %v3769
      %v5594 = vpop.f32.mrb[0].mxu0
      %v5595 = vadd.f32 0.0, %v5594
      %v5596 = vpop.f32.mrb[0].mxu0
      %5597 = vmatprep.mubr.f32.mxu0 0.0
      %5598 = vmatmul.mubr.f32.gmra.mrb[0].mxu0 %v3771
      %v5599 = vpop.f32.mrb[0].mxu0
      %v5600 = vadd.f32 0.0, %v5599
      %v5601 = vpop.f32.mrb[0].mxu0
      %5602 = vmatprep.mubr.f32.mxu0 0.0
      %5603 = vmatmul.mubr.f32.gmra.mrb[0].mxu0 %v3773
      %v5604 = vpop.f32.mrb[0].mxu0
      %v5605 = vadd.f32 0.0, %v5604
      %v5606 = vpop.f32.mrb[0].mxu0
      %5607 = vmatprep.mubr.f32.mxu0 0.0
      %5608 = vmatmul.mubr.f32.gmra.mrb[0].mxu0 %v3775
      %v5609 = vpop.f32.mrb[0].mxu0
      %v5610 = vadd.f32 0.0, %v5609
      %v5611 = vpop.f32.mrb[0].mxu0
      %5612 = vmatprep.mubr.f32.mxu0 0.0
      %5613 = vmatmul.mubr.f32.gmra.mrb[0].mxu0 %v3777
      %v5614 = vpop.f32.mrb[0].mxu0
      %v5615 = vadd.f32 0.0, %v5614
      %v5616 = vpop.f32.mrb[0].mxu0
      %5617 = vmatprep.mubr.f32.mxu0 0.0
      %5618 = vmatmul.mubr.f32.gmra.mrb[0].mxu0 %v3779
      %v5619 = vpop.f32.mrb[0].mxu0
      %v5620 = vadd.f32 0.0, %v5619
      %v5621 = vpop.f32.mrb[0].mxu0
      %5622 = vmatprep.mubr.f32.mxu0 0.0
      %5623 = vmatmul.mubr.f32.gmra.mrb[0].mxu0 %v3781
      %v5624 = vpop.f32.mrb[0].mxu0
      %v5625 = vadd.f32 0.0, %v5624
      %v5626 = vpop.f32.mrb[0].mxu0
      %5627 = vmatprep.mubr.f32.mxu0 0.0
      %5628 = vmatmul.mubr.f32.gmra.mrb[0].mxu0 %v3783
      %v5629 = vpop.f32.mrb[0].mxu0
      %v5630 = vadd.f32 0.0, %v5629
      %v5631 = vpop.f32.mrb[0].mxu0
      %5632 = vmatprep.mubr.f32.mxu0 0.0
      %5633 = vmatmul.mubr.f32.gmra.mrb[0].mxu0 %v3785
      %v5634 = vpop.f32.mrb[0].mxu0
      %v5635 = vadd.f32 0.0, %v5634
      %v5636 = vpop.f32.mrb[0].mxu0
      %5637 = vmatprep.mubr.f32.mxu0 0.0
      %5638 = vmatmul.mubr.f32.gmra.mrb[0].mxu0 %v5488
      %v5639 = vpop.f32.mrb[0].mxu0
      %v5640 = vadd.f32 0.0, %v5639
      %v5641 = vpop.f32.mrb[0].mxu0
      %5642 = vmatprep.mubr.f32.mxu0 0.0
      %5643 = vmatmul.mubr.f32.gmra.mrb[0].mxu0 %v5490
      %v5644 = vpop.f32.mrb[0].mxu0
      %v5645 = vadd.f32 0.0, %v5644
      %v5646 = vpop.f32.mrb[0].mxu0
      %5647 = vmatprep.mubr.f32.mxu0 0.0
      %5648 = vmatmul.mubr.f32.gmra.mrb[0].mxu0 %v5492
      %v5649 = vpop.f32.mrb[0].mxu0
      %v5650 = vadd.f32 0.0, %v5649
      %v5651 = vpop.f32.mrb[0].mxu0
      %5652 = vmatprep.mubr.f32.mxu0 0.0
      %5653 = vmatmul.mubr.f32.gmra.mrb[0].mxu0 %v5494
      %v5654 = vpop.f32.mrb[0].mxu0
      %v5655 = vadd.f32 0.0, %v5654
      %v5656 = vpop.f32.mrb[0].mxu0
      %5657 = vmatprep.mubr.f32.mxu0 0.0
      %5658 = vmatmul.mubr.f32.gmra.mrb[0].mxu0 %v5496
      %v5659 = vpop.f32.mrb[0].mxu0
      %v5660 = vadd.f32 0.0, %v5659
      %v5661 = vpop.f32.mrb[0].mxu0
      %5662 = vdwg.mxu0
      %v5663 = vadd.f32 %v5448, %v5565
      %v5664 = vadd.f32 %v5449, %v5570
      %v5665 = vadd.f32 %v5450, %v5575
      %v5666 = vadd.f32 %v5451, %v5580
      %v5667 = vadd.f32 %v5452, %v5585
      %v5668 = vadd.f32 %v5453, %v5590
      %v5669 = vadd.f32 %v5454, %v5595
      %v5670 = vadd.f32 %v5455, %v5600
      %v5671 = vadd.f32 %v5456, %v5605
      %v5672 = vadd.f32 %v5457, %v5610
      %v5673 = vadd.f32 %v5458, %v5615
      %v5674 = vadd.f32 %v5459, %v5620
      %v5675 = vadd.f32 %v5460, %v5625
      %v5676 = vadd.f32 %v5461, %v5630
      %v5677 = vadd.f32 %v5462, %v5635
      %v5678 = vadd.f32 %v5463, %v5640
      %v5679 = vadd.f32 %v5464, %v5645
      %v5680 = vadd.f32 %v5465, %v5650
      %v5681 = vadd.f32 %v5466, %v5655
      %v5682 = vadd.f32 %v5467, %v5660
      %s5683 = scalar_lea.vmem %s3, 512
      %v5684 = vld [vmem:[%s5683] sm:$0xff]
      %v5685 = vld [vmem:[%s5683 + $0x8] sm:$0xff]
      %v5686 = vld [vmem:[%s5683 + $0x10] sm:$0xff]
      %v5687 = vld [vmem:[%s5683 + $0x18] sm:$0xff]
      %v5688 = vld [vmem:[%s5683 + $0x20] sm:$0xff]
      %v5689 = vld [vmem:[%s5683 + $0x28] sm:$0xff]
      %v5690 = vld [vmem:[%s5683 + $0x30] sm:$0xff]
      %v5691 = vld [vmem:[%s5683 + $0x38] sm:$0xff]
      %v5692 = vrot.slane %v3661, 2
      %v5693 = vsel %vm4166, %v4206, %v5692
      %v5694 = vrot.slane %v3662, 2
      %v5695 = vsel %vm4166, %v5692, %v5694
      %v5696 = vrot.slane %v3663, 2
      %v5697 = vsel %vm4166, %v5694, %v5696
      %v5698 = vrot.slane %v3664, 2
      %v5699 = vsel %vm4166, %v5696, %v5698
      %v5700 = vrot.slane %v3665, 2
      %v5701 = vsel %vm4166, %v5698, %v5700
      %v5702 = vsel %vm3746, %v5693, 0
      %v5704 = vsel %vm3746, %v5695, 0
      %v5706 = vsel %vm3746, %v5697, 0
      %v5708 = vsel %vm3746, %v5699, 0
      %v5710 = vsel %vm3746, %v5701, 0
      %5712 = vmatprep.subr.mxu0 0.0
      %5713 = vmatpush1.msra.mxu0 %v5684
      %5714 = vmatprep.subr.mxu0 0.0
      %5715 = vmatpush1.msra.mxu0 %v5685
      %5716 = vmatprep.subr.mxu0 0.0
      %5717 = vmatpush1.msra.mxu0 %v5686
      %5718 = vmatprep.subr.mxu0 0.0
      %5719 = vmatpush1.msra.mxu0 %v5687
      %5720 = vmatprep.subr.mxu0 0.0
      %5721 = vmatpush1.msra.mxu0 %v5688
      %5722 = vmatprep.subr.mxu0 0.0
      %5723 = vmatpush1.msra.mxu0 %v5689
      %5724 = vmatprep.subr.mxu0 0.0
      %5725 = vmatpush1.msra.mxu0 %v5690
      %5726 = vmatprep.subr.mxu0 0.0
      %5727 = vmatpush1.msra.mxu0 %v5691
      %5728 = vmatprep.subr.mxu0 0.0
      %5729 = vmatpush1.msra.mxu0 0.0
      %5730 = vmatprep.subr.mxu0 0.0
      %5731 = vmatpush1.msra.mxu0 0.0
      %5732 = vmatprep.subr.mxu0 0.0
      %5733 = vmatpush1.msra.mxu0 0.0
      %5734 = vmatprep.subr.mxu0 0.0
      %5735 = vmatpush1.msra.mxu0 0.0
      %5736 = vmatprep.subr.mxu0 0.0
      %5737 = vmatpush1.msra.mxu0 0.0
      %5738 = vmatprep.subr.mxu0 0.0
      %5739 = vmatpush1.msra.mxu0 0.0
      %5740 = vmatprep.subr.mxu0 0.0
      %5741 = vmatpush1.msra.mxu0 0.0
      %5742 = vmatprep.subr.mxu0 0.0
      %5743 = vmatpush1.msra.mxu0 0.0
      %5744 = vmatprep.subr.mxu0 0.0
      %5745 = vmatpush1.msra.mxu0 0.0
      %5746 = vmatprep.subr.mxu0 0.0
      %5747 = vmatpush1.msra.mxu0 0.0
      %5748 = vmatprep.subr.mxu0 0.0
      %5749 = vmatpush1.msra.mxu0 0.0
      %5750 = vmatprep.subr.mxu0 0.0
      %5751 = vmatpush1.msra.mxu0 0.0
      %5752 = vmatprep.subr.mxu0 0.0
      %5753 = vmatpush1.msra.mxu0 0.0
      %5754 = vmatprep.subr.mxu0 0.0
      %5755 = vmatpush1.msra.mxu0 0.0
      %5756 = vmatprep.subr.mxu0 0.0
      %5757 = vmatpush1.msra.mxu0 0.0
      %5758 = vmatprep.subr.mxu0 0.0
      %5759 = vmatpush1.msra.mxu0 0.0
      %5760 = vmatprep.subr.mxu0 0.0
      %5761 = vmatpush1.msra.mxu0 0.0
      %5762 = vmatprep.subr.mxu0 0.0
      %5763 = vmatpush1.msra.mxu0 0.0
      %5764 = vmatprep.subr.mxu0 0.0
      %5765 = vmatpush1.msra.mxu0 0.0
      %5766 = vmatprep.subr.mxu0 0.0
      %5767 = vmatpush1.msra.mxu0 0.0
      %5768 = vmatprep.subr.mxu0 0.0
      %5769 = vmatpush1.msra.mxu0 0.0
      %5770 = vmatprep.subr.mxu0 0.0
      %5771 = vmatpush1.msra.mxu0 0.0
      %5772 = vmatprep.subr.mxu0 0.0
      %5773 = vmatpush1.msra.mxu0 0.0
      %5774 = vmatprep.subr.mxu0 0.0
      %5775 = vmatpush1.msra.mxu0 0.0
      %5776 = vmatprep.mubr.f32.mxu0 0.0
      %5777 = vmatmul.mubr.f32.gmra.mrb[0].mxu0 %v4218
      %v5778 = vpop.f32.mrb[0].mxu0
      %v5779 = vadd.f32 0.0, %v5778
      %v5780 = vpop.f32.mrb[0].mxu0
      %5781 = vmatprep.mubr.f32.mxu0 0.0
      %5782 = vmatmul.mubr.f32.gmra.mrb[0].mxu0 %v4220
      %v5783 = vpop.f32.mrb[0].mxu0
      %v5784 = vadd.f32 0.0, %v5783
      %v5785 = vpop.f32.mrb[0].mxu0
      %5786 = vmatprep.mubr.f32.mxu0 0.0
      %5787 = vmatmul.mubr.f32.gmra.mrb[0].mxu0 %v4222
      %v5788 = vpop.f32.mrb[0].mxu0
      %v5789 = vadd.f32 0.0, %v5788
      %v5790 = vpop.f32.mrb[0].mxu0
      %5791 = vmatprep.mubr.f32.mxu0 0.0
      %5792 = vmatmul.mubr.f32.gmra.mrb[0].mxu0 %v4224
      %v5793 = vpop.f32.mrb[0].mxu0
      %v5794 = vadd.f32 0.0, %v5793
      %v5795 = vpop.f32.mrb[0].mxu0
      %5796 = vmatprep.mubr.f32.mxu0 0.0
      %5797 = vmatmul.mubr.f32.gmra.mrb[0].mxu0 %v4226
      %v5798 = vpop.f32.mrb[0].mxu0
      %v5799 = vadd.f32 0.0, %v5798
      %v5800 = vpop.f32.mrb[0].mxu0
      %5801 = vmatprep.mubr.f32.mxu0 0.0
      %5802 = vmatmul.mubr.f32.gmra.mrb[0].mxu0 %v4228
      %v5803 = vpop.f32.mrb[0].mxu0
      %v5804 = vadd.f32 0.0, %v5803
      %v5805 = vpop.f32.mrb[0].mxu0
      %5806 = vmatprep.mubr.f32.mxu0 0.0
      %5807 = vmatmul.mubr.f32.gmra.mrb[0].mxu0 %v4230
      %v5808 = vpop.f32.mrb[0].mxu0
      %v5809 = vadd.f32 0.0, %v5808
      %v5810 = vpop.f32.mrb[0].mxu0
      %5811 = vmatprep.mubr.f32.mxu0 0.0
      %5812 = vmatmul.mubr.f32.gmra.mrb[0].mxu0 %v4232
      %v5813 = vpop.f32.mrb[0].mxu0
      %v5814 = vadd.f32 0.0, %v5813
      %v5815 = vpop.f32.mrb[0].mxu0
      %5816 = vmatprep.mubr.f32.mxu0 0.0
      %5817 = vmatmul.mubr.f32.gmra.mrb[0].mxu0 %v4234
      %v5818 = vpop.f32.mrb[0].mxu0
      %v5819 = vadd.f32 0.0, %v5818
      %v5820 = vpop.f32.mrb[0].mxu0
      %5821 = vmatprep.mubr.f32.mxu0 0.0
      %5822 = vmatmul.mubr.f32.gmra.mrb[0].mxu0 %v4236
      %v5823 = vpop.f32.mrb[0].mxu0
      %v5824 = vadd.f32 0.0, %v5823
      %v5825 = vpop.f32.mrb[0].mxu0
      %5826 = vmatprep.mubr.f32.mxu0 0.0
      %5827 = vmatmul.mubr.f32.gmra.mrb[0].mxu0 %v4238
      %v5828 = vpop.f32.mrb[0].mxu0
      %v5829 = vadd.f32 0.0, %v5828
      %v5830 = vpop.f32.mrb[0].mxu0
      %5831 = vmatprep.mubr.f32.mxu0 0.0
      %5832 = vmatmul.mubr.f32.gmra.mrb[0].mxu0 %v4240
      %v5833 = vpop.f32.mrb[0].mxu0
      %v5834 = vadd.f32 0.0, %v5833
      %v5835 = vpop.f32.mrb[0].mxu0
      %5836 = vmatprep.mubr.f32.mxu0 0.0
      %5837 = vmatmul.mubr.f32.gmra.mrb[0].mxu0 %v4242
      %v5838 = vpop.f32.mrb[0].mxu0
      %v5839 = vadd.f32 0.0, %v5838
      %v5840 = vpop.f32.mrb[0].mxu0
      %5841 = vmatprep.mubr.f32.mxu0 0.0
      %5842 = vmatmul.mubr.f32.gmra.mrb[0].mxu0 %v4244
      %v5843 = vpop.f32.mrb[0].mxu0
      %v5844 = vadd.f32 0.0, %v5843
      %v5845 = vpop.f32.mrb[0].mxu0
      %5846 = vmatprep.mubr.f32.mxu0 0.0
      %5847 = vmatmul.mubr.f32.gmra.mrb[0].mxu0 %v4246
      %v5848 = vpop.f32.mrb[0].mxu0
      %v5849 = vadd.f32 0.0, %v5848
      %v5850 = vpop.f32.mrb[0].mxu0
      %5851 = vmatprep.mubr.f32.mxu0 0.0
      %5852 = vmatmul.mubr.f32.gmra.mrb[0].mxu0 %v5702
      %v5853 = vpop.f32.mrb[0].mxu0
      %v5854 = vadd.f32 0.0, %v5853
      %v5855 = vpop.f32.mrb[0].mxu0
      %5856 = vmatprep.mubr.f32.mxu0 0.0
      %5857 = vmatmul.mubr.f32.gmra.mrb[0].mxu0 %v5704
      %v5858 = vpop.f32.mrb[0].mxu0
      %v5859 = vadd.f32 0.0, %v5858
      %v5860 = vpop.f32.mrb[0].mxu0
      %5861 = vmatprep.mubr.f32.mxu0 0.0
      %5862 = vmatmul.mubr.f32.gmra.mrb[0].mxu0 %v5706
      %v5863 = vpop.f32.mrb[0].mxu0
      %v5864 = vadd.f32 0.0, %v5863
      %v5865 = vpop.f32.mrb[0].mxu0
      %5866 = vmatprep.mubr.f32.mxu0 0.0
      %5867 = vmatmul.mubr.f32.gmra.mrb[0].mxu0 %v5708
      %v5868 = vpop.f32.mrb[0].mxu0
      %v5869 = vadd.f32 0.0, %v5868
      %v5870 = vpop.f32.mrb[0].mxu0
      %5871 = vmatprep.mubr.f32.mxu0 0.0
      %5872 = vmatmul.mubr.f32.gmra.mrb[0].mxu0 %v5710
      %v5873 = vpop.f32.mrb[0].mxu0
      %v5874 = vadd.f32 0.0, %v5873
      %v5875 = vpop.f32.mrb[0].mxu0
      %5876 = vdwg.mxu0
      %v5877 = vadd.f32 %v5663, %v5779
      %v5878 = vadd.f32 %v5664, %v5784
      %v5879 = vadd.f32 %v5665, %v5789
      %v5880 = vadd.f32 %v5666, %v5794
      %v5881 = vadd.f32 %v5667, %v5799
      %v5882 = vadd.f32 %v5668, %v5804
      %v5883 = vadd.f32 %v5669, %v5809
      %v5884 = vadd.f32 %v5670, %v5814
      %v5885 = vadd.f32 %v5671, %v5819
      %v5886 = vadd.f32 %v5672, %v5824
      %v5887 = vadd.f32 %v5673, %v5829
      %v5888 = vadd.f32 %v5674, %v5834
      %v5889 = vadd.f32 %v5675, %v5839
      %v5890 = vadd.f32 %v5676, %v5844
      %v5891 = vadd.f32 %v5677, %v5849
      %v5892 = vadd.f32 %v5678, %v5854
      %v5893 = vadd.f32 %v5679, %v5859
      %v5894 = vadd.f32 %v5680, %v5864
      %v5895 = vadd.f32 %v5681, %v5869
      %v5896 = vadd.f32 %v5682, %v5874
      %v5897 = vld [vmem:[#allocation2] sm:$0x1]
      %s5898 = vtos %v5897
      %v5899 = vstv %s5898
      %v5900 = vadd.f32 %v5877, %v5899
      %v5901 = vadd.f32 %v5878, %v5899
      %v5902 = vadd.f32 %v5879, %v5899
      %v5903 = vadd.f32 %v5880, %v5899
      %v5904 = vadd.f32 %v5881, %v5899
      %v5905 = vadd.f32 %v5882, %v5899
      %v5906 = vadd.f32 %v5883, %v5899
      %v5907 = vadd.f32 %v5884, %v5899
      %v5908 = vadd.f32 %v5885, %v5899
      %v5909 = vadd.f32 %v5886, %v5899
      %v5910 = vadd.f32 %v5887, %v5899
      %v5911 = vadd.f32 %v5888, %v5899
      %v5912 = vadd.f32 %v5889, %v5899
      %v5913 = vadd.f32 %v5890, %v5899
      %v5914 = vadd.f32 %v5891, %v5899
      %v5915 = vadd.f32 %v5892, %v5899
      %v5916 = vadd.f32 %v5893, %v5899
      %v5917 = vadd.f32 %v5894, %v5899
      %v5918 = vadd.f32 %v5895, %v5899
      %v5919 = vadd.f32 %v5896, %v5899
      %vm5920 = vcmask 7168
      %5921 = vst.msk [vmem:[%s309] sm:$0xff] %vm5920, %v5900
      %5922 = vst.msk [vmem:[%s309 + $0x8] sm:$0xff] %vm5920, %v5901
      %5923 = vst.msk [vmem:[%s309 + $0x10] sm:$0xff] %vm5920, %v5902
      %5924 = vst.msk [vmem:[%s309 + $0x18] sm:$0xff] %vm5920, %v5903
      %5925 = vst.msk [vmem:[%s309 + $0x20] sm:$0xff] %vm5920, %v5904
      %5926 = vst.msk [vmem:[%s309 + $0x28] sm:$0xff] %vm5920, %v5905
      %5927 = vst.msk [vmem:[%s309 + $0x30] sm:$0xff] %vm5920, %v5906
      %5928 = vst.msk [vmem:[%s309 + $0x38] sm:$0xff] %vm5920, %v5907
      %5929 = vst.msk [vmem:[%s309 + $0x40] sm:$0xff] %vm5920, %v5908
      %5930 = vst.msk [vmem:[%s309 + $0x48] sm:$0xff] %vm5920, %v5909
      %5931 = vst.msk [vmem:[%s309 + $0x50] sm:$0xff] %vm5920, %v5910
      %5932 = vst.msk [vmem:[%s309 + $0x58] sm:$0xff] %vm5920, %v5911
      %5933 = vst.msk [vmem:[%s309 + $0x60] sm:$0xff] %vm5920, %v5912
      %5934 = vst.msk [vmem:[%s309 + $0x68] sm:$0xff] %vm5920, %v5913
      %5935 = vst.msk [vmem:[%s309 + $0x70] sm:$0xff] %vm5920, %v5914
      %5936 = vst.msk [vmem:[%s309 + $0x78] sm:$0xff] %vm5920, %v5915
      %5937 = vst.msk [vmem:[%s309 + $0x80] sm:$0xff] %vm5920, %v5916
      %5938 = vst.msk [vmem:[%s309 + $0x88] sm:$0xff] %vm5920, %v5917
      %5939 = vst.msk [vmem:[%s309 + $0x90] sm:$0xff] %vm5920, %v5918
      %5940 = vst.msk [vmem:[%s309 + $0x98] sm:$0xff] %vm5920, %v5919
      %p5941 = scmp.lt.s32.totalorder %s23, 1
      %s5942 = scalar_select %p5941, %s23, 1
      %p5943 = scmp.lt.s32.totalorder %s24, 1
      %s5944 = scalar_select %p5943, %s24, 1
      %s5945 = smul.addr %s5944, 20
      %s5946 = smul.addr %s5942, 40
      %s5947 = sadd.s32 %s5945, %s5946
      %s5948 = smul.addr %s5947, 8
      %s5949 = scalar_lea.vmem %s6, %s5948
      // Predicated region
      $region45: #{predict_disparity.1} parent=43 // pred_check
        %p5950 = pneg %p189
      $region46: #{predict_disparity.1} parent=43 // pred_check_branch
        %5952 = sbr.rel (%p5950) target = $region48
      $region47: #{predict_disparity.1} parent=43 // pred_region
        _
      $region48: #{predict_disparity.1} parent=43 // pred_fallthru
        _
    $region44: #{predict_disparity.1} parent=5 // pred_fallthru
      _
    %p5953 = scmp.le.s32.totalorder 2, %s14
    // Predicated region
    $region49: #{predict_disparity.1} parent=5 // pred_check
      %p5954 = pneg %p5953
    $region50: #{predict_disparity.1} parent=5 // pred_check_branch
      %5956 = sbr.rel (%p5954) target = $region52
    $region51: #{predict_disparity.1} parent=5 // pred_region
      %s5957 = ssub.s32 %s14, 2
      // Predicated region
      $region53: #{predict_disparity.1} parent=51 // pred_check
        %p5958 = pneg %p195
      $region54: #{predict_disparity.1} parent=51 // pred_check_branch
        %5960 = sbr.rel (%p5958) target = $region56
      $region55: #{predict_disparity.1} parent=51 // pred_region
        %p5961 = scmp.lt.s32.totalorder %s25, 1
        %s5962 = scalar_select %p5961, %s25, 1
        %p5963 = scmp.lt.s32.totalorder %s26, 1
        %s5964 = scalar_select %p5963, %s26, 1
        %s5965 = smul.addr %s5964, 20
        %s5966 = smul.addr %s5962, 40
        %s5967 = sadd.s32 %s5965, %s5966
        %s5968 = smul.addr %s5967, 8
        %s5969 = scalar_lea.vmem %s6, %s5968
      $region56: #{predict_disparity.1} parent=51 // pred_fallthru
        _
    $region52: #{predict_disparity.1} parent=5 // pred_fallthru
      _
  $region6: #{predict_disparity.1} parent=0 // loop_footer
    %s18 = sadd.s32 1, %s14
  $region7: #{predict_disparity.1} parent=0 // loop_footer_branch
    %13 = sbr.rel target = $region3
  $region8: #{predict_disparity.1} parent=0 // loop_exit
    _

</llo_original>
